<compile_context>
chip_gen: v5e
topology: v5e:2x2
jax: 0.10.0
libtpu: 0.0.40
codegen_flags: <defaults>
</compile_context>

<pallas_src>
import jax
import jax.numpy as jnp
import numpy as np
from jax import lax
from jax.experimental import pallas as pl
from jax.experimental.pallas import tpu as pltpu

EPS = 1e-5          # nn.InstanceNorm3d default eps
NEG_SLOPE = 0.01    # nn.LeakyReLU(0.01)
KSIZE = 3


def _make_kernel(D, H, W, Cout):
    HWCo = H * W * Cout

    def kernel(x_ref, t_ref, g_ref, gt_ref, o_ref):
        """One grid step = one batch element.

        x_ref  : (1, D+2, H*W*Cin)       bf16 input, zero-padded along D only
                                         (H and W 'SAME' padding folded into T)
        t_ref  : (3, H*W*Cin, H*W*Cout)  bf16 block-Toeplitz conv weight per kd
        g_ref  : (H*W*Cout, Cout)        f32 0/1 matrix: output column -> channel
        gt_ref : (Cout, H*W*Cout)        f32 transpose of g_ref
        o_ref  : (1, D, H*W*Cout)        lane-dense output view of NDHWC
        """
        # 3 kd-tap matmuls: M = D, K = H*W*Cin, N = H*W*Cout; bf16 in, f32 acc.
        # acc is only (D, H*W*Cout) = 4 vregs at this shape -> keep live in vregs.
        # TODO(synk): move acc into a pltpu.VMEM scratch (acc_ref[...] += dot)
        # once D*H*W*Cout grows beyond a few dozen vregs, and add a D-tile grid
        # axis with two-phase stats for large volumes (see wrapper TODO).
        acc = jnp.zeros((D, HWCo), jnp.float32)
        for kd in range(KSIZE):
            patch = x_ref[0, kd:kd + D, :]                         # (D, H*W*Cin)
            acc = acc + lax.dot_general(
                patch, t_ref[kd],
                (((1,), (0,)), ((), ())),
                preferred_element_type=jnp.float32)

        # InstanceNorm3d (affine=False): one-pass per-channel stats over (D,H,W).
        # acc columns are (h, w, co) triples, so the channel-group reduce /
        # broadcast is a tiny 0/1 matmul instead of a lane relayout.
        g = g_ref[...]                                             # (HWCo, Cout)
        gt = gt_ref[...]                                           # (Cout, HWCo)
        cnt = jnp.float32(D * H * W)

        col_sum = jnp.sum(acc, axis=0, keepdims=True)              # (1, HWCo)
        col_sumsq = jnp.sum(acc * acc, axis=0, keepdims=True)      # (1, HWCo)
        s = lax.dot_general(col_sum, g, (((1,), (0,)), ((), ())),
                            preferred_element_type=jnp.float32)    # (1, Cout)
        ss = lax.dot_general(col_sumsq, g, (((1,), (0,)), ((), ())),
                             preferred_element_type=jnp.float32)   # (1, Cout)
        mean = s / cnt
        var = jnp.maximum(ss / cnt - mean * mean, 0.0)             # clamp cancellation
        inv = lax.rsqrt(var + EPS)

        # broadcast per-channel (1, Cout) back to per-column (1, H*W*Cout)
        mean_col = lax.dot_general(mean, gt, (((1,), (0,)), ((), ())),
                                   preferred_element_type=jnp.float32)
        inv_col = lax.dot_general(inv, gt, (((1,), (0,)), ((), ())),
                                  preferred_element_type=jnp.float32)

        y = (acc - mean_col) * inv_col
        y = jnp.where(y >= 0, y, NEG_SLOPE * y)                    # LeakyReLU(0.01)
        o_ref[0] = y.astype(o_ref.dtype)

    return kernel


def conv_norm_relu_3d_forward(x_ncdhw, weight_oidhw, bias=None):
    """x: (N, Cin, D, H, W), weight: (Cout, Cin, 3, 3, 3), bias: (Cout,) or None.

    The Conv3d bias is mathematically cancelled by InstanceNorm3d's per-channel
    mean subtraction (affine=False), so it is never sent to the kernel.
    """
    del bias  # cancels exactly under InstanceNorm(affine=False)
    N, Cin, D, H, W = x_ncdhw.shape
    Cout = weight_oidhw.shape[0]
    dtype = x_ncdhw.dtype

    # --- wrapper-side layout glue (channels-last; halo pad along D only) ---
    # TODO(synk): keep activations channels-last end-to-end across layers and
    # handle the D halo in-kernel so these transpose/pad HBM passes disappear.
    x = jnp.transpose(x_ncdhw, (0, 2, 3, 4, 1))                    # (N,D,H,W,Cin)
    xp = jnp.pad(x, ((0, 0), (1, 1), (0, 0), (0, 0), (0, 0)))
    xp = xp.reshape(N, D + 2, H * W * Cin).astype(jnp.bfloat16)    # lane dim H*W*Cin

    # Block-Toeplitz weights: fold kh/kw taps and the H/W 'SAME' zero-padding
    # into the contraction.
    #   T[kd][(hi*W+wi)*Cin+ci, (h*W+w)*Cout+co] = wt[kd,kh,kw,ci,co]
    #     iff hi == h+kh-1 and wi == w+kw-1 (both in bounds), else 0.
    # Nonzero density ~ 9/(H*W); fine while H, W are small.
    # TODO(synk): for large H*W, fold in tiles (keep folded lane width near
    # 128-512 output columns) so zero-MAC MXU waste stays bounded.
    wt = jnp.transpose(weight_oidhw, (2, 3, 4, 1, 0))              # (3,3,3,Cin,Cout)
    hi = np.arange(H)[:, None]
    ho = np.arange(H)[None, :]
    wi = np.arange(W)[:, None]
    wo = np.arange(W)[None, :]
    shift_h = np.stack([(hi == ho + kh - 1) for kh in range(KSIZE)], 0)  # (3,H,H)
    shift_w = np.stack([(wi == wo + kw - 1) for kw in range(KSIZE)], 0)  # (3,W,W)
    T = jnp.einsum('ayh,bxw,dabio->dyxihwo',
                   jnp.asarray(shift_h, wt.dtype),
                   jnp.asarray(shift_w, wt.dtype), wt)             # (3,H,W,Cin,H,W,Cout)
    T = T.reshape(KSIZE, H * W * Cin, H * W * Cout).astype(jnp.bfloat16)

    # 0/1 group matrices mapping output columns (h, w, co) <-> channel co.
    G = jnp.tile(jnp.eye(Cout, dtype=jnp.float32), (H * W, 1))     # (H*W*Cout, Cout)
    Gt = jnp.transpose(G)                                          # (Cout, H*W*Cout)

    kernel = _make_kernel(D, H, W, Cout)
    out = pl.pallas_call(
        kernel,
        out_shape=jax.ShapeDtypeStruct((N, D, H * W * Cout), dtype),
        grid_spec=pltpu.PrefetchScalarGridSpec(
            num_scalar_prefetch=0,
            grid=(N,),
            in_specs=[
                pl.BlockSpec((1, D + 2, H * W * Cin),
                             lambda n: (n, 0, 0)),
                # grid-invariant operands: single-buffered (no double-buffer waste)
                pl.BlockSpec((KSIZE, H * W * Cin, H * W * Cout),
                             lambda n: (0, 0, 0),
                             pipeline_mode=pl.Buffered(1)),
                pl.BlockSpec((H * W * Cout, Cout), lambda n: (0, 0),
                             pipeline_mode=pl.Buffered(1)),
                pl.BlockSpec((Cout, H * W * Cout), lambda n: (0, 0),
                             pipeline_mode=pl.Buffered(1)),
            ],
            out_specs=pl.BlockSpec((1, D, H * W * Cout),
                                   lambda n: (n, 0, 0)),
        ),
        compiler_params=pltpu.CompilerParams(
            dimension_semantics=("parallel",),
            # v6e/v5e have 128 MiB physical VMEM; keep this <=48 MiB on v7x.
            vmem_limit_bytes=64 * 1024 * 1024),
    )(xp, T, G, Gt)

    # TODO(synk): for large volumes add a spatial D-tile grid axis (+2 halo) with
    # two-phase InstanceNorm stats so per-step blocks fit v7x's 64 MiB VMEM and
    # both of its TensorCores get >=2 grid steps each.

    out = out.reshape(N, D, H, W, Cout)
    return jnp.transpose(out, (0, 4, 1, 2, 3))                     # back to NCDHW


def _reference(x, weight, bias):
    y = lax.conv_general_dilated(
        x.astype(jnp.float32), weight.astype(jnp.float32),
        window_strides=(1, 1, 1), padding="SAME",
        dimension_numbers=("NCDHW", "OIDHW", "NCDHW"))
    y = y + bias.reshape(1, -1, 1, 1, 1)
    mean = jnp.mean(y, axis=(2, 3, 4), keepdims=True)
    var = jnp.mean((y - mean) ** 2, axis=(2, 3, 4), keepdims=True)
    y = (y - mean) / jnp.sqrt(var + EPS)
    return jnp.where(y >= 0, y, NEG_SLOPE * y)


if __name__ == "__main__":
    # small shapes consistent with the module: N=2, Cin=4, Cout=8, D=H=W=8
    N, Cin, Cout, D, H, W = 2, 4, 8, 8, 8, 8

    key = jax.random.PRNGKey(0)
    kx, kw, kb = jax.random.split(key, 3)
    x = jax.random.normal(kx, (N, Cin, D, H, W), dtype=jnp.float32)

    fan_in = Cin * KSIZE * KSIZE * KSIZE
    weight = jax.random.normal(kw, (Cout, Cin, KSIZE, KSIZE, KSIZE),
                               dtype=jnp.float32) / np.sqrt(fan_in)
    bias = jax.random.normal(kb, (Cout,), dtype=jnp.float32) * 0.1

    fwd = jax.jit(conv_norm_relu_3d_forward)
    out = jax.block_until_ready(fwd(x, weight, bias))
    ref = jax.block_until_ready(_reference(x, weight, bias))

    assert out.shape == (N, Cout, D, H, W)
    # bf16 MXU feed (f32 accumulate): tolerance loosened vs. the pure-f32 version.
    np.testing.assert_allclose(np.asarray(out), np.asarray(ref),
                               rtol=2e-2, atol=2e-2)
    print("KERNEL_OK")
</pallas_src>

<mosaic_0001>
module attributes {stable_mosaic.version = 11 : i64} {
  func.func @kernel(%arg0: i32, %arg1: memref<1x10x256xbf16, #tpu.memory_space<vmem>>, %arg2: memref<3x256x512xbf16, #tpu.memory_space<vmem>>, %arg3: memref<512x8xf32, #tpu.memory_space<vmem>>, %arg4: memref<8x512xf32, #tpu.memory_space<vmem>>, %arg5: memref<1x8x512xf32, #tpu.memory_space<vmem>>) attributes {dimension_semantics = [#tpu.dimension_semantics<parallel>], iteration_bounds = array<i64: 2>, scalar_prefetch = 0 : i64, scratch_operands = 0 : i64, tpu.core_type = #tpu.core_type<tc>, window_params = [{transform_indices = @transform_0, window_bounds = array<i64: 1, 10, 256>}, {pipeline_mode = #tpu.pipeline_mode<synchronous>, transform_indices = @transform_1, window_bounds = array<i64: 3, 256, 512>}, {pipeline_mode = #tpu.pipeline_mode<synchronous>, transform_indices = @transform_2, window_bounds = array<i64: 512, 8>}, {pipeline_mode = #tpu.pipeline_mode<synchronous>, transform_indices = @transform_3, window_bounds = array<i64: 8, 512>}, {transform_indices = @transform_4, window_bounds = array<i64: 1, 8, 512>}]} {
    %cst = arith.constant 0.000000e+00 : f32
    %0 = vector.broadcast %cst : f32 to vector<8x512xf32>
    %c0 = arith.constant 0 : index
    %c0_0 = arith.constant 0 : index
    %c0_1 = arith.constant 0 : index
    %1 = vector.load %arg1[%c0, %c0_0, %c0_1] : memref<1x10x256xbf16, #tpu.memory_space<vmem>>, vector<1x8x256xbf16>
    %2 = vector.shape_cast %1 : vector<1x8x256xbf16> to vector<8x256xbf16>
    %c0_2 = arith.constant 0 : index
    %c0_3 = arith.constant 0 : index
    %c0_4 = arith.constant 0 : index
    %3 = vector.load %arg2[%c0_2, %c0_3, %c0_4] : memref<3x256x512xbf16, #tpu.memory_space<vmem>>, vector<1x256x512xbf16>
    %4 = vector.shape_cast %3 : vector<1x256x512xbf16> to vector<256x512xbf16>
    %cst_5 = arith.constant dense<0.000000e+00> : vector<8x512xf32>
    %5 = tpu.matmul %2, %4, %cst_5 {dimension_numbers = #tpu.dot_dimension_numbers<[1], [0], [0], [1], [0, 0, 1, 1], [], []>} : vector<8x256xbf16>, vector<256x512xbf16>, vector<8x512xf32> -> vector<8x512xf32>
    %6 = arith.addf %0, %5 : vector<8x512xf32>
    %c0_6 = arith.constant 0 : index
    %c1 = arith.constant 1 : index
    %c0_7 = arith.constant 0 : index
    %7 = vector.load %arg1[%c0_6, %c1, %c0_7] : memref<1x10x256xbf16, #tpu.memory_space<vmem>>, vector<1x8x256xbf16>
    %8 = vector.shape_cast %7 : vector<1x8x256xbf16> to vector<8x256xbf16>
    %c1_8 = arith.constant 1 : index
    %c0_9 = arith.constant 0 : index
    %c0_10 = arith.constant 0 : index
    %9 = vector.load %arg2[%c1_8, %c0_9, %c0_10] : memref<3x256x512xbf16, #tpu.memory_space<vmem>>, vector<1x256x512xbf16>
    %10 = vector.shape_cast %9 : vector<1x256x512xbf16> to vector<256x512xbf16>
    %cst_11 = arith.constant dense<0.000000e+00> : vector<8x512xf32>
    %11 = tpu.matmul %8, %10, %cst_11 {dimension_numbers = #tpu.dot_dimension_numbers<[1], [0], [0], [1], [0, 0, 1, 1], [], []>} : vector<8x256xbf16>, vector<256x512xbf16>, vector<8x512xf32> -> vector<8x512xf32>
    %12 = arith.addf %6, %11 : vector<8x512xf32>
    %c0_12 = arith.constant 0 : index
    %c2 = arith.constant 2 : index
    %c0_13 = arith.constant 0 : index
    %13 = vector.load %arg1[%c0_12, %c2, %c0_13] : memref<1x10x256xbf16, #tpu.memory_space<vmem>>, vector<1x8x256xbf16>
    %14 = vector.shape_cast %13 : vector<1x8x256xbf16> to vector<8x256xbf16>
    %c2_14 = arith.constant 2 : index
    %c0_15 = arith.constant 0 : index
    %c0_16 = arith.constant 0 : index
    %15 = vector.load %arg2[%c2_14, %c0_15, %c0_16] : memref<3x256x512xbf16, #tpu.memory_space<vmem>>, vector<1x256x512xbf16>
    %16 = vector.shape_cast %15 : vector<1x256x512xbf16> to vector<256x512xbf16>
    %cst_17 = arith.constant dense<0.000000e+00> : vector<8x512xf32>
    %17 = tpu.matmul %14, %16, %cst_17 {dimension_numbers = #tpu.dot_dimension_numbers<[1], [0], [0], [1], [0, 0, 1, 1], [], []>} : vector<8x256xbf16>, vector<256x512xbf16>, vector<8x512xf32> -> vector<8x512xf32>
    %18 = arith.addf %12, %17 : vector<8x512xf32>
    %c0_18 = arith.constant 0 : index
    %c0_19 = arith.constant 0 : index
    %19 = vector.load %arg3[%c0_18, %c0_19] : memref<512x8xf32, #tpu.memory_space<vmem>>, vector<512x8xf32>
    %c0_20 = arith.constant 0 : index
    %c0_21 = arith.constant 0 : index
    %20 = vector.load %arg4[%c0_20, %c0_21] : memref<8x512xf32, #tpu.memory_space<vmem>>, vector<8x512xf32>
    %cst_22 = arith.constant dense<0.000000e+00> : vector<512xf32>
    %21 = vector.multi_reduction <add>, %18, %cst_22 [0] : vector<8x512xf32> to vector<512xf32>
    %22 = vector.shape_cast %21 : vector<512xf32> to vector<1x512xf32>
    %23 = arith.mulf %18, %18 : vector<8x512xf32>
    %cst_23 = arith.constant dense<0.000000e+00> : vector<512xf32>
    %24 = vector.multi_reduction <add>, %23, %cst_23 [0] : vector<8x512xf32> to vector<512xf32>
    %25 = vector.shape_cast %24 : vector<512xf32> to vector<1x512xf32>
    %cst_24 = arith.constant dense<0.000000e+00> : vector<1x8xf32>
    %26 = tpu.matmul %22, %19, %cst_24 {dimension_numbers = #tpu.dot_dimension_numbers<[1], [0], [0], [1], [0, 0, 1, 1], [], []>} : vector<1x512xf32>, vector<512x8xf32>, vector<1x8xf32> -> vector<1x8xf32>
    %cst_25 = arith.constant dense<0.000000e+00> : vector<1x8xf32>
    %27 = tpu.matmul %25, %19, %cst_25 {dimension_numbers = #tpu.dot_dimension_numbers<[1], [0], [0], [1], [0, 0, 1, 1], [], []>} : vector<1x512xf32>, vector<512x8xf32>, vector<1x8xf32> -> vector<1x8xf32>
    %cst_26 = arith.constant 5.120000e+02 : f32
    %28 = vector.broadcast %cst_26 : f32 to vector<1x8xf32>
    %29 = arith.divf %26, %28 : vector<1x8xf32>
    %cst_27 = arith.constant 5.120000e+02 : f32
    %30 = vector.broadcast %cst_27 : f32 to vector<1x8xf32>
    %31 = arith.divf %27, %30 : vector<1x8xf32>
    %32 = arith.mulf %29, %29 : vector<1x8xf32>
    %33 = arith.subf %31, %32 : vector<1x8xf32>
    %cst_28 = arith.constant 0.000000e+00 : f32
    %34 = vector.broadcast %cst_28 : f32 to vector<1x8xf32>
    %35 = arith.maximumf %33, %34 : vector<1x8xf32>
    %cst_29 = arith.constant 9.99999974E-6 : f32
    %36 = vector.broadcast %cst_29 : f32 to vector<1x8xf32>
    %37 = arith.addf %35, %36 : vector<1x8xf32>
    %38 = math.rsqrt %37 : vector<1x8xf32>
    %cst_30 = arith.constant dense<0.000000e+00> : vector<1x512xf32>
    %39 = tpu.matmul %29, %20, %cst_30 {dimension_numbers = #tpu.dot_dimension_numbers<[1], [0], [0], [1], [0, 0, 1, 1], [], []>} : vector<1x8xf32>, vector<8x512xf32>, vector<1x512xf32> -> vector<1x512xf32>
    %cst_31 = arith.constant dense<0.000000e+00> : vector<1x512xf32>
    %40 = tpu.matmul %38, %20, %cst_31 {dimension_numbers = #tpu.dot_dimension_numbers<[1], [0], [0], [1], [0, 0, 1, 1], [], []>} : vector<1x8xf32>, vector<8x512xf32>, vector<1x512xf32> -> vector<1x512xf32>
    %41 = vector.broadcast %39 : vector<1x512xf32> to vector<8x512xf32>
    %42 = arith.subf %18, %41 : vector<8x512xf32>
    %43 = vector.broadcast %40 : vector<1x512xf32> to vector<8x512xf32>
    %44 = arith.mulf %42, %43 : vector<8x512xf32>
    %cst_32 = arith.constant 0.000000e+00 : f32
    %45 = vector.broadcast %cst_32 : f32 to vector<8x512xf32>
    %46 = arith.cmpf oge, %44, %45 : vector<8x512xf32>
    %cst_33 = arith.constant 0.00999999977 : f32
    %47 = vector.broadcast %cst_33 : f32 to vector<8x512xf32>
    %48 = arith.mulf %47, %44 : vector<8x512xf32>
    %49 = arith.select %46, %44, %48 : vector<8x512xi1>, vector<8x512xf32>
    %c0_34 = arith.constant 0 : index
    %c0_35 = arith.constant 0 : index
    %c0_36 = arith.constant 0 : index
    %50 = vector.load %arg5[%c0_34, %c0_35, %c0_36] : memref<1x8x512xf32, #tpu.memory_space<vmem>>, vector<1x8x512xf32>
    %51 = vector.shape_cast %50 : vector<1x8x512xf32> to vector<8x512xf32>
    %52 = vector.shape_cast %49 : vector<8x512xf32> to vector<1x8x512xf32>
    tpu.vector_store %arg5[%c0_34, %c0_35, %c0_36], %52 {strides = array<i32>} : memref<1x8x512xf32, #tpu.memory_space<vmem>>, vector<1x8x512xf32>,
    return
  }
  func.func @transform_0(%arg0: i32) -> (i32, i32, i32) {
    %c0_i32 = arith.constant 0 : i32
    %c0_i32_0 = arith.constant 0 : i32
    %c0_i32_1 = arith.constant 0 : i32
    return %arg0, %c0_i32, %c0_i32_0 : i32, i32, i32
  }
  func.func @transform_1(%arg0: i32) -> (i32, i32, i32) {
    %c0_i32 = arith.constant 0 : i32
    %c0_i32_0 = arith.constant 0 : i32
    %c0_i32_1 = arith.constant 0 : i32
    %c0_i32_2 = arith.constant 0 : i32
    return %c0_i32, %c0_i32_0, %c0_i32_1 : i32, i32, i32
  }
  func.func @transform_2(%arg0: i32) -> (i32, i32) {
    %c0_i32 = arith.constant 0 : i32
    %c0_i32_0 = arith.constant 0 : i32
    %c0_i32_1 = arith.constant 0 : i32
    return %c0_i32, %c0_i32_0 : i32, i32
  }
  func.func @transform_3(%arg0: i32) -> (i32, i32) {
    %c0_i32 = arith.constant 0 : i32
    %c0_i32_0 = arith.constant 0 : i32
    %c0_i32_1 = arith.constant 0 : i32
    return %c0_i32, %c0_i32_0 : i32, i32
  }
  func.func @transform_4(%arg0: i32) -> (i32, i32, i32) {
    %c0_i32 = arith.constant 0 : i32
    %c0_i32_0 = arith.constant 0 : i32
    %c0_i32_1 = arith.constant 0 : i32
    return %arg0, %c0_i32, %c0_i32_0 : i32, i32, i32
  }
}

</mosaic_0001>

<llo_original>
// kernel: tile.9
$region0: #{tile.9}
  %s0 = inlined_call_operand.vmem [shape: f32[64,8,8], index: 0, kind: input, shape index: {}]
  %s1 = inlined_call_operand.vmem [shape: f32[512,8], index: 1, kind: output, shape index: {}]
  %s2 = smov 3
  %v3 = vld [vmem:[%s0] ss:$16 sm:%s2]
  %s4 = smov 12
  %v5 = vld [vmem:[%s0] ss:$16 sm:%s4]
  %vm6 = vcmask 1043458
  %v7 = vsel %vm6, %v5, %v3
  %s8 = smov 48
  %v9 = vld [vmem:[%s0] ss:$16 sm:%s8]
  %vm10 = vcmask 1045508
  %v11 = vsel %vm10, %v9, %v7
  %s12 = smov 192
  %v13 = vld [vmem:[%s0] ss:$16 sm:%s12]
  %vm14 = vcmask 1047558
  %v15 = vsel %vm14, %v13, %v11
  %vm16 = vcmask 64512
  %17 = vst.msk [vmem:[%s1] ss:$8 sm:$0xf] %vm16, %v15
  %s18 = scalar_lea.vmem %s1, 4294967265
  %19 = vst.msk [vmem:[%s18] ss:$8 sm:$0xf0] %vm16, %v15
  %s20 = scalar_lea.vmem %s0, 128
  %s21 = smov 3
  %v22 = vld [vmem:[%s20] ss:$16 sm:%s21]
  %s23 = scalar_lea.vmem %s0, 128
  %s24 = smov 12
  %v25 = vld [vmem:[%s23] ss:$16 sm:%s24]
  %vm26 = vcmask 1043458
  %v27 = vsel %vm26, %v25, %v22
  %s28 = scalar_lea.vmem %s0, 128
  %s29 = smov 48
  %v30 = vld [vmem:[%s28] ss:$16 sm:%s29]
  %vm31 = vcmask 1045508
  %v32 = vsel %vm31, %v30, %v27
  %s33 = scalar_lea.vmem %s0, 128
  %s34 = smov 192
  %v35 = vld [vmem:[%s33] ss:$16 sm:%s34]
  %vm36 = vcmask 1047558
  %v37 = vsel %vm36, %v35, %v32
  %vm38 = vcmask 64512
  %s39 = scalar_lea.vmem %s1, 2
  %40 = vst.msk [vmem:[%s39] ss:$8 sm:$0xf] %vm38, %v37
  %s41 = scalar_lea.vmem %s1, 4294967267
  %42 = vst.msk [vmem:[%s41] ss:$8 sm:$0xf0] %vm38, %v37
  %s43 = scalar_lea.vmem %s0, 256
  %s44 = smov 3
  %v45 = vld [vmem:[%s43] ss:$16 sm:%s44]
  %s46 = scalar_lea.vmem %s0, 256
  %s47 = smov 12
  %v48 = vld [vmem:[%s46] ss:$16 sm:%s47]
  %vm49 = vcmask 1043458
  %v50 = vsel %vm49, %v48, %v45
  %s51 = scalar_lea.vmem %s0, 256
  %s52 = smov 48
  %v53 = vld [vmem:[%s51] ss:$16 sm:%s52]
  %vm54 = vcmask 1045508
  %v55 = vsel %vm54, %v53, %v50
  %s56 = scalar_lea.vmem %s0, 256
  %s57 = smov 192
  %v58 = vld [vmem:[%s56] ss:$16 sm:%s57]
  %vm59 = vcmask 1047558
  %v60 = vsel %vm59, %v58, %v55
  %vm61 = vcmask 64512
  %s62 = scalar_lea.vmem %s1, 4
  %63 = vst.msk [vmem:[%s62] ss:$8 sm:$0xf] %vm61, %v60
  %s64 = scalar_lea.vmem %s1, 4294967269
  %65 = vst.msk [vmem:[%s64] ss:$8 sm:$0xf0] %vm61, %v60
  %s66 = scalar_lea.vmem %s0, 384
  %s67 = smov 3
  %v68 = vld [vmem:[%s66] ss:$16 sm:%s67]
  %s69 = scalar_lea.vmem %s0, 384
  %s70 = smov 12
  %v71 = vld [vmem:[%s69] ss:$16 sm:%s70]
  %vm72 = vcmask 1043458
  %v73 = vsel %vm72, %v71, %v68
  %s74 = scalar_lea.vmem %s0, 384
  %s75 = smov 48
  %v76 = vld [vmem:[%s74] ss:$16 sm:%s75]
  %vm77 = vcmask 1045508
  %v78 = vsel %vm77, %v76, %v73
  %s79 = scalar_lea.vmem %s0, 384
  %s80 = smov 192
  %v81 = vld [vmem:[%s79] ss:$16 sm:%s80]
  %vm82 = vcmask 1047558
  %v83 = vsel %vm82, %v81, %v78
  %vm84 = vcmask 64512
  %s85 = scalar_lea.vmem %s1, 6
  %86 = vst.msk [vmem:[%s85] ss:$8 sm:$0xf] %vm84, %v83
  %s87 = scalar_lea.vmem %s1, 4294967271
  %88 = vst.msk [vmem:[%s87] ss:$8 sm:$0xf0] %vm84, %v83
  %s89 = scalar_lea.vmem %s0, 15
  %v90 = vld [vmem:[%s89] sm:$0x1]
  %s91 = scalar_lea.vmem %s0, 78
  %v92 = vld [vmem:[%s91] sm:$0x2]
  %vm93 = vcmask 1041409
  %v94 = vsel %vm93, %v92, %v90
  %s95 = scalar_lea.vmem %s0, 141
  %v96 = vld [vmem:[%s95] sm:$0x4]
  %vm97 = vcmask 1042434
  %v98 = vsel %vm97, %v96, %v94
  %s99 = scalar_lea.vmem %s0, 204
  %v100 = vld [vmem:[%s99] sm:$0x8]
  %vm101 = vcmask 1043459
  %v102 = vsel %vm101, %v100, %v98
  %s103 = scalar_lea.vmem %s0, 267
  %v104 = vld [vmem:[%s103] sm:$0x10]
  %vm105 = vcmask 1044484
  %v106 = vsel %vm105, %v104, %v102
  %s107 = scalar_lea.vmem %s0, 330
  %v108 = vld [vmem:[%s107] sm:$0x20]
  %vm109 = vcmask 1045509
  %v110 = vsel %vm109, %v108, %v106
  %s111 = scalar_lea.vmem %s0, 393
  %v112 = vld [vmem:[%s111] sm:$0x40]
  %vm113 = vcmask 1046534
  %v114 = vsel %vm113, %v112, %v110
  %s115 = scalar_lea.vmem %s0, 456
  %v116 = vld [vmem:[%s115] sm:$0x80]
  %vm117 = vcmask 1047559
  %v118 = vsel %vm117, %v116, %v114
  %119 = vrot.lane.b32.xlu0 %v118, 120
  %v120 = vpop.permute.xlu0 %119
  %vm121 = vcmask 1048512
  %122 = vst.msk [vmem:[%s1] sm:$0xff] %vm121, %v120
  %s123 = scalar_lea.vmem %s0, 31
  %v124 = vld [vmem:[%s123] sm:$0x1]
  %s125 = scalar_lea.vmem %s0, 94
  %v126 = vld [vmem:[%s125] sm:$0x2]
  %vm127 = vcmask 1041409
  %v128 = vsel %vm127, %v126, %v124
  %s129 = scalar_lea.vmem %s0, 157
  %v130 = vld [vmem:[%s129] sm:$0x4]
  %vm131 = vcmask 1042434
  %v132 = vsel %vm131, %v130, %v128
  %s133 = scalar_lea.vmem %s0, 220
  %v134 = vld [vmem:[%s133] sm:$0x8]
  %vm135 = vcmask 1043459
  %v136 = vsel %vm135, %v134, %v132
  %s137 = scalar_lea.vmem %s0, 283
  %v138 = vld [vmem:[%s137] sm:$0x10]
  %vm139 = vcmask 1044484
  %v140 = vsel %vm139, %v138, %v136
  %s141 = scalar_lea.vmem %s0, 346
  %v142 = vld [vmem:[%s141] sm:$0x20]
  %vm143 = vcmask 1045509
  %v144 = vsel %vm143, %v142, %v140
  %s145 = scalar_lea.vmem %s0, 409
  %v146 = vld [vmem:[%s145] sm:$0x40]
  %vm147 = vcmask 1046534
  %v148 = vsel %vm147, %v146, %v144
  %s149 = scalar_lea.vmem %s0, 472
  %v150 = vld [vmem:[%s149] sm:$0x80]
  %vm151 = vcmask 1047559
  %v152 = vsel %vm151, %v150, %v148
  %153 = vrot.lane.b32.xlu0 %v152, 120
  %v154 = vpop.permute.xlu0 %153
  %vm155 = vcmask 1048512
  %s156 = scalar_lea.vmem %s1, 8
  %157 = vst.msk [vmem:[%s156] sm:$0xff] %vm155, %v154
  %s158 = scalar_lea.vmem %s0, 47
  %v159 = vld [vmem:[%s158] sm:$0x1]
  %s160 = scalar_lea.vmem %s0, 110
  %v161 = vld [vmem:[%s160] sm:$0x2]
  %vm162 = vcmask 1041409
  %v163 = vsel %vm162, %v161, %v159
  %s164 = scalar_lea.vmem %s0, 173
  %v165 = vld [vmem:[%s164] sm:$0x4]
  %vm166 = vcmask 1042434
  %v167 = vsel %vm166, %v165, %v163
  %s168 = scalar_lea.vmem %s0, 236
  %v169 = vld [vmem:[%s168] sm:$0x8]
  %vm170 = vcmask 1043459
  %v171 = vsel %vm170, %v169, %v167
  %s172 = scalar_lea.vmem %s0, 299
  %v173 = vld [vmem:[%s172] sm:$0x10]
  %vm174 = vcmask 1044484
  %v175 = vsel %vm174, %v173, %v171
  %s176 = scalar_lea.vmem %s0, 362
  %v177 = vld [vmem:[%s176] sm:$0x20]
  %vm178 = vcmask 1045509
  %v179 = vsel %vm178, %v177, %v175
  %s180 = scalar_lea.vmem %s0, 425
  %v181 = vld [vmem:[%s180] sm:$0x40]
  %vm182 = vcmask 1046534
  %v183 = vsel %vm182, %v181, %v179
  %s184 = scalar_lea.vmem %s0, 488
  %v185 = vld [vmem:[%s184] sm:$0x80]
  %vm186 = vcmask 1047559
  %v187 = vsel %vm186, %v185, %v183
  %188 = vrot.lane.b32.xlu0 %v187, 120
  %v189 = vpop.permute.xlu0 %188
  %vm190 = vcmask 1048512
  %s191 = scalar_lea.vmem %s1, 16
  %192 = vst.msk [vmem:[%s191] sm:$0xff] %vm190, %v189
  %s193 = scalar_lea.vmem %s0, 63
  %v194 = vld [vmem:[%s193] sm:$0x1]
  %s195 = scalar_lea.vmem %s0, 126
  %v196 = vld [vmem:[%s195] sm:$0x2]
  %vm197 = vcmask 1041409
  %v198 = vsel %vm197, %v196, %v194
  %s199 = scalar_lea.vmem %s0, 189
  %v200 = vld [vmem:[%s199] sm:$0x4]
  %vm201 = vcmask 1042434
  %v202 = vsel %vm201, %v200, %v198
  %s203 = scalar_lea.vmem %s0, 252
  %v204 = vld [vmem:[%s203] sm:$0x8]
  %vm205 = vcmask 1043459
  %v206 = vsel %vm205, %v204, %v202
  %s207 = scalar_lea.vmem %s0, 315
  %v208 = vld [vmem:[%s207] sm:$0x10]
  %vm209 = vcmask 1044484
  %v210 = vsel %vm209, %v208, %v206
  %s211 = scalar_lea.vmem %s0, 378
  %v212 = vld [vmem:[%s211] sm:$0x20]
  %vm213 = vcmask 1045509
  %v214 = vsel %vm213, %v212, %v210
  %s215 = scalar_lea.vmem %s0, 441
  %v216 = vld [vmem:[%s215] sm:$0x40]
  %vm217 = vcmask 1046534
  %v218 = vsel %vm217, %v216, %v214
  %s219 = scalar_lea.vmem %s0, 504
  %v220 = vld [vmem:[%s219] sm:$0x80]
  %vm221 = vcmask 1047559
  %v222 = vsel %vm221, %v220, %v218
  %223 = vrot.lane.b32.xlu0 %v222, 120
  %v224 = vpop.permute.xlu0 %223
  %vm225 = vcmask 1048512
  %s226 = scalar_lea.vmem %s1, 24
  %227 = vst.msk [vmem:[%s226] sm:$0xff] %vm225, %v224
  %s228 = scalar_lea.vmem %s0, 14
  %v229 = vld [vmem:[%s228] sm:$0x1]
  %s230 = scalar_lea.vmem %s0, 77
  %v231 = vld [vmem:[%s230] sm:$0x2]
  %vm232 = vcmask 1041409
  %v233 = vsel %vm232, %v231, %v229
  %s234 = scalar_lea.vmem %s0, 140
  %v235 = vld [vmem:[%s234] sm:$0x4]
  %vm236 = vcmask 1042434
  %v237 = vsel %vm236, %v235, %v233
  %s238 = scalar_lea.vmem %s0, 203
  %v239 = vld [vmem:[%s238] sm:$0x8]
  %vm240 = vcmask 1043459
  %v241 = vsel %vm240, %v239, %v237
  %s242 = scalar_lea.vmem %s0, 266
  %v243 = vld [vmem:[%s242] sm:$0x10]
  %vm244 = vcmask 1044484
  %v245 = vsel %vm244, %v243, %v241
  %s246 = scalar_lea.vmem %s0, 329
  %v247 = vld [vmem:[%s246] sm:$0x20]
  %vm248 = vcmask 1045509
  %v249 = vsel %vm248, %v247, %v245
  %s250 = scalar_lea.vmem %s0, 392
  %v251 = vld [vmem:[%s250] sm:$0x40]
  %vm252 = vcmask 1046534
  %v253 = vsel %vm252, %v251, %v249
  %s254 = scalar_lea.vmem %s0, 455
  %v255 = vld [vmem:[%s254] sm:$0x80]
  %vm256 = vcmask 1047559
  %v257 = vsel %vm256, %v255, %v253
  %258 = vrot.lane.b32.xlu0 %v257, 112
  %v259 = vpop.permute.xlu0 %258
  %vm260 = vcmask 982912
  %261 = vst.msk [vmem:[%s1] sm:$0xff] %vm260, %v259
  %s262 = scalar_lea.vmem %s0, 30
  %v263 = vld [vmem:[%s262] sm:$0x1]
  %s264 = scalar_lea.vmem %s0, 93
  %v265 = vld [vmem:[%s264] sm:$0x2]
  %vm266 = vcmask 1041409
  %v267 = vsel %vm266, %v265, %v263
  %s268 = scalar_lea.vmem %s0, 156
  %v269 = vld [vmem:[%s268] sm:$0x4]
  %vm270 = vcmask 1042434
  %v271 = vsel %vm270, %v269, %v267
  %s272 = scalar_lea.vmem %s0, 219
  %v273 = vld [vmem:[%s272] sm:$0x8]
  %vm274 = vcmask 1043459
  %v275 = vsel %vm274, %v273, %v271
  %s276 = scalar_lea.vmem %s0, 282
  %v277 = vld [vmem:[%s276] sm:$0x10]
  %vm278 = vcmask 1044484
  %v279 = vsel %vm278, %v277, %v275
  %s280 = scalar_lea.vmem %s0, 345
  %v281 = vld [vmem:[%s280] sm:$0x20]
  %vm282 = vcmask 1045509
  %v283 = vsel %vm282, %v281, %v279
  %s284 = scalar_lea.vmem %s0, 408
  %v285 = vld [vmem:[%s284] sm:$0x40]
  %vm286 = vcmask 1046534
  %v287 = vsel %vm286, %v285, %v283
  %s288 = scalar_lea.vmem %s0, 471
  %v289 = vld [vmem:[%s288] sm:$0x80]
  %vm290 = vcmask 1047559
  %v291 = vsel %vm290, %v289, %v287
  %292 = vrot.lane.b32.xlu0 %v291, 112
  %v293 = vpop.permute.xlu0 %292
  %vm294 = vcmask 982912
  %s295 = scalar_lea.vmem %s1, 8
  %296 = vst.msk [vmem:[%s295] sm:$0xff] %vm294, %v293
  %s297 = scalar_lea.vmem %s0, 46
  %v298 = vld [vmem:[%s297] sm:$0x1]
  %s299 = scalar_lea.vmem %s0, 109
  %v300 = vld [vmem:[%s299] sm:$0x2]
  %vm301 = vcmask 1041409
  %v302 = vsel %vm301, %v300, %v298
  %s303 = scalar_lea.vmem %s0, 172
  %v304 = vld [vmem:[%s303] sm:$0x4]
  %vm305 = vcmask 1042434
  %v306 = vsel %vm305, %v304, %v302
  %s307 = scalar_lea.vmem %s0, 235
  %v308 = vld [vmem:[%s307] sm:$0x8]
  %vm309 = vcmask 1043459
  %v310 = vsel %vm309, %v308, %v306
  %s311 = scalar_lea.vmem %s0, 298
  %v312 = vld [vmem:[%s311] sm:$0x10]
  %vm313 = vcmask 1044484
  %v314 = vsel %vm313, %v312, %v310
  %s315 = scalar_lea.vmem %s0, 361
  %v316 = vld [vmem:[%s315] sm:$0x20]
  %vm317 = vcmask 1045509
  %v318 = vsel %vm317, %v316, %v314
  %s319 = scalar_lea.vmem %s0, 424
  %v320 = vld [vmem:[%s319] sm:$0x40]
  %vm321 = vcmask 1046534
  %v322 = vsel %vm321, %v320, %v318
  %s323 = scalar_lea.vmem %s0, 487
  %v324 = vld [vmem:[%s323] sm:$0x80]
  %vm325 = vcmask 1047559
  %v326 = vsel %vm325, %v324, %v322
  %327 = vrot.lane.b32.xlu0 %v326, 112
  %v328 = vpop.permute.xlu0 %327
  %vm329 = vcmask 982912
  %s330 = scalar_lea.vmem %s1, 16
  %331 = vst.msk [vmem:[%s330] sm:$0xff] %vm329, %v328
  %s332 = scalar_lea.vmem %s0, 62
  %v333 = vld [vmem:[%s332] sm:$0x1]
  %s334 = scalar_lea.vmem %s0, 125
  %v335 = vld [vmem:[%s334] sm:$0x2]
  %vm336 = vcmask 1041409
  %v337 = vsel %vm336, %v335, %v333
  %s338 = scalar_lea.vmem %s0, 188
  %v339 = vld [vmem:[%s338] sm:$0x4]
  %vm340 = vcmask 1042434
  %v341 = vsel %vm340, %v339, %v337
  %s342 = scalar_lea.vmem %s0, 251
  %v343 = vld [vmem:[%s342] sm:$0x8]
  %vm344 = vcmask 1043459
  %v345 = vsel %vm344, %v343, %v341
  %s346 = scalar_lea.vmem %s0, 314
  %v347 = vld [vmem:[%s346] sm:$0x10]
  %vm348 = vcmask 1044484
  %v349 = vsel %vm348, %v347, %v345
  %s350 = scalar_lea.vmem %s0, 377
  %v351 = vld [vmem:[%s350] sm:$0x20]
  %vm352 = vcmask 1045509
  %v353 = vsel %vm352, %v351, %v349
  %s354 = scalar_lea.vmem %s0, 440
  %v355 = vld [vmem:[%s354] sm:$0x40]
  %vm356 = vcmask 1046534
  %v357 = vsel %vm356, %v355, %v353
  %s358 = scalar_lea.vmem %s0, 503
  %v359 = vld [vmem:[%s358] sm:$0x80]
  %vm360 = vcmask 1047559
  %v361 = vsel %vm360, %v359, %v357
  %362 = vrot.lane.b32.xlu0 %v361, 112
  %v363 = vpop.permute.xlu0 %362
  %vm364 = vcmask 982912
  %s365 = scalar_lea.vmem %s1, 24
  %366 = vst.msk [vmem:[%s365] sm:$0xff] %vm364, %v363
  %s367 = scalar_lea.vmem %s0, 13
  %v368 = vld [vmem:[%s367] sm:$0x1]
  %s369 = scalar_lea.vmem %s0, 76
  %v370 = vld [vmem:[%s369] sm:$0x2]
  %vm371 = vcmask 1041409
  %v372 = vsel %vm371, %v370, %v368
  %s373 = scalar_lea.vmem %s0, 139
  %v374 = vld [vmem:[%s373] sm:$0x4]
  %vm375 = vcmask 1042434
  %v376 = vsel %vm375, %v374, %v372
  %s377 = scalar_lea.vmem %s0, 202
  %v378 = vld [vmem:[%s377] sm:$0x8]
  %vm379 = vcmask 1043459
  %v380 = vsel %vm379, %v378, %v376
  %s381 = scalar_lea.vmem %s0, 265
  %v382 = vld [vmem:[%s381] sm:$0x10]
  %vm383 = vcmask 1044484
  %v384 = vsel %vm383, %v382, %v380
  %s385 = scalar_lea.vmem %s0, 328
  %v386 = vld [vmem:[%s385] sm:$0x20]
  %vm387 = vcmask 1045509
  %v388 = vsel %vm387, %v386, %v384
  %s389 = scalar_lea.vmem %s0, 391
  %v390 = vld [vmem:[%s389] sm:$0x40]
  %vm391 = vcmask 1046534
  %v392 = vsel %vm391, %v390, %v388
  %s393 = scalar_lea.vmem %s0, 454
  %v394 = vld [vmem:[%s393] sm:$0x80]
  %vm395 = vcmask 1047559
  %v396 = vsel %vm395, %v394, %v392
  %397 = vrot.lane.b32.xlu0 %v396, 104
  %v398 = vpop.permute.xlu0 %397
  %vm399 = vcmask 917312
  %400 = vst.msk [vmem:[%s1] sm:$0xff] %vm399, %v398
  %s401 = scalar_lea.vmem %s0, 29
  %v402 = vld [vmem:[%s401] sm:$0x1]
  %s403 = scalar_lea.vmem %s0, 92
  %v404 = vld [vmem:[%s403] sm:$0x2]
  %vm405 = vcmask 1041409
  %v406 = vsel %vm405, %v404, %v402
  %s407 = scalar_lea.vmem %s0, 155
  %v408 = vld [vmem:[%s407] sm:$0x4]
  %vm409 = vcmask 1042434
  %v410 = vsel %vm409, %v408, %v406
  %s411 = scalar_lea.vmem %s0, 218
  %v412 = vld [vmem:[%s411] sm:$0x8]
  %vm413 = vcmask 1043459
  %v414 = vsel %vm413, %v412, %v410
  %s415 = scalar_lea.vmem %s0, 281
  %v416 = vld [vmem:[%s415] sm:$0x10]
  %vm417 = vcmask 1044484
  %v418 = vsel %vm417, %v416, %v414
  %s419 = scalar_lea.vmem %s0, 344
  %v420 = vld [vmem:[%s419] sm:$0x20]
  %vm421 = vcmask 1045509
  %v422 = vsel %vm421, %v420, %v418
  %s423 = scalar_lea.vmem %s0, 407
  %v424 = vld [vmem:[%s423] sm:$0x40]
  %vm425 = vcmask 1046534
  %v426 = vsel %vm425, %v424, %v422
  %s427 = scalar_lea.vmem %s0, 470
  %v428 = vld [vmem:[%s427] sm:$0x80]
  %vm429 = vcmask 1047559
  %v430 = vsel %vm429, %v428, %v426
  %431 = vrot.lane.b32.xlu0 %v430, 104
  %v432 = vpop.permute.xlu0 %431
  %vm433 = vcmask 917312
  %s434 = scalar_lea.vmem %s1, 8
  %435 = vst.msk [vmem:[%s434] sm:$0xff] %vm433, %v432
  %s436 = scalar_lea.vmem %s0, 45
  %v437 = vld [vmem:[%s436] sm:$0x1]
  %s438 = scalar_lea.vmem %s0, 108
  %v439 = vld [vmem:[%s438] sm:$0x2]
  %vm440 = vcmask 1041409
  %v441 = vsel %vm440, %v439, %v437
  %s442 = scalar_lea.vmem %s0, 171
  %v443 = vld [vmem:[%s442] sm:$0x4]
  %vm444 = vcmask 1042434
  %v445 = vsel %vm444, %v443, %v441
  %s446 = scalar_lea.vmem %s0, 234
  %v447 = vld [vmem:[%s446] sm:$0x8]
  %vm448 = vcmask 1043459
  %v449 = vsel %vm448, %v447, %v445
  %s450 = scalar_lea.vmem %s0, 297
  %v451 = vld [vmem:[%s450] sm:$0x10]
  %vm452 = vcmask 1044484
  %v453 = vsel %vm452, %v451, %v449
  %s454 = scalar_lea.vmem %s0, 360
  %v455 = vld [vmem:[%s454] sm:$0x20]
  %vm456 = vcmask 1045509
  %v457 = vsel %vm456, %v455, %v453
  %s458 = scalar_lea.vmem %s0, 423
  %v459 = vld [vmem:[%s458] sm:$0x40]
  %vm460 = vcmask 1046534
  %v461 = vsel %vm460, %v459, %v457
  %s462 = scalar_lea.vmem %s0, 486
  %v463 = vld [vmem:[%s462] sm:$0x80]
  %vm464 = vcmask 1047559
  %v465 = vsel %vm464, %v463, %v461
  %466 = vrot.lane.b32.xlu0 %v465, 104
  %v467 = vpop.permute.xlu0 %466
  %vm468 = vcmask 917312
  %s469 = scalar_lea.vmem %s1, 16
  %470 = vst.msk [vmem:[%s469] sm:$0xff] %vm468, %v467
  %s471 = scalar_lea.vmem %s0, 61
  %v472 = vld [vmem:[%s471] sm:$0x1]
  %s473 = scalar_lea.vmem %s0, 124
  %v474 = vld [vmem:[%s473] sm:$0x2]
  %vm475 = vcmask 1041409
  %v476 = vsel %vm475, %v474, %v472
  %s477 = scalar_lea.vmem %s0, 187
  %v478 = vld [vmem:[%s477] sm:$0x4]
  %vm479 = vcmask 1042434
  %v480 = vsel %vm479, %v478, %v476
  %s481 = scalar_lea.vmem %s0, 250
  %v482 = vld [vmem:[%s481] sm:$0x8]
  %vm483 = vcmask 1043459
  %v484 = vsel %vm483, %v482, %v480
  %s485 = scalar_lea.vmem %s0, 313
  %v486 = vld [vmem:[%s485] sm:$0x10]
  %vm487 = vcmask 1044484
  %v488 = vsel %vm487, %v486, %v484
  %s489 = scalar_lea.vmem %s0, 376
  %v490 = vld [vmem:[%s489] sm:$0x20]
  %vm491 = vcmask 1045509
  %v492 = vsel %vm491, %v490, %v488
  %s493 = scalar_lea.vmem %s0, 439
  %v494 = vld [vmem:[%s493] sm:$0x40]
  %vm495 = vcmask 1046534
  %v496 = vsel %vm495, %v494, %v492
  %s497 = scalar_lea.vmem %s0, 502
  %v498 = vld [vmem:[%s497] sm:$0x80]
  %vm499 = vcmask 1047559
  %v500 = vsel %vm499, %v498, %v496
  %501 = vrot.lane.b32.xlu0 %v500, 104
  %v502 = vpop.permute.xlu0 %501
  %vm503 = vcmask 917312
  %s504 = scalar_lea.vmem %s1, 24
  %505 = vst.msk [vmem:[%s504] sm:$0xff] %vm503, %v502
  %s506 = scalar_lea.vmem %s0, 12
  %v507 = vld [vmem:[%s506] sm:$0x1]
  %s508 = scalar_lea.vmem %s0, 75
  %v509 = vld [vmem:[%s508] sm:$0x2]
  %vm510 = vcmask 1041409
  %v511 = vsel %vm510, %v509, %v507
  %s512 = scalar_lea.vmem %s0, 138
  %v513 = vld [vmem:[%s512] sm:$0x4]
  %vm514 = vcmask 1042434
  %v515 = vsel %vm514, %v513, %v511
  %s516 = scalar_lea.vmem %s0, 201
  %v517 = vld [vmem:[%s516] sm:$0x8]
  %vm518 = vcmask 1043459
  %v519 = vsel %vm518, %v517, %v515
  %s520 = scalar_lea.vmem %s0, 264
  %v521 = vld [vmem:[%s520] sm:$0x10]
  %vm522 = vcmask 1044484
  %v523 = vsel %vm522, %v521, %v519
  %s524 = scalar_lea.vmem %s0, 327
  %v525 = vld [vmem:[%s524] sm:$0x20]
  %vm526 = vcmask 1045509
  %v527 = vsel %vm526, %v525, %v523
  %s528 = scalar_lea.vmem %s0, 390
  %v529 = vld [vmem:[%s528] sm:$0x40]
  %vm530 = vcmask 1046534
  %v531 = vsel %vm530, %v529, %v527
  %s532 = scalar_lea.vmem %s0, 453
  %v533 = vld [vmem:[%s532] sm:$0x80]
  %vm534 = vcmask 1047559
  %v535 = vsel %vm534, %v533, %v531
  %536 = vrot.lane.b32.xlu0 %v535, 96
  %v537 = vpop.permute.xlu0 %536
  %vm538 = vcmask 851712
  %539 = vst.msk [vmem:[%s1] sm:$0xff] %vm538, %v537
  %s540 = scalar_lea.vmem %s0, 28
  %v541 = vld [vmem:[%s540] sm:$0x1]
  %s542 = scalar_lea.vmem %s0, 91
  %v543 = vld [vmem:[%s542] sm:$0x2]
  %vm544 = vcmask 1041409
  %v545 = vsel %vm544, %v543, %v541
  %s546 = scalar_lea.vmem %s0, 154
  %v547 = vld [vmem:[%s546] sm:$0x4]
  %vm548 = vcmask 1042434
  %v549 = vsel %vm548, %v547, %v545
  %s550 = scalar_lea.vmem %s0, 217
  %v551 = vld [vmem:[%s550] sm:$0x8]
  %vm552 = vcmask 1043459
  %v553 = vsel %vm552, %v551, %v549
  %s554 = scalar_lea.vmem %s0, 280
  %v555 = vld [vmem:[%s554] sm:$0x10]
  %vm556 = vcmask 1044484
  %v557 = vsel %vm556, %v555, %v553
  %s558 = scalar_lea.vmem %s0, 343
  %v559 = vld [vmem:[%s558] sm:$0x20]
  %vm560 = vcmask 1045509
  %v561 = vsel %vm560, %v559, %v557
  %s562 = scalar_lea.vmem %s0, 406
  %v563 = vld [vmem:[%s562] sm:$0x40]
  %vm564 = vcmask 1046534
  %v565 = vsel %vm564, %v563, %v561
  %s566 = scalar_lea.vmem %s0, 469
  %v567 = vld [vmem:[%s566] sm:$0x80]
  %vm568 = vcmask 1047559
  %v569 = vsel %vm568, %v567, %v565
  %570 = vrot.lane.b32.xlu0 %v569, 96
  %v571 = vpop.permute.xlu0 %570
  %vm572 = vcmask 851712
  %s573 = scalar_lea.vmem %s1, 8
  %574 = vst.msk [vmem:[%s573] sm:$0xff] %vm572, %v571
  %s575 = scalar_lea.vmem %s0, 44
  %v576 = vld [vmem:[%s575] sm:$0x1]
  %s577 = scalar_lea.vmem %s0, 107
  %v578 = vld [vmem:[%s577] sm:$0x2]
  %vm579 = vcmask 1041409
  %v580 = vsel %vm579, %v578, %v576
  %s581 = scalar_lea.vmem %s0, 170
  %v582 = vld [vmem:[%s581] sm:$0x4]
  %vm583 = vcmask 1042434
  %v584 = vsel %vm583, %v582, %v580
  %s585 = scalar_lea.vmem %s0, 233
  %v586 = vld [vmem:[%s585] sm:$0x8]
  %vm587 = vcmask 1043459
  %v588 = vsel %vm587, %v586, %v584
  %s589 = scalar_lea.vmem %s0, 296
  %v590 = vld [vmem:[%s589] sm:$0x10]
  %vm591 = vcmask 1044484
  %v592 = vsel %vm591, %v590, %v588
  %s593 = scalar_lea.vmem %s0, 359
  %v594 = vld [vmem:[%s593] sm:$0x20]
  %vm595 = vcmask 1045509
  %v596 = vsel %vm595, %v594, %v592
  %s597 = scalar_lea.vmem %s0, 422
  %v598 = vld [vmem:[%s597] sm:$0x40]
  %vm599 = vcmask 1046534
  %v600 = vsel %vm599, %v598, %v596
  %s601 = scalar_lea.vmem %s0, 485
  %v602 = vld [vmem:[%s601] sm:$0x80]
  %vm603 = vcmask 1047559
  %v604 = vsel %vm603, %v602, %v600
  %605 = vrot.lane.b32.xlu0 %v604, 96
  %v606 = vpop.permute.xlu0 %605
  %vm607 = vcmask 851712
  %s608 = scalar_lea.vmem %s1, 16
  %609 = vst.msk [vmem:[%s608] sm:$0xff] %vm607, %v606
  %s610 = scalar_lea.vmem %s0, 60
  %v611 = vld [vmem:[%s610] sm:$0x1]
  %s612 = scalar_lea.vmem %s0, 123
  %v613 = vld [vmem:[%s612] sm:$0x2]
  %vm614 = vcmask 1041409
  %v615 = vsel %vm614, %v613, %v611
  %s616 = scalar_lea.vmem %s0, 186
  %v617 = vld [vmem:[%s616] sm:$0x4]
  %vm618 = vcmask 1042434
  %v619 = vsel %vm618, %v617, %v615
  %s620 = scalar_lea.vmem %s0, 249
  %v621 = vld [vmem:[%s620] sm:$0x8]
  %vm622 = vcmask 1043459
  %v623 = vsel %vm622, %v621, %v619
  %s624 = scalar_lea.vmem %s0, 312
  %v625 = vld [vmem:[%s624] sm:$0x10]
  %vm626 = vcmask 1044484
  %v627 = vsel %vm626, %v625, %v623
  %s628 = scalar_lea.vmem %s0, 375
  %v629 = vld [vmem:[%s628] sm:$0x20]
  %vm630 = vcmask 1045509
  %v631 = vsel %vm630, %v629, %v627
  %s632 = scalar_lea.vmem %s0, 438
  %v633 = vld [vmem:[%s632] sm:$0x40]
  %vm634 = vcmask 1046534
  %v635 = vsel %vm634, %v633, %v631
  %s636 = scalar_lea.vmem %s0, 501
  %v637 = vld [vmem:[%s636] sm:$0x80]
  %vm638 = vcmask 1047559
  %v639 = vsel %vm638, %v637, %v635
  %640 = vrot.lane.b32.xlu0 %v639, 96
  %v641 = vpop.permute.xlu0 %640
  %vm642 = vcmask 851712
  %s643 = scalar_lea.vmem %s1, 24
  %644 = vst.msk [vmem:[%s643] sm:$0xff] %vm642, %v641
  %s645 = scalar_lea.vmem %s0, 11
  %v646 = vld [vmem:[%s645] sm:$0x1]
  %s647 = scalar_lea.vmem %s0, 74
  %v648 = vld [vmem:[%s647] sm:$0x2]
  %vm649 = vcmask 1041409
  %v650 = vsel %vm649, %v648, %v646
  %s651 = scalar_lea.vmem %s0, 137
  %v652 = vld [vmem:[%s651] sm:$0x4]
  %vm653 = vcmask 1042434
  %v654 = vsel %vm653, %v652, %v650
  %s655 = scalar_lea.vmem %s0, 200
  %v656 = vld [vmem:[%s655] sm:$0x8]
  %vm657 = vcmask 1043459
  %v658 = vsel %vm657, %v656, %v654
  %s659 = scalar_lea.vmem %s0, 263
  %v660 = vld [vmem:[%s659] sm:$0x10]
  %vm661 = vcmask 1044484
  %v662 = vsel %vm661, %v660, %v658
  %s663 = scalar_lea.vmem %s0, 326
  %v664 = vld [vmem:[%s663] sm:$0x20]
  %vm665 = vcmask 1045509
  %v666 = vsel %vm665, %v664, %v662
  %s667 = scalar_lea.vmem %s0, 389
  %v668 = vld [vmem:[%s667] sm:$0x40]
  %vm669 = vcmask 1046534
  %v670 = vsel %vm669, %v668, %v666
  %s671 = scalar_lea.vmem %s0, 452
  %v672 = vld [vmem:[%s671] sm:$0x80]
  %vm673 = vcmask 1047559
  %v674 = vsel %vm673, %v672, %v670
  %675 = vrot.lane.b32.xlu0 %v674, 88
  %v676 = vpop.permute.xlu0 %675
  %vm677 = vcmask 786112
  %678 = vst.msk [vmem:[%s1] sm:$0xff] %vm677, %v676
  %s679 = scalar_lea.vmem %s0, 27
  %v680 = vld [vmem:[%s679] sm:$0x1]
  %s681 = scalar_lea.vmem %s0, 90
  %v682 = vld [vmem:[%s681] sm:$0x2]
  %vm683 = vcmask 1041409
  %v684 = vsel %vm683, %v682, %v680
  %s685 = scalar_lea.vmem %s0, 153
  %v686 = vld [vmem:[%s685] sm:$0x4]
  %vm687 = vcmask 1042434
  %v688 = vsel %vm687, %v686, %v684
  %s689 = scalar_lea.vmem %s0, 216
  %v690 = vld [vmem:[%s689] sm:$0x8]
  %vm691 = vcmask 1043459
  %v692 = vsel %vm691, %v690, %v688
  %s693 = scalar_lea.vmem %s0, 279
  %v694 = vld [vmem:[%s693] sm:$0x10]
  %vm695 = vcmask 1044484
  %v696 = vsel %vm695, %v694, %v692
  %s697 = scalar_lea.vmem %s0, 342
  %v698 = vld [vmem:[%s697] sm:$0x20]
  %vm699 = vcmask 1045509
  %v700 = vsel %vm699, %v698, %v696
  %s701 = scalar_lea.vmem %s0, 405
  %v702 = vld [vmem:[%s701] sm:$0x40]
  %vm703 = vcmask 1046534
  %v704 = vsel %vm703, %v702, %v700
  %s705 = scalar_lea.vmem %s0, 468
  %v706 = vld [vmem:[%s705] sm:$0x80]
  %vm707 = vcmask 1047559
  %v708 = vsel %vm707, %v706, %v704
  %709 = vrot.lane.b32.xlu0 %v708, 88
  %v710 = vpop.permute.xlu0 %709
  %vm711 = vcmask 786112
  %s712 = scalar_lea.vmem %s1, 8
  %713 = vst.msk [vmem:[%s712] sm:$0xff] %vm711, %v710
  %s714 = scalar_lea.vmem %s0, 43
  %v715 = vld [vmem:[%s714] sm:$0x1]
  %s716 = scalar_lea.vmem %s0, 106
  %v717 = vld [vmem:[%s716] sm:$0x2]
  %vm718 = vcmask 1041409
  %v719 = vsel %vm718, %v717, %v715
  %s720 = scalar_lea.vmem %s0, 169
  %v721 = vld [vmem:[%s720] sm:$0x4]
  %vm722 = vcmask 1042434
  %v723 = vsel %vm722, %v721, %v719
  %s724 = scalar_lea.vmem %s0, 232
  %v725 = vld [vmem:[%s724] sm:$0x8]
  %vm726 = vcmask 1043459
  %v727 = vsel %vm726, %v725, %v723
  %s728 = scalar_lea.vmem %s0, 295
  %v729 = vld [vmem:[%s728] sm:$0x10]
  %vm730 = vcmask 1044484
  %v731 = vsel %vm730, %v729, %v727
  %s732 = scalar_lea.vmem %s0, 358
  %v733 = vld [vmem:[%s732] sm:$0x20]
  %vm734 = vcmask 1045509
  %v735 = vsel %vm734, %v733, %v731
  %s736 = scalar_lea.vmem %s0, 421
  %v737 = vld [vmem:[%s736] sm:$0x40]
  %vm738 = vcmask 1046534
  %v739 = vsel %vm738, %v737, %v735
  %s740 = scalar_lea.vmem %s0, 484
  %v741 = vld [vmem:[%s740] sm:$0x80]
  %vm742 = vcmask 1047559
  %v743 = vsel %vm742, %v741, %v739
  %744 = vrot.lane.b32.xlu0 %v743, 88
  %v745 = vpop.permute.xlu0 %744
  %vm746 = vcmask 786112
  %s747 = scalar_lea.vmem %s1, 16
  %748 = vst.msk [vmem:[%s747] sm:$0xff] %vm746, %v745
  %s749 = scalar_lea.vmem %s0, 59
  %v750 = vld [vmem:[%s749] sm:$0x1]
  %s751 = scalar_lea.vmem %s0, 122
  %v752 = vld [vmem:[%s751] sm:$0x2]
  %vm753 = vcmask 1041409
  %v754 = vsel %vm753, %v752, %v750
  %s755 = scalar_lea.vmem %s0, 185
  %v756 = vld [vmem:[%s755] sm:$0x4]
  %vm757 = vcmask 1042434
  %v758 = vsel %vm757, %v756, %v754
  %s759 = scalar_lea.vmem %s0, 248
  %v760 = vld [vmem:[%s759] sm:$0x8]
  %vm761 = vcmask 1043459
  %v762 = vsel %vm761, %v760, %v758
  %s763 = scalar_lea.vmem %s0, 311
  %v764 = vld [vmem:[%s763] sm:$0x10]
  %vm765 = vcmask 1044484
  %v766 = vsel %vm765, %v764, %v762
  %s767 = scalar_lea.vmem %s0, 374
  %v768 = vld [vmem:[%s767] sm:$0x20]
  %vm769 = vcmask 1045509
  %v770 = vsel %vm769, %v768, %v766
  %s771 = scalar_lea.vmem %s0, 437
  %v772 = vld [vmem:[%s771] sm:$0x40]
  %vm773 = vcmask 1046534
  %v774 = vsel %vm773, %v772, %v770
  %s775 = scalar_lea.vmem %s0, 500
  %v776 = vld [vmem:[%s775] sm:$0x80]
  %vm777 = vcmask 1047559
  %v778 = vsel %vm777, %v776, %v774
  %779 = vrot.lane.b32.xlu0 %v778, 88
  %v780 = vpop.permute.xlu0 %779
  %vm781 = vcmask 786112
  %s782 = scalar_lea.vmem %s1, 24
  %783 = vst.msk [vmem:[%s782] sm:$0xff] %vm781, %v780
  %s784 = scalar_lea.vmem %s0, 10
  %v785 = vld [vmem:[%s784] sm:$0x1]
  %s786 = scalar_lea.vmem %s0, 73
  %v787 = vld [vmem:[%s786] sm:$0x2]
  %vm788 = vcmask 1041409
  %v789 = vsel %vm788, %v787, %v785
  %s790 = scalar_lea.vmem %s0, 136
  %v791 = vld [vmem:[%s790] sm:$0x4]
  %vm792 = vcmask 1042434
  %v793 = vsel %vm792, %v791, %v789
  %s794 = scalar_lea.vmem %s0, 199
  %v795 = vld [vmem:[%s794] sm:$0x8]
  %vm796 = vcmask 1043459
  %v797 = vsel %vm796, %v795, %v793
  %s798 = scalar_lea.vmem %s0, 262
  %v799 = vld [vmem:[%s798] sm:$0x10]
  %vm800 = vcmask 1044484
  %v801 = vsel %vm800, %v799, %v797
  %s802 = scalar_lea.vmem %s0, 325
  %v803 = vld [vmem:[%s802] sm:$0x20]
  %vm804 = vcmask 1045509
  %v805 = vsel %vm804, %v803, %v801
  %s806 = scalar_lea.vmem %s0, 388
  %v807 = vld [vmem:[%s806] sm:$0x40]
  %vm808 = vcmask 1046534
  %v809 = vsel %vm808, %v807, %v805
  %s810 = scalar_lea.vmem %s0, 451
  %v811 = vld [vmem:[%s810] sm:$0x80]
  %vm812 = vcmask 1047559
  %v813 = vsel %vm812, %v811, %v809
  %814 = vrot.lane.b32.xlu0 %v813, 80
  %v815 = vpop.permute.xlu0 %814
  %vm816 = vcmask 720512
  %817 = vst.msk [vmem:[%s1] sm:$0xff] %vm816, %v815
  %s818 = scalar_lea.vmem %s0, 26
  %v819 = vld [vmem:[%s818] sm:$0x1]
  %s820 = scalar_lea.vmem %s0, 89
  %v821 = vld [vmem:[%s820] sm:$0x2]
  %vm822 = vcmask 1041409
  %v823 = vsel %vm822, %v821, %v819
  %s824 = scalar_lea.vmem %s0, 152
  %v825 = vld [vmem:[%s824] sm:$0x4]
  %vm826 = vcmask 1042434
  %v827 = vsel %vm826, %v825, %v823
  %s828 = scalar_lea.vmem %s0, 215
  %v829 = vld [vmem:[%s828] sm:$0x8]
  %vm830 = vcmask 1043459
  %v831 = vsel %vm830, %v829, %v827
  %s832 = scalar_lea.vmem %s0, 278
  %v833 = vld [vmem:[%s832] sm:$0x10]
  %vm834 = vcmask 1044484
  %v835 = vsel %vm834, %v833, %v831
  %s836 = scalar_lea.vmem %s0, 341
  %v837 = vld [vmem:[%s836] sm:$0x20]
  %vm838 = vcmask 1045509
  %v839 = vsel %vm838, %v837, %v835
  %s840 = scalar_lea.vmem %s0, 404
  %v841 = vld [vmem:[%s840] sm:$0x40]
  %vm842 = vcmask 1046534
  %v843 = vsel %vm842, %v841, %v839
  %s844 = scalar_lea.vmem %s0, 467
  %v845 = vld [vmem:[%s844] sm:$0x80]
  %vm846 = vcmask 1047559
  %v847 = vsel %vm846, %v845, %v843
  %848 = vrot.lane.b32.xlu0 %v847, 80
  %v849 = vpop.permute.xlu0 %848
  %vm850 = vcmask 720512
  %s851 = scalar_lea.vmem %s1, 8
  %852 = vst.msk [vmem:[%s851] sm:$0xff] %vm850, %v849
  %s853 = scalar_lea.vmem %s0, 42
  %v854 = vld [vmem:[%s853] sm:$0x1]
  %s855 = scalar_lea.vmem %s0, 105
  %v856 = vld [vmem:[%s855] sm:$0x2]
  %vm857 = vcmask 1041409
  %v858 = vsel %vm857, %v856, %v854
  %s859 = scalar_lea.vmem %s0, 168
  %v860 = vld [vmem:[%s859] sm:$0x4]
  %vm861 = vcmask 1042434
  %v862 = vsel %vm861, %v860, %v858
  %s863 = scalar_lea.vmem %s0, 231
  %v864 = vld [vmem:[%s863] sm:$0x8]
  %vm865 = vcmask 1043459
  %v866 = vsel %vm865, %v864, %v862
  %s867 = scalar_lea.vmem %s0, 294
  %v868 = vld [vmem:[%s867] sm:$0x10]
  %vm869 = vcmask 1044484
  %v870 = vsel %vm869, %v868, %v866
  %s871 = scalar_lea.vmem %s0, 357
  %v872 = vld [vmem:[%s871] sm:$0x20]
  %vm873 = vcmask 1045509
  %v874 = vsel %vm873, %v872, %v870
  %s875 = scalar_lea.vmem %s0, 420
  %v876 = vld [vmem:[%s875] sm:$0x40]
  %vm877 = vcmask 1046534
  %v878 = vsel %vm877, %v876, %v874
  %s879 = scalar_lea.vmem %s0, 483
  %v880 = vld [vmem:[%s879] sm:$0x80]
  %vm881 = vcmask 1047559
  %v882 = vsel %vm881, %v880, %v878
  %883 = vrot.lane.b32.xlu0 %v882, 80
  %v884 = vpop.permute.xlu0 %883
  %vm885 = vcmask 720512
  %s886 = scalar_lea.vmem %s1, 16
  %887 = vst.msk [vmem:[%s886] sm:$0xff] %vm885, %v884
  %s888 = scalar_lea.vmem %s0, 58
  %v889 = vld [vmem:[%s888] sm:$0x1]
  %s890 = scalar_lea.vmem %s0, 121
  %v891 = vld [vmem:[%s890] sm:$0x2]
  %vm892 = vcmask 1041409
  %v893 = vsel %vm892, %v891, %v889
  %s894 = scalar_lea.vmem %s0, 184
  %v895 = vld [vmem:[%s894] sm:$0x4]
  %vm896 = vcmask 1042434
  %v897 = vsel %vm896, %v895, %v893
  %s898 = scalar_lea.vmem %s0, 247
  %v899 = vld [vmem:[%s898] sm:$0x8]
  %vm900 = vcmask 1043459
  %v901 = vsel %vm900, %v899, %v897
  %s902 = scalar_lea.vmem %s0, 310
  %v903 = vld [vmem:[%s902] sm:$0x10]
  %vm904 = vcmask 1044484
  %v905 = vsel %vm904, %v903, %v901
  %s906 = scalar_lea.vmem %s0, 373
  %v907 = vld [vmem:[%s906] sm:$0x20]
  %vm908 = vcmask 1045509
  %v909 = vsel %vm908, %v907, %v905
  %s910 = scalar_lea.vmem %s0, 436
  %v911 = vld [vmem:[%s910] sm:$0x40]
  %vm912 = vcmask 1046534
  %v913 = vsel %vm912, %v911, %v909
  %s914 = scalar_lea.vmem %s0, 499
  %v915 = vld [vmem:[%s914] sm:$0x80]
  %vm916 = vcmask 1047559
  %v917 = vsel %vm916, %v915, %v913
  %918 = vrot.lane.b32.xlu0 %v917, 80
  %v919 = vpop.permute.xlu0 %918
  %vm920 = vcmask 720512
  %s921 = scalar_lea.vmem %s1, 24
  %922 = vst.msk [vmem:[%s921] sm:$0xff] %vm920, %v919
  %s923 = scalar_lea.vmem %s0, 9
  %v924 = vld [vmem:[%s923] sm:$0x1]
  %s925 = scalar_lea.vmem %s0, 72
  %v926 = vld [vmem:[%s925] sm:$0x2]
  %vm927 = vcmask 1041409
  %v928 = vsel %vm927, %v926, %v924
  %s929 = scalar_lea.vmem %s0, 135
  %v930 = vld [vmem:[%s929] sm:$0x4]
  %vm931 = vcmask 1042434
  %v932 = vsel %vm931, %v930, %v928
  %s933 = scalar_lea.vmem %s0, 198
  %v934 = vld [vmem:[%s933] sm:$0x8]
  %vm935 = vcmask 1043459
  %v936 = vsel %vm935, %v934, %v932
  %s937 = scalar_lea.vmem %s0, 261
  %v938 = vld [vmem:[%s937] sm:$0x10]
  %vm939 = vcmask 1044484
  %v940 = vsel %vm939, %v938, %v936
  %s941 = scalar_lea.vmem %s0, 324
  %v942 = vld [vmem:[%s941] sm:$0x20]
  %vm943 = vcmask 1045509
  %v944 = vsel %vm943, %v942, %v940
  %s945 = scalar_lea.vmem %s0, 387
  %v946 = vld [vmem:[%s945] sm:$0x40]
  %vm947 = vcmask 1046534
  %v948 = vsel %vm947, %v946, %v944
  %s949 = scalar_lea.vmem %s0, 450
  %v950 = vld [vmem:[%s949] sm:$0x80]
  %vm951 = vcmask 1047559
  %v952 = vsel %vm951, %v950, %v948
  %953 = vrot.lane.b32.xlu0 %v952, 72
  %v954 = vpop.permute.xlu0 %953
  %vm955 = vcmask 654912
  %956 = vst.msk [vmem:[%s1] sm:$0xff] %vm955, %v954
  %s957 = scalar_lea.vmem %s0, 25
  %v958 = vld [vmem:[%s957] sm:$0x1]
  %s959 = scalar_lea.vmem %s0, 88
  %v960 = vld [vmem:[%s959] sm:$0x2]
  %vm961 = vcmask 1041409
  %v962 = vsel %vm961, %v960, %v958
  %s963 = scalar_lea.vmem %s0, 151
  %v964 = vld [vmem:[%s963] sm:$0x4]
  %vm965 = vcmask 1042434
  %v966 = vsel %vm965, %v964, %v962
  %s967 = scalar_lea.vmem %s0, 214
  %v968 = vld [vmem:[%s967] sm:$0x8]
  %vm969 = vcmask 1043459
  %v970 = vsel %vm969, %v968, %v966
  %s971 = scalar_lea.vmem %s0, 277
  %v972 = vld [vmem:[%s971] sm:$0x10]
  %vm973 = vcmask 1044484
  %v974 = vsel %vm973, %v972, %v970
  %s975 = scalar_lea.vmem %s0, 340
  %v976 = vld [vmem:[%s975] sm:$0x20]
  %vm977 = vcmask 1045509
  %v978 = vsel %vm977, %v976, %v974
  %s979 = scalar_lea.vmem %s0, 403
  %v980 = vld [vmem:[%s979] sm:$0x40]
  %vm981 = vcmask 1046534
  %v982 = vsel %vm981, %v980, %v978
  %s983 = scalar_lea.vmem %s0, 466
  %v984 = vld [vmem:[%s983] sm:$0x80]
  %vm985 = vcmask 1047559
  %v986 = vsel %vm985, %v984, %v982
  %987 = vrot.lane.b32.xlu0 %v986, 72
  %v988 = vpop.permute.xlu0 %987
  %vm989 = vcmask 654912
  %s990 = scalar_lea.vmem %s1, 8
  %991 = vst.msk [vmem:[%s990] sm:$0xff] %vm989, %v988
  %s992 = scalar_lea.vmem %s0, 41
  %v993 = vld [vmem:[%s992] sm:$0x1]
  %s994 = scalar_lea.vmem %s0, 104
  %v995 = vld [vmem:[%s994] sm:$0x2]
  %vm996 = vcmask 1041409
  %v997 = vsel %vm996, %v995, %v993
  %s998 = scalar_lea.vmem %s0, 167
  %v999 = vld [vmem:[%s998] sm:$0x4]
  %vm1000 = vcmask 1042434
  %v1001 = vsel %vm1000, %v999, %v997
  %s1002 = scalar_lea.vmem %s0, 230
  %v1003 = vld [vmem:[%s1002] sm:$0x8]
  %vm1004 = vcmask 1043459
  %v1005 = vsel %vm1004, %v1003, %v1001
  %s1006 = scalar_lea.vmem %s0, 293
  %v1007 = vld [vmem:[%s1006] sm:$0x10]
  %vm1008 = vcmask 1044484
  %v1009 = vsel %vm1008, %v1007, %v1005
  %s1010 = scalar_lea.vmem %s0, 356
  %v1011 = vld [vmem:[%s1010] sm:$0x20]
  %vm1012 = vcmask 1045509
  %v1013 = vsel %vm1012, %v1011, %v1009
  %s1014 = scalar_lea.vmem %s0, 419
  %v1015 = vld [vmem:[%s1014] sm:$0x40]
  %vm1016 = vcmask 1046534
  %v1017 = vsel %vm1016, %v1015, %v1013
  %s1018 = scalar_lea.vmem %s0, 482
  %v1019 = vld [vmem:[%s1018] sm:$0x80]
  %vm1020 = vcmask 1047559
  %v1021 = vsel %vm1020, %v1019, %v1017
  %1022 = vrot.lane.b32.xlu0 %v1021, 72
  %v1023 = vpop.permute.xlu0 %1022
  %vm1024 = vcmask 654912
  %s1025 = scalar_lea.vmem %s1, 16
  %1026 = vst.msk [vmem:[%s1025] sm:$0xff] %vm1024, %v1023
  %s1027 = scalar_lea.vmem %s0, 57
  %v1028 = vld [vmem:[%s1027] sm:$0x1]
  %s1029 = scalar_lea.vmem %s0, 120
  %v1030 = vld [vmem:[%s1029] sm:$0x2]
  %vm1031 = vcmask 1041409
  %v1032 = vsel %vm1031, %v1030, %v1028
  %s1033 = scalar_lea.vmem %s0, 183
  %v1034 = vld [vmem:[%s1033] sm:$0x4]
  %vm1035 = vcmask 1042434
  %v1036 = vsel %vm1035, %v1034, %v1032
  %s1037 = scalar_lea.vmem %s0, 246
  %v1038 = vld [vmem:[%s1037] sm:$0x8]
  %vm1039 = vcmask 1043459
  %v1040 = vsel %vm1039, %v1038, %v1036
  %s1041 = scalar_lea.vmem %s0, 309
  %v1042 = vld [vmem:[%s1041] sm:$0x10]
  %vm1043 = vcmask 1044484
  %v1044 = vsel %vm1043, %v1042, %v1040
  %s1045 = scalar_lea.vmem %s0, 372
  %v1046 = vld [vmem:[%s1045] sm:$0x20]
  %vm1047 = vcmask 1045509
  %v1048 = vsel %vm1047, %v1046, %v1044
  %s1049 = scalar_lea.vmem %s0, 435
  %v1050 = vld [vmem:[%s1049] sm:$0x40]
  %vm1051 = vcmask 1046534
  %v1052 = vsel %vm1051, %v1050, %v1048
  %s1053 = scalar_lea.vmem %s0, 498
  %v1054 = vld [vmem:[%s1053] sm:$0x80]
  %vm1055 = vcmask 1047559
  %v1056 = vsel %vm1055, %v1054, %v1052
  %1057 = vrot.lane.b32.xlu0 %v1056, 72
  %v1058 = vpop.permute.xlu0 %1057
  %vm1059 = vcmask 654912
  %s1060 = scalar_lea.vmem %s1, 24
  %1061 = vst.msk [vmem:[%s1060] sm:$0xff] %vm1059, %v1058
  %s1062 = scalar_lea.vmem %s0, 8
  %v1063 = vld [vmem:[%s1062] sm:$0x1]
  %s1064 = scalar_lea.vmem %s0, 71
  %v1065 = vld [vmem:[%s1064] sm:$0x2]
  %vm1066 = vcmask 1041409
  %v1067 = vsel %vm1066, %v1065, %v1063
  %s1068 = scalar_lea.vmem %s0, 134
  %v1069 = vld [vmem:[%s1068] sm:$0x4]
  %vm1070 = vcmask 1042434
  %v1071 = vsel %vm1070, %v1069, %v1067
  %s1072 = scalar_lea.vmem %s0, 197
  %v1073 = vld [vmem:[%s1072] sm:$0x8]
  %vm1074 = vcmask 1043459
  %v1075 = vsel %vm1074, %v1073, %v1071
  %s1076 = scalar_lea.vmem %s0, 260
  %v1077 = vld [vmem:[%s1076] sm:$0x10]
  %vm1078 = vcmask 1044484
  %v1079 = vsel %vm1078, %v1077, %v1075
  %s1080 = scalar_lea.vmem %s0, 323
  %v1081 = vld [vmem:[%s1080] sm:$0x20]
  %vm1082 = vcmask 1045509
  %v1083 = vsel %vm1082, %v1081, %v1079
  %s1084 = scalar_lea.vmem %s0, 386
  %v1085 = vld [vmem:[%s1084] sm:$0x40]
  %vm1086 = vcmask 1046534
  %v1087 = vsel %vm1086, %v1085, %v1083
  %s1088 = scalar_lea.vmem %s0, 449
  %v1089 = vld [vmem:[%s1088] sm:$0x80]
  %vm1090 = vcmask 1047559
  %v1091 = vsel %vm1090, %v1089, %v1087
  %1092 = vrot.lane.b32.xlu0 %v1091, 64
  %v1093 = vpop.permute.xlu0 %1092
  %vm1094 = vcmask 589312
  %1095 = vst.msk [vmem:[%s1] sm:$0xff] %vm1094, %v1093
  %s1096 = scalar_lea.vmem %s0, 24
  %v1097 = vld [vmem:[%s1096] sm:$0x1]
  %s1098 = scalar_lea.vmem %s0, 87
  %v1099 = vld [vmem:[%s1098] sm:$0x2]
  %vm1100 = vcmask 1041409
  %v1101 = vsel %vm1100, %v1099, %v1097
  %s1102 = scalar_lea.vmem %s0, 150
  %v1103 = vld [vmem:[%s1102] sm:$0x4]
  %vm1104 = vcmask 1042434
  %v1105 = vsel %vm1104, %v1103, %v1101
  %s1106 = scalar_lea.vmem %s0, 213
  %v1107 = vld [vmem:[%s1106] sm:$0x8]
  %vm1108 = vcmask 1043459
  %v1109 = vsel %vm1108, %v1107, %v1105
  %s1110 = scalar_lea.vmem %s0, 276
  %v1111 = vld [vmem:[%s1110] sm:$0x10]
  %vm1112 = vcmask 1044484
  %v1113 = vsel %vm1112, %v1111, %v1109
  %s1114 = scalar_lea.vmem %s0, 339
  %v1115 = vld [vmem:[%s1114] sm:$0x20]
  %vm1116 = vcmask 1045509
  %v1117 = vsel %vm1116, %v1115, %v1113
  %s1118 = scalar_lea.vmem %s0, 402
  %v1119 = vld [vmem:[%s1118] sm:$0x40]
  %vm1120 = vcmask 1046534
  %v1121 = vsel %vm1120, %v1119, %v1117
  %s1122 = scalar_lea.vmem %s0, 465
  %v1123 = vld [vmem:[%s1122] sm:$0x80]
  %vm1124 = vcmask 1047559
  %v1125 = vsel %vm1124, %v1123, %v1121
  %1126 = vrot.lane.b32.xlu0 %v1125, 64
  %v1127 = vpop.permute.xlu0 %1126
  %vm1128 = vcmask 589312
  %s1129 = scalar_lea.vmem %s1, 8
  %1130 = vst.msk [vmem:[%s1129] sm:$0xff] %vm1128, %v1127
  %s1131 = scalar_lea.vmem %s0, 40
  %v1132 = vld [vmem:[%s1131] sm:$0x1]
  %s1133 = scalar_lea.vmem %s0, 103
  %v1134 = vld [vmem:[%s1133] sm:$0x2]
  %vm1135 = vcmask 1041409
  %v1136 = vsel %vm1135, %v1134, %v1132
  %s1137 = scalar_lea.vmem %s0, 166
  %v1138 = vld [vmem:[%s1137] sm:$0x4]
  %vm1139 = vcmask 1042434
  %v1140 = vsel %vm1139, %v1138, %v1136
  %s1141 = scalar_lea.vmem %s0, 229
  %v1142 = vld [vmem:[%s1141] sm:$0x8]
  %vm1143 = vcmask 1043459
  %v1144 = vsel %vm1143, %v1142, %v1140
  %s1145 = scalar_lea.vmem %s0, 292
  %v1146 = vld [vmem:[%s1145] sm:$0x10]
  %vm1147 = vcmask 1044484
  %v1148 = vsel %vm1147, %v1146, %v1144
  %s1149 = scalar_lea.vmem %s0, 355
  %v1150 = vld [vmem:[%s1149] sm:$0x20]
  %vm1151 = vcmask 1045509
  %v1152 = vsel %vm1151, %v1150, %v1148
  %s1153 = scalar_lea.vmem %s0, 418
  %v1154 = vld [vmem:[%s1153] sm:$0x40]
  %vm1155 = vcmask 1046534
  %v1156 = vsel %vm1155, %v1154, %v1152
  %s1157 = scalar_lea.vmem %s0, 481
  %v1158 = vld [vmem:[%s1157] sm:$0x80]
  %vm1159 = vcmask 1047559
  %v1160 = vsel %vm1159, %v1158, %v1156
  %1161 = vrot.lane.b32.xlu0 %v1160, 64
  %v1162 = vpop.permute.xlu0 %1161
  %vm1163 = vcmask 589312
  %s1164 = scalar_lea.vmem %s1, 16
  %1165 = vst.msk [vmem:[%s1164] sm:$0xff] %vm1163, %v1162
  %s1166 = scalar_lea.vmem %s0, 56
  %v1167 = vld [vmem:[%s1166] sm:$0x1]
  %s1168 = scalar_lea.vmem %s0, 119
  %v1169 = vld [vmem:[%s1168] sm:$0x2]
  %vm1170 = vcmask 1041409
  %v1171 = vsel %vm1170, %v1169, %v1167
  %s1172 = scalar_lea.vmem %s0, 182
  %v1173 = vld [vmem:[%s1172] sm:$0x4]
  %vm1174 = vcmask 1042434
  %v1175 = vsel %vm1174, %v1173, %v1171
  %s1176 = scalar_lea.vmem %s0, 245
  %v1177 = vld [vmem:[%s1176] sm:$0x8]
  %vm1178 = vcmask 1043459
  %v1179 = vsel %vm1178, %v1177, %v1175
  %s1180 = scalar_lea.vmem %s0, 308
  %v1181 = vld [vmem:[%s1180] sm:$0x10]
  %vm1182 = vcmask 1044484
  %v1183 = vsel %vm1182, %v1181, %v1179
  %s1184 = scalar_lea.vmem %s0, 371
  %v1185 = vld [vmem:[%s1184] sm:$0x20]
  %vm1186 = vcmask 1045509
  %v1187 = vsel %vm1186, %v1185, %v1183
  %s1188 = scalar_lea.vmem %s0, 434
  %v1189 = vld [vmem:[%s1188] sm:$0x40]
  %vm1190 = vcmask 1046534
  %v1191 = vsel %vm1190, %v1189, %v1187
  %s1192 = scalar_lea.vmem %s0, 497
  %v1193 = vld [vmem:[%s1192] sm:$0x80]
  %vm1194 = vcmask 1047559
  %v1195 = vsel %vm1194, %v1193, %v1191
  %1196 = vrot.lane.b32.xlu0 %v1195, 64
  %v1197 = vpop.permute.xlu0 %1196
  %vm1198 = vcmask 589312
  %s1199 = scalar_lea.vmem %s1, 24
  %1200 = vst.msk [vmem:[%s1199] sm:$0xff] %vm1198, %v1197
  %s1201 = scalar_lea.vmem %s0, 7
  %v1202 = vld [vmem:[%s1201] sm:$0x1]
  %s1203 = scalar_lea.vmem %s0, 70
  %v1204 = vld [vmem:[%s1203] sm:$0x2]
  %vm1205 = vcmask 1041409
  %v1206 = vsel %vm1205, %v1204, %v1202
  %s1207 = scalar_lea.vmem %s0, 133
  %v1208 = vld [vmem:[%s1207] sm:$0x4]
  %vm1209 = vcmask 1042434
  %v1210 = vsel %vm1209, %v1208, %v1206
  %s1211 = scalar_lea.vmem %s0, 196
  %v1212 = vld [vmem:[%s1211] sm:$0x8]
  %vm1213 = vcmask 1043459
  %v1214 = vsel %vm1213, %v1212, %v1210
  %s1215 = scalar_lea.vmem %s0, 259
  %v1216 = vld [vmem:[%s1215] sm:$0x10]
  %vm1217 = vcmask 1044484
  %v1218 = vsel %vm1217, %v1216, %v1214
  %s1219 = scalar_lea.vmem %s0, 322
  %v1220 = vld [vmem:[%s1219] sm:$0x20]
  %vm1221 = vcmask 1045509
  %v1222 = vsel %vm1221, %v1220, %v1218
  %s1223 = scalar_lea.vmem %s0, 385
  %v1224 = vld [vmem:[%s1223] sm:$0x40]
  %vm1225 = vcmask 1046534
  %v1226 = vsel %vm1225, %v1224, %v1222
  %s1227 = scalar_lea.vmem %s0, 448
  %v1228 = vld [vmem:[%s1227] sm:$0x80]
  %vm1229 = vcmask 1047559
  %v1230 = vsel %vm1229, %v1228, %v1226
  %1231 = vrot.lane.b32.xlu0 %v1230, 56
  %v1232 = vpop.permute.xlu0 %1231
  %vm1233 = vcmask 523712
  %1234 = vst.msk [vmem:[%s1] sm:$0xff] %vm1233, %v1232
  %s1235 = scalar_lea.vmem %s0, 23
  %v1236 = vld [vmem:[%s1235] sm:$0x1]
  %s1237 = scalar_lea.vmem %s0, 86
  %v1238 = vld [vmem:[%s1237] sm:$0x2]
  %vm1239 = vcmask 1041409
  %v1240 = vsel %vm1239, %v1238, %v1236
  %s1241 = scalar_lea.vmem %s0, 149
  %v1242 = vld [vmem:[%s1241] sm:$0x4]
  %vm1243 = vcmask 1042434
  %v1244 = vsel %vm1243, %v1242, %v1240
  %s1245 = scalar_lea.vmem %s0, 212
  %v1246 = vld [vmem:[%s1245] sm:$0x8]
  %vm1247 = vcmask 1043459
  %v1248 = vsel %vm1247, %v1246, %v1244
  %s1249 = scalar_lea.vmem %s0, 275
  %v1250 = vld [vmem:[%s1249] sm:$0x10]
  %vm1251 = vcmask 1044484
  %v1252 = vsel %vm1251, %v1250, %v1248
  %s1253 = scalar_lea.vmem %s0, 338
  %v1254 = vld [vmem:[%s1253] sm:$0x20]
  %vm1255 = vcmask 1045509
  %v1256 = vsel %vm1255, %v1254, %v1252
  %s1257 = scalar_lea.vmem %s0, 401
  %v1258 = vld [vmem:[%s1257] sm:$0x40]
  %vm1259 = vcmask 1046534
  %v1260 = vsel %vm1259, %v1258, %v1256
  %s1261 = scalar_lea.vmem %s0, 464
  %v1262 = vld [vmem:[%s1261] sm:$0x80]
  %vm1263 = vcmask 1047559
  %v1264 = vsel %vm1263, %v1262, %v1260
  %1265 = vrot.lane.b32.xlu0 %v1264, 56
  %v1266 = vpop.permute.xlu0 %1265
  %vm1267 = vcmask 523712
  %s1268 = scalar_lea.vmem %s1, 8
  %1269 = vst.msk [vmem:[%s1268] sm:$0xff] %vm1267, %v1266
  %s1270 = scalar_lea.vmem %s0, 39
  %v1271 = vld [vmem:[%s1270] sm:$0x1]
  %s1272 = scalar_lea.vmem %s0, 102
  %v1273 = vld [vmem:[%s1272] sm:$0x2]
  %vm1274 = vcmask 1041409
  %v1275 = vsel %vm1274, %v1273, %v1271
  %s1276 = scalar_lea.vmem %s0, 165
  %v1277 = vld [vmem:[%s1276] sm:$0x4]
  %vm1278 = vcmask 1042434
  %v1279 = vsel %vm1278, %v1277, %v1275
  %s1280 = scalar_lea.vmem %s0, 228
  %v1281 = vld [vmem:[%s1280] sm:$0x8]
  %vm1282 = vcmask 1043459
  %v1283 = vsel %vm1282, %v1281, %v1279
  %s1284 = scalar_lea.vmem %s0, 291
  %v1285 = vld [vmem:[%s1284] sm:$0x10]
  %vm1286 = vcmask 1044484
  %v1287 = vsel %vm1286, %v1285, %v1283
  %s1288 = scalar_lea.vmem %s0, 354
  %v1289 = vld [vmem:[%s1288] sm:$0x20]
  %vm1290 = vcmask 1045509
  %v1291 = vsel %vm1290, %v1289, %v1287
  %s1292 = scalar_lea.vmem %s0, 417
  %v1293 = vld [vmem:[%s1292] sm:$0x40]
  %vm1294 = vcmask 1046534
  %v1295 = vsel %vm1294, %v1293, %v1291
  %s1296 = scalar_lea.vmem %s0, 480
  %v1297 = vld [vmem:[%s1296] sm:$0x80]
  %vm1298 = vcmask 1047559
  %v1299 = vsel %vm1298, %v1297, %v1295
  %1300 = vrot.lane.b32.xlu0 %v1299, 56
  %v1301 = vpop.permute.xlu0 %1300
  %vm1302 = vcmask 523712
  %s1303 = scalar_lea.vmem %s1, 16
  %1304 = vst.msk [vmem:[%s1303] sm:$0xff] %vm1302, %v1301
  %s1305 = scalar_lea.vmem %s0, 55
  %v1306 = vld [vmem:[%s1305] sm:$0x1]
  %s1307 = scalar_lea.vmem %s0, 118
  %v1308 = vld [vmem:[%s1307] sm:$0x2]
  %vm1309 = vcmask 1041409
  %v1310 = vsel %vm1309, %v1308, %v1306
  %s1311 = scalar_lea.vmem %s0, 181
  %v1312 = vld [vmem:[%s1311] sm:$0x4]
  %vm1313 = vcmask 1042434
  %v1314 = vsel %vm1313, %v1312, %v1310
  %s1315 = scalar_lea.vmem %s0, 244
  %v1316 = vld [vmem:[%s1315] sm:$0x8]
  %vm1317 = vcmask 1043459
  %v1318 = vsel %vm1317, %v1316, %v1314
  %s1319 = scalar_lea.vmem %s0, 307
  %v1320 = vld [vmem:[%s1319] sm:$0x10]
  %vm1321 = vcmask 1044484
  %v1322 = vsel %vm1321, %v1320, %v1318
  %s1323 = scalar_lea.vmem %s0, 370
  %v1324 = vld [vmem:[%s1323] sm:$0x20]
  %vm1325 = vcmask 1045509
  %v1326 = vsel %vm1325, %v1324, %v1322
  %s1327 = scalar_lea.vmem %s0, 433
  %v1328 = vld [vmem:[%s1327] sm:$0x40]
  %vm1329 = vcmask 1046534
  %v1330 = vsel %vm1329, %v1328, %v1326
  %s1331 = scalar_lea.vmem %s0, 496
  %v1332 = vld [vmem:[%s1331] sm:$0x80]
  %vm1333 = vcmask 1047559
  %v1334 = vsel %vm1333, %v1332, %v1330
  %1335 = vrot.lane.b32.xlu0 %v1334, 56
  %v1336 = vpop.permute.xlu0 %1335
  %vm1337 = vcmask 523712
  %s1338 = scalar_lea.vmem %s1, 24
  %1339 = vst.msk [vmem:[%s1338] sm:$0xff] %vm1337, %v1336
  %s1340 = scalar_lea.vmem %s0, 6
  %v1341 = vld [vmem:[%s1340] sm:$0x1]
  %s1342 = scalar_lea.vmem %s0, 69
  %v1343 = vld [vmem:[%s1342] sm:$0x2]
  %vm1344 = vcmask 1041409
  %v1345 = vsel %vm1344, %v1343, %v1341
  %s1346 = scalar_lea.vmem %s0, 132
  %v1347 = vld [vmem:[%s1346] sm:$0x4]
  %vm1348 = vcmask 1042434
  %v1349 = vsel %vm1348, %v1347, %v1345
  %s1350 = scalar_lea.vmem %s0, 195
  %v1351 = vld [vmem:[%s1350] sm:$0x8]
  %vm1352 = vcmask 1043459
  %v1353 = vsel %vm1352, %v1351, %v1349
  %s1354 = scalar_lea.vmem %s0, 258
  %v1355 = vld [vmem:[%s1354] sm:$0x10]
  %vm1356 = vcmask 1044484
  %v1357 = vsel %vm1356, %v1355, %v1353
  %s1358 = scalar_lea.vmem %s0, 321
  %v1359 = vld [vmem:[%s1358] sm:$0x20]
  %vm1360 = vcmask 1045509
  %v1361 = vsel %vm1360, %v1359, %v1357
  %s1362 = scalar_lea.vmem %s0, 384
  %v1363 = vld [vmem:[%s1362] sm:$0x40]
  %vm1364 = vcmask 1046534
  %v1365 = vsel %vm1364, %v1363, %v1361
  %s1366 = scalar_lea.vmem %s0, 447
  %v1367 = vld [vmem:[%s1366] sm:$0x80]
  %vm1368 = vcmask 1047559
  %v1369 = vsel %vm1368, %v1367, %v1365
  %1370 = vrot.lane.b32.xlu0 %v1369, 48
  %v1371 = vpop.permute.xlu0 %1370
  %vm1372 = vcmask 458112
  %1373 = vst.msk [vmem:[%s1] sm:$0xff] %vm1372, %v1371
  %s1374 = scalar_lea.vmem %s0, 22
  %v1375 = vld [vmem:[%s1374] sm:$0x1]
  %s1376 = scalar_lea.vmem %s0, 85
  %v1377 = vld [vmem:[%s1376] sm:$0x2]
  %vm1378 = vcmask 1041409
  %v1379 = vsel %vm1378, %v1377, %v1375
  %s1380 = scalar_lea.vmem %s0, 148
  %v1381 = vld [vmem:[%s1380] sm:$0x4]
  %vm1382 = vcmask 1042434
  %v1383 = vsel %vm1382, %v1381, %v1379
  %s1384 = scalar_lea.vmem %s0, 211
  %v1385 = vld [vmem:[%s1384] sm:$0x8]
  %vm1386 = vcmask 1043459
  %v1387 = vsel %vm1386, %v1385, %v1383
  %s1388 = scalar_lea.vmem %s0, 274
  %v1389 = vld [vmem:[%s1388] sm:$0x10]
  %vm1390 = vcmask 1044484
  %v1391 = vsel %vm1390, %v1389, %v1387
  %s1392 = scalar_lea.vmem %s0, 337
  %v1393 = vld [vmem:[%s1392] sm:$0x20]
  %vm1394 = vcmask 1045509
  %v1395 = vsel %vm1394, %v1393, %v1391
  %s1396 = scalar_lea.vmem %s0, 400
  %v1397 = vld [vmem:[%s1396] sm:$0x40]
  %vm1398 = vcmask 1046534
  %v1399 = vsel %vm1398, %v1397, %v1395
  %s1400 = scalar_lea.vmem %s0, 463
  %v1401 = vld [vmem:[%s1400] sm:$0x80]
  %vm1402 = vcmask 1047559
  %v1403 = vsel %vm1402, %v1401, %v1399
  %1404 = vrot.lane.b32.xlu0 %v1403, 48
  %v1405 = vpop.permute.xlu0 %1404
  %vm1406 = vcmask 458112
  %s1407 = scalar_lea.vmem %s1, 8
  %1408 = vst.msk [vmem:[%s1407] sm:$0xff] %vm1406, %v1405
  %s1409 = scalar_lea.vmem %s0, 38
  %v1410 = vld [vmem:[%s1409] sm:$0x1]
  %s1411 = scalar_lea.vmem %s0, 101
  %v1412 = vld [vmem:[%s1411] sm:$0x2]
  %vm1413 = vcmask 1041409
  %v1414 = vsel %vm1413, %v1412, %v1410
  %s1415 = scalar_lea.vmem %s0, 164
  %v1416 = vld [vmem:[%s1415] sm:$0x4]
  %vm1417 = vcmask 1042434
  %v1418 = vsel %vm1417, %v1416, %v1414
  %s1419 = scalar_lea.vmem %s0, 227
  %v1420 = vld [vmem:[%s1419] sm:$0x8]
  %vm1421 = vcmask 1043459
  %v1422 = vsel %vm1421, %v1420, %v1418
  %s1423 = scalar_lea.vmem %s0, 290
  %v1424 = vld [vmem:[%s1423] sm:$0x10]
  %vm1425 = vcmask 1044484
  %v1426 = vsel %vm1425, %v1424, %v1422
  %s1427 = scalar_lea.vmem %s0, 353
  %v1428 = vld [vmem:[%s1427] sm:$0x20]
  %vm1429 = vcmask 1045509
  %v1430 = vsel %vm1429, %v1428, %v1426
  %s1431 = scalar_lea.vmem %s0, 416
  %v1432 = vld [vmem:[%s1431] sm:$0x40]
  %vm1433 = vcmask 1046534
  %v1434 = vsel %vm1433, %v1432, %v1430
  %s1435 = scalar_lea.vmem %s0, 479
  %v1436 = vld [vmem:[%s1435] sm:$0x80]
  %vm1437 = vcmask 1047559
  %v1438 = vsel %vm1437, %v1436, %v1434
  %1439 = vrot.lane.b32.xlu0 %v1438, 48
  %v1440 = vpop.permute.xlu0 %1439
  %vm1441 = vcmask 458112
  %s1442 = scalar_lea.vmem %s1, 16
  %1443 = vst.msk [vmem:[%s1442] sm:$0xff] %vm1441, %v1440
  %s1444 = scalar_lea.vmem %s0, 54
  %v1445 = vld [vmem:[%s1444] sm:$0x1]
  %s1446 = scalar_lea.vmem %s0, 117
  %v1447 = vld [vmem:[%s1446] sm:$0x2]
  %vm1448 = vcmask 1041409
  %v1449 = vsel %vm1448, %v1447, %v1445
  %s1450 = scalar_lea.vmem %s0, 180
  %v1451 = vld [vmem:[%s1450] sm:$0x4]
  %vm1452 = vcmask 1042434
  %v1453 = vsel %vm1452, %v1451, %v1449
  %s1454 = scalar_lea.vmem %s0, 243
  %v1455 = vld [vmem:[%s1454] sm:$0x8]
  %vm1456 = vcmask 1043459
  %v1457 = vsel %vm1456, %v1455, %v1453
  %s1458 = scalar_lea.vmem %s0, 306
  %v1459 = vld [vmem:[%s1458] sm:$0x10]
  %vm1460 = vcmask 1044484
  %v1461 = vsel %vm1460, %v1459, %v1457
  %s1462 = scalar_lea.vmem %s0, 369
  %v1463 = vld [vmem:[%s1462] sm:$0x20]
  %vm1464 = vcmask 1045509
  %v1465 = vsel %vm1464, %v1463, %v1461
  %s1466 = scalar_lea.vmem %s0, 432
  %v1467 = vld [vmem:[%s1466] sm:$0x40]
  %vm1468 = vcmask 1046534
  %v1469 = vsel %vm1468, %v1467, %v1465
  %s1470 = scalar_lea.vmem %s0, 495
  %v1471 = vld [vmem:[%s1470] sm:$0x80]
  %vm1472 = vcmask 1047559
  %v1473 = vsel %vm1472, %v1471, %v1469
  %1474 = vrot.lane.b32.xlu0 %v1473, 48
  %v1475 = vpop.permute.xlu0 %1474
  %vm1476 = vcmask 458112
  %s1477 = scalar_lea.vmem %s1, 24
  %1478 = vst.msk [vmem:[%s1477] sm:$0xff] %vm1476, %v1475
  %s1479 = scalar_lea.vmem %s0, 5
  %v1480 = vld [vmem:[%s1479] sm:$0x1]
  %s1481 = scalar_lea.vmem %s0, 68
  %v1482 = vld [vmem:[%s1481] sm:$0x2]
  %vm1483 = vcmask 1041409
  %v1484 = vsel %vm1483, %v1482, %v1480
  %s1485 = scalar_lea.vmem %s0, 131
  %v1486 = vld [vmem:[%s1485] sm:$0x4]
  %vm1487 = vcmask 1042434
  %v1488 = vsel %vm1487, %v1486, %v1484
  %s1489 = scalar_lea.vmem %s0, 194
  %v1490 = vld [vmem:[%s1489] sm:$0x8]
  %vm1491 = vcmask 1043459
  %v1492 = vsel %vm1491, %v1490, %v1488
  %s1493 = scalar_lea.vmem %s0, 257
  %v1494 = vld [vmem:[%s1493] sm:$0x10]
  %vm1495 = vcmask 1044484
  %v1496 = vsel %vm1495, %v1494, %v1492
  %s1497 = scalar_lea.vmem %s0, 320
  %v1498 = vld [vmem:[%s1497] sm:$0x20]
  %vm1499 = vcmask 1045509
  %v1500 = vsel %vm1499, %v1498, %v1496
  %s1501 = scalar_lea.vmem %s0, 383
  %v1502 = vld [vmem:[%s1501] sm:$0x40]
  %vm1503 = vcmask 1046534
  %v1504 = vsel %vm1503, %v1502, %v1500
  %s1505 = scalar_lea.vmem %s0, 446
  %v1506 = vld [vmem:[%s1505] sm:$0x80]
  %vm1507 = vcmask 1047559
  %v1508 = vsel %vm1507, %v1506, %v1504
  %1509 = vrot.lane.b32.xlu0 %v1508, 40
  %v1510 = vpop.permute.xlu0 %1509
  %vm1511 = vcmask 392512
  %1512 = vst.msk [vmem:[%s1] sm:$0xff] %vm1511, %v1510
  %s1513 = scalar_lea.vmem %s0, 21
  %v1514 = vld [vmem:[%s1513] sm:$0x1]
  %s1515 = scalar_lea.vmem %s0, 84
  %v1516 = vld [vmem:[%s1515] sm:$0x2]
  %vm1517 = vcmask 1041409
  %v1518 = vsel %vm1517, %v1516, %v1514
  %s1519 = scalar_lea.vmem %s0, 147
  %v1520 = vld [vmem:[%s1519] sm:$0x4]
  %vm1521 = vcmask 1042434
  %v1522 = vsel %vm1521, %v1520, %v1518
  %s1523 = scalar_lea.vmem %s0, 210
  %v1524 = vld [vmem:[%s1523] sm:$0x8]
  %vm1525 = vcmask 1043459
  %v1526 = vsel %vm1525, %v1524, %v1522
  %s1527 = scalar_lea.vmem %s0, 273
  %v1528 = vld [vmem:[%s1527] sm:$0x10]
  %vm1529 = vcmask 1044484
  %v1530 = vsel %vm1529, %v1528, %v1526
  %s1531 = scalar_lea.vmem %s0, 336
  %v1532 = vld [vmem:[%s1531] sm:$0x20]
  %vm1533 = vcmask 1045509
  %v1534 = vsel %vm1533, %v1532, %v1530
  %s1535 = scalar_lea.vmem %s0, 399
  %v1536 = vld [vmem:[%s1535] sm:$0x40]
  %vm1537 = vcmask 1046534
  %v1538 = vsel %vm1537, %v1536, %v1534
  %s1539 = scalar_lea.vmem %s0, 462
  %v1540 = vld [vmem:[%s1539] sm:$0x80]
  %vm1541 = vcmask 1047559
  %v1542 = vsel %vm1541, %v1540, %v1538
  %1543 = vrot.lane.b32.xlu0 %v1542, 40
  %v1544 = vpop.permute.xlu0 %1543
  %vm1545 = vcmask 392512
  %s1546 = scalar_lea.vmem %s1, 8
  %1547 = vst.msk [vmem:[%s1546] sm:$0xff] %vm1545, %v1544
  %s1548 = scalar_lea.vmem %s0, 37
  %v1549 = vld [vmem:[%s1548] sm:$0x1]
  %s1550 = scalar_lea.vmem %s0, 100
  %v1551 = vld [vmem:[%s1550] sm:$0x2]
  %vm1552 = vcmask 1041409
  %v1553 = vsel %vm1552, %v1551, %v1549
  %s1554 = scalar_lea.vmem %s0, 163
  %v1555 = vld [vmem:[%s1554] sm:$0x4]
  %vm1556 = vcmask 1042434
  %v1557 = vsel %vm1556, %v1555, %v1553
  %s1558 = scalar_lea.vmem %s0, 226
  %v1559 = vld [vmem:[%s1558] sm:$0x8]
  %vm1560 = vcmask 1043459
  %v1561 = vsel %vm1560, %v1559, %v1557
  %s1562 = scalar_lea.vmem %s0, 289
  %v1563 = vld [vmem:[%s1562] sm:$0x10]
  %vm1564 = vcmask 1044484
  %v1565 = vsel %vm1564, %v1563, %v1561
  %s1566 = scalar_lea.vmem %s0, 352
  %v1567 = vld [vmem:[%s1566] sm:$0x20]
  %vm1568 = vcmask 1045509
  %v1569 = vsel %vm1568, %v1567, %v1565
  %s1570 = scalar_lea.vmem %s0, 415
  %v1571 = vld [vmem:[%s1570] sm:$0x40]
  %vm1572 = vcmask 1046534
  %v1573 = vsel %vm1572, %v1571, %v1569
  %s1574 = scalar_lea.vmem %s0, 478
  %v1575 = vld [vmem:[%s1574] sm:$0x80]
  %vm1576 = vcmask 1047559
  %v1577 = vsel %vm1576, %v1575, %v1573
  %1578 = vrot.lane.b32.xlu0 %v1577, 40
  %v1579 = vpop.permute.xlu0 %1578
  %vm1580 = vcmask 392512
  %s1581 = scalar_lea.vmem %s1, 16
  %1582 = vst.msk [vmem:[%s1581] sm:$0xff] %vm1580, %v1579
  %s1583 = scalar_lea.vmem %s0, 53
  %v1584 = vld [vmem:[%s1583] sm:$0x1]
  %s1585 = scalar_lea.vmem %s0, 116
  %v1586 = vld [vmem:[%s1585] sm:$0x2]
  %vm1587 = vcmask 1041409
  %v1588 = vsel %vm1587, %v1586, %v1584
  %s1589 = scalar_lea.vmem %s0, 179
  %v1590 = vld [vmem:[%s1589] sm:$0x4]
  %vm1591 = vcmask 1042434
  %v1592 = vsel %vm1591, %v1590, %v1588
  %s1593 = scalar_lea.vmem %s0, 242
  %v1594 = vld [vmem:[%s1593] sm:$0x8]
  %vm1595 = vcmask 1043459
  %v1596 = vsel %vm1595, %v1594, %v1592
  %s1597 = scalar_lea.vmem %s0, 305
  %v1598 = vld [vmem:[%s1597] sm:$0x10]
  %vm1599 = vcmask 1044484
  %v1600 = vsel %vm1599, %v1598, %v1596
  %s1601 = scalar_lea.vmem %s0, 368
  %v1602 = vld [vmem:[%s1601] sm:$0x20]
  %vm1603 = vcmask 1045509
  %v1604 = vsel %vm1603, %v1602, %v1600
  %s1605 = scalar_lea.vmem %s0, 431
  %v1606 = vld [vmem:[%s1605] sm:$0x40]
  %vm1607 = vcmask 1046534
  %v1608 = vsel %vm1607, %v1606, %v1604
  %s1609 = scalar_lea.vmem %s0, 494
  %v1610 = vld [vmem:[%s1609] sm:$0x80]
  %vm1611 = vcmask 1047559
  %v1612 = vsel %vm1611, %v1610, %v1608
  %1613 = vrot.lane.b32.xlu0 %v1612, 40
  %v1614 = vpop.permute.xlu0 %1613
  %vm1615 = vcmask 392512
  %s1616 = scalar_lea.vmem %s1, 24
  %1617 = vst.msk [vmem:[%s1616] sm:$0xff] %vm1615, %v1614
  %s1618 = scalar_lea.vmem %s0, 4
  %v1619 = vld [vmem:[%s1618] sm:$0x1]
  %s1620 = scalar_lea.vmem %s0, 67
  %v1621 = vld [vmem:[%s1620] sm:$0x2]
  %vm1622 = vcmask 1041409
  %v1623 = vsel %vm1622, %v1621, %v1619
  %s1624 = scalar_lea.vmem %s0, 130
  %v1625 = vld [vmem:[%s1624] sm:$0x4]
  %vm1626 = vcmask 1042434
  %v1627 = vsel %vm1626, %v1625, %v1623
  %s1628 = scalar_lea.vmem %s0, 193
  %v1629 = vld [vmem:[%s1628] sm:$0x8]
  %vm1630 = vcmask 1043459
  %v1631 = vsel %vm1630, %v1629, %v1627
  %s1632 = scalar_lea.vmem %s0, 256
  %v1633 = vld [vmem:[%s1632] sm:$0x10]
  %vm1634 = vcmask 1044484
  %v1635 = vsel %vm1634, %v1633, %v1631
  %s1636 = scalar_lea.vmem %s0, 319
  %v1637 = vld [vmem:[%s1636] sm:$0x20]
  %vm1638 = vcmask 1045509
  %v1639 = vsel %vm1638, %v1637, %v1635
  %s1640 = scalar_lea.vmem %s0, 382
  %v1641 = vld [vmem:[%s1640] sm:$0x40]
  %vm1642 = vcmask 1046534
  %v1643 = vsel %vm1642, %v1641, %v1639
  %s1644 = scalar_lea.vmem %s0, 445
  %v1645 = vld [vmem:[%s1644] sm:$0x80]
  %vm1646 = vcmask 1047559
  %v1647 = vsel %vm1646, %v1645, %v1643
  %1648 = vrot.lane.b32.xlu0 %v1647, 32
  %v1649 = vpop.permute.xlu0 %1648
  %vm1650 = vcmask 326912
  %1651 = vst.msk [vmem:[%s1] sm:$0xff] %vm1650, %v1649
  %s1652 = scalar_lea.vmem %s0, 20
  %v1653 = vld [vmem:[%s1652] sm:$0x1]
  %s1654 = scalar_lea.vmem %s0, 83
  %v1655 = vld [vmem:[%s1654] sm:$0x2]
  %vm1656 = vcmask 1041409
  %v1657 = vsel %vm1656, %v1655, %v1653
  %s1658 = scalar_lea.vmem %s0, 146
  %v1659 = vld [vmem:[%s1658] sm:$0x4]
  %vm1660 = vcmask 1042434
  %v1661 = vsel %vm1660, %v1659, %v1657
  %s1662 = scalar_lea.vmem %s0, 209
  %v1663 = vld [vmem:[%s1662] sm:$0x8]
  %vm1664 = vcmask 1043459
  %v1665 = vsel %vm1664, %v1663, %v1661
  %s1666 = scalar_lea.vmem %s0, 272
  %v1667 = vld [vmem:[%s1666] sm:$0x10]
  %vm1668 = vcmask 1044484
  %v1669 = vsel %vm1668, %v1667, %v1665
  %s1670 = scalar_lea.vmem %s0, 335
  %v1671 = vld [vmem:[%s1670] sm:$0x20]
  %vm1672 = vcmask 1045509
  %v1673 = vsel %vm1672, %v1671, %v1669
  %s1674 = scalar_lea.vmem %s0, 398
  %v1675 = vld [vmem:[%s1674] sm:$0x40]
  %vm1676 = vcmask 1046534
  %v1677 = vsel %vm1676, %v1675, %v1673
  %s1678 = scalar_lea.vmem %s0, 461
  %v1679 = vld [vmem:[%s1678] sm:$0x80]
  %vm1680 = vcmask 1047559
  %v1681 = vsel %vm1680, %v1679, %v1677
  %1682 = vrot.lane.b32.xlu0 %v1681, 32
  %v1683 = vpop.permute.xlu0 %1682
  %vm1684 = vcmask 326912
  %s1685 = scalar_lea.vmem %s1, 8
  %1686 = vst.msk [vmem:[%s1685] sm:$0xff] %vm1684, %v1683
  %s1687 = scalar_lea.vmem %s0, 36
  %v1688 = vld [vmem:[%s1687] sm:$0x1]
  %s1689 = scalar_lea.vmem %s0, 99
  %v1690 = vld [vmem:[%s1689] sm:$0x2]
  %vm1691 = vcmask 1041409
  %v1692 = vsel %vm1691, %v1690, %v1688
  %s1693 = scalar_lea.vmem %s0, 162
  %v1694 = vld [vmem:[%s1693] sm:$0x4]
  %vm1695 = vcmask 1042434
  %v1696 = vsel %vm1695, %v1694, %v1692
  %s1697 = scalar_lea.vmem %s0, 225
  %v1698 = vld [vmem:[%s1697] sm:$0x8]
  %vm1699 = vcmask 1043459
  %v1700 = vsel %vm1699, %v1698, %v1696
  %s1701 = scalar_lea.vmem %s0, 288
  %v1702 = vld [vmem:[%s1701] sm:$0x10]
  %vm1703 = vcmask 1044484
  %v1704 = vsel %vm1703, %v1702, %v1700
  %s1705 = scalar_lea.vmem %s0, 351
  %v1706 = vld [vmem:[%s1705] sm:$0x20]
  %vm1707 = vcmask 1045509
  %v1708 = vsel %vm1707, %v1706, %v1704
  %s1709 = scalar_lea.vmem %s0, 414
  %v1710 = vld [vmem:[%s1709] sm:$0x40]
  %vm1711 = vcmask 1046534
  %v1712 = vsel %vm1711, %v1710, %v1708
  %s1713 = scalar_lea.vmem %s0, 477
  %v1714 = vld [vmem:[%s1713] sm:$0x80]
  %vm1715 = vcmask 1047559
  %v1716 = vsel %vm1715, %v1714, %v1712
  %1717 = vrot.lane.b32.xlu0 %v1716, 32
  %v1718 = vpop.permute.xlu0 %1717
  %vm1719 = vcmask 326912
  %s1720 = scalar_lea.vmem %s1, 16
  %1721 = vst.msk [vmem:[%s1720] sm:$0xff] %vm1719, %v1718
  %s1722 = scalar_lea.vmem %s0, 52
  %v1723 = vld [vmem:[%s1722] sm:$0x1]
  %s1724 = scalar_lea.vmem %s0, 115
  %v1725 = vld [vmem:[%s1724] sm:$0x2]
  %vm1726 = vcmask 1041409
  %v1727 = vsel %vm1726, %v1725, %v1723
  %s1728 = scalar_lea.vmem %s0, 178
  %v1729 = vld [vmem:[%s1728] sm:$0x4]
  %vm1730 = vcmask 1042434
  %v1731 = vsel %vm1730, %v1729, %v1727
  %s1732 = scalar_lea.vmem %s0, 241
  %v1733 = vld [vmem:[%s1732] sm:$0x8]
  %vm1734 = vcmask 1043459
  %v1735 = vsel %vm1734, %v1733, %v1731
  %s1736 = scalar_lea.vmem %s0, 304
  %v1737 = vld [vmem:[%s1736] sm:$0x10]
  %vm1738 = vcmask 1044484
  %v1739 = vsel %vm1738, %v1737, %v1735
  %s1740 = scalar_lea.vmem %s0, 367
  %v1741 = vld [vmem:[%s1740] sm:$0x20]
  %vm1742 = vcmask 1045509
  %v1743 = vsel %vm1742, %v1741, %v1739
  %s1744 = scalar_lea.vmem %s0, 430
  %v1745 = vld [vmem:[%s1744] sm:$0x40]
  %vm1746 = vcmask 1046534
  %v1747 = vsel %vm1746, %v1745, %v1743
  %s1748 = scalar_lea.vmem %s0, 493
  %v1749 = vld [vmem:[%s1748] sm:$0x80]
  %vm1750 = vcmask 1047559
  %v1751 = vsel %vm1750, %v1749, %v1747
  %1752 = vrot.lane.b32.xlu0 %v1751, 32
  %v1753 = vpop.permute.xlu0 %1752
  %vm1754 = vcmask 326912
  %s1755 = scalar_lea.vmem %s1, 24
  %1756 = vst.msk [vmem:[%s1755] sm:$0xff] %vm1754, %v1753
  %s1757 = scalar_lea.vmem %s0, 3
  %v1758 = vld [vmem:[%s1757] sm:$0x1]
  %s1759 = scalar_lea.vmem %s0, 66
  %v1760 = vld [vmem:[%s1759] sm:$0x2]
  %vm1761 = vcmask 1041409
  %v1762 = vsel %vm1761, %v1760, %v1758
  %s1763 = scalar_lea.vmem %s0, 129
  %v1764 = vld [vmem:[%s1763] sm:$0x4]
  %vm1765 = vcmask 1042434
  %v1766 = vsel %vm1765, %v1764, %v1762
  %s1767 = scalar_lea.vmem %s0, 192
  %v1768 = vld [vmem:[%s1767] sm:$0x8]
  %vm1769 = vcmask 1043459
  %v1770 = vsel %vm1769, %v1768, %v1766
  %s1771 = scalar_lea.vmem %s0, 255
  %v1772 = vld [vmem:[%s1771] sm:$0x10]
  %vm1773 = vcmask 1044484
  %v1774 = vsel %vm1773, %v1772, %v1770
  %s1775 = scalar_lea.vmem %s0, 318
  %v1776 = vld [vmem:[%s1775] sm:$0x20]
  %vm1777 = vcmask 1045509
  %v1778 = vsel %vm1777, %v1776, %v1774
  %s1779 = scalar_lea.vmem %s0, 381
  %v1780 = vld [vmem:[%s1779] sm:$0x40]
  %vm1781 = vcmask 1046534
  %v1782 = vsel %vm1781, %v1780, %v1778
  %s1783 = scalar_lea.vmem %s0, 444
  %v1784 = vld [vmem:[%s1783] sm:$0x80]
  %vm1785 = vcmask 1047559
  %v1786 = vsel %vm1785, %v1784, %v1782
  %1787 = vrot.lane.b32.xlu0 %v1786, 24
  %v1788 = vpop.permute.xlu0 %1787
  %vm1789 = vcmask 261312
  %1790 = vst.msk [vmem:[%s1] sm:$0xff] %vm1789, %v1788
  %s1791 = scalar_lea.vmem %s0, 19
  %v1792 = vld [vmem:[%s1791] sm:$0x1]
  %s1793 = scalar_lea.vmem %s0, 82
  %v1794 = vld [vmem:[%s1793] sm:$0x2]
  %vm1795 = vcmask 1041409
  %v1796 = vsel %vm1795, %v1794, %v1792
  %s1797 = scalar_lea.vmem %s0, 145
  %v1798 = vld [vmem:[%s1797] sm:$0x4]
  %vm1799 = vcmask 1042434
  %v1800 = vsel %vm1799, %v1798, %v1796
  %s1801 = scalar_lea.vmem %s0, 208
  %v1802 = vld [vmem:[%s1801] sm:$0x8]
  %vm1803 = vcmask 1043459
  %v1804 = vsel %vm1803, %v1802, %v1800
  %s1805 = scalar_lea.vmem %s0, 271
  %v1806 = vld [vmem:[%s1805] sm:$0x10]
  %vm1807 = vcmask 1044484
  %v1808 = vsel %vm1807, %v1806, %v1804
  %s1809 = scalar_lea.vmem %s0, 334
  %v1810 = vld [vmem:[%s1809] sm:$0x20]
  %vm1811 = vcmask 1045509
  %v1812 = vsel %vm1811, %v1810, %v1808
  %s1813 = scalar_lea.vmem %s0, 397
  %v1814 = vld [vmem:[%s1813] sm:$0x40]
  %vm1815 = vcmask 1046534
  %v1816 = vsel %vm1815, %v1814, %v1812
  %s1817 = scalar_lea.vmem %s0, 460
  %v1818 = vld [vmem:[%s1817] sm:$0x80]
  %vm1819 = vcmask 1047559
  %v1820 = vsel %vm1819, %v1818, %v1816
  %1821 = vrot.lane.b32.xlu0 %v1820, 24
  %v1822 = vpop.permute.xlu0 %1821
  %vm1823 = vcmask 261312
  %s1824 = scalar_lea.vmem %s1, 8
  %1825 = vst.msk [vmem:[%s1824] sm:$0xff] %vm1823, %v1822
  %s1826 = scalar_lea.vmem %s0, 35
  %v1827 = vld [vmem:[%s1826] sm:$0x1]
  %s1828 = scalar_lea.vmem %s0, 98
  %v1829 = vld [vmem:[%s1828] sm:$0x2]
  %vm1830 = vcmask 1041409
  %v1831 = vsel %vm1830, %v1829, %v1827
  %s1832 = scalar_lea.vmem %s0, 161
  %v1833 = vld [vmem:[%s1832] sm:$0x4]
  %vm1834 = vcmask 1042434
  %v1835 = vsel %vm1834, %v1833, %v1831
  %s1836 = scalar_lea.vmem %s0, 224
  %v1837 = vld [vmem:[%s1836] sm:$0x8]
  %vm1838 = vcmask 1043459
  %v1839 = vsel %vm1838, %v1837, %v1835
  %s1840 = scalar_lea.vmem %s0, 287
  %v1841 = vld [vmem:[%s1840] sm:$0x10]
  %vm1842 = vcmask 1044484
  %v1843 = vsel %vm1842, %v1841, %v1839
  %s1844 = scalar_lea.vmem %s0, 350
  %v1845 = vld [vmem:[%s1844] sm:$0x20]
  %vm1846 = vcmask 1045509
  %v1847 = vsel %vm1846, %v1845, %v1843
  %s1848 = scalar_lea.vmem %s0, 413
  %v1849 = vld [vmem:[%s1848] sm:$0x40]
  %vm1850 = vcmask 1046534
  %v1851 = vsel %vm1850, %v1849, %v1847
  %s1852 = scalar_lea.vmem %s0, 476
  %v1853 = vld [vmem:[%s1852] sm:$0x80]
  %vm1854 = vcmask 1047559
  %v1855 = vsel %vm1854, %v1853, %v1851
  %1856 = vrot.lane.b32.xlu0 %v1855, 24
  %v1857 = vpop.permute.xlu0 %1856
  %vm1858 = vcmask 261312
  %s1859 = scalar_lea.vmem %s1, 16
  %1860 = vst.msk [vmem:[%s1859] sm:$0xff] %vm1858, %v1857
  %s1861 = scalar_lea.vmem %s0, 51
  %v1862 = vld [vmem:[%s1861] sm:$0x1]
  %s1863 = scalar_lea.vmem %s0, 114
  %v1864 = vld [vmem:[%s1863] sm:$0x2]
  %vm1865 = vcmask 1041409
  %v1866 = vsel %vm1865, %v1864, %v1862
  %s1867 = scalar_lea.vmem %s0, 177
  %v1868 = vld [vmem:[%s1867] sm:$0x4]
  %vm1869 = vcmask 1042434
  %v1870 = vsel %vm1869, %v1868, %v1866
  %s1871 = scalar_lea.vmem %s0, 240
  %v1872 = vld [vmem:[%s1871] sm:$0x8]
  %vm1873 = vcmask 1043459
  %v1874 = vsel %vm1873, %v1872, %v1870
  %s1875 = scalar_lea.vmem %s0, 303
  %v1876 = vld [vmem:[%s1875] sm:$0x10]
  %vm1877 = vcmask 1044484
  %v1878 = vsel %vm1877, %v1876, %v1874
  %s1879 = scalar_lea.vmem %s0, 366
  %v1880 = vld [vmem:[%s1879] sm:$0x20]
  %vm1881 = vcmask 1045509
  %v1882 = vsel %vm1881, %v1880, %v1878
  %s1883 = scalar_lea.vmem %s0, 429
  %v1884 = vld [vmem:[%s1883] sm:$0x40]
  %vm1885 = vcmask 1046534
  %v1886 = vsel %vm1885, %v1884, %v1882
  %s1887 = scalar_lea.vmem %s0, 492
  %v1888 = vld [vmem:[%s1887] sm:$0x80]
  %vm1889 = vcmask 1047559
  %v1890 = vsel %vm1889, %v1888, %v1886
  %1891 = vrot.lane.b32.xlu0 %v1890, 24
  %v1892 = vpop.permute.xlu0 %1891
  %vm1893 = vcmask 261312
  %s1894 = scalar_lea.vmem %s1, 24
  %1895 = vst.msk [vmem:[%s1894] sm:$0xff] %vm1893, %v1892
  %s1896 = scalar_lea.vmem %s0, 2
  %v1897 = vld [vmem:[%s1896] sm:$0x1]
  %s1898 = scalar_lea.vmem %s0, 65
  %v1899 = vld [vmem:[%s1898] sm:$0x2]
  %vm1900 = vcmask 1041409
  %v1901 = vsel %vm1900, %v1899, %v1897
  %s1902 = scalar_lea.vmem %s0, 128
  %v1903 = vld [vmem:[%s1902] sm:$0x4]
  %vm1904 = vcmask 1042434
  %v1905 = vsel %vm1904, %v1903, %v1901
  %s1906 = scalar_lea.vmem %s0, 191
  %v1907 = vld [vmem:[%s1906] sm:$0x8]
  %vm1908 = vcmask 1043459
  %v1909 = vsel %vm1908, %v1907, %v1905
  %s1910 = scalar_lea.vmem %s0, 254
  %v1911 = vld [vmem:[%s1910] sm:$0x10]
  %vm1912 = vcmask 1044484
  %v1913 = vsel %vm1912, %v1911, %v1909
  %s1914 = scalar_lea.vmem %s0, 317
  %v1915 = vld [vmem:[%s1914] sm:$0x20]
  %vm1916 = vcmask 1045509
  %v1917 = vsel %vm1916, %v1915, %v1913
  %s1918 = scalar_lea.vmem %s0, 380
  %v1919 = vld [vmem:[%s1918] sm:$0x40]
  %vm1920 = vcmask 1046534
  %v1921 = vsel %vm1920, %v1919, %v1917
  %s1922 = scalar_lea.vmem %s0, 443
  %v1923 = vld [vmem:[%s1922] sm:$0x80]
  %vm1924 = vcmask 1047559
  %v1925 = vsel %vm1924, %v1923, %v1921
  %1926 = vrot.lane.b32.xlu0 %v1925, 16
  %v1927 = vpop.permute.xlu0 %1926
  %vm1928 = vcmask 195712
  %1929 = vst.msk [vmem:[%s1] sm:$0xff] %vm1928, %v1927
  %s1930 = scalar_lea.vmem %s0, 18
  %v1931 = vld [vmem:[%s1930] sm:$0x1]
  %s1932 = scalar_lea.vmem %s0, 81
  %v1933 = vld [vmem:[%s1932] sm:$0x2]
  %vm1934 = vcmask 1041409
  %v1935 = vsel %vm1934, %v1933, %v1931
  %s1936 = scalar_lea.vmem %s0, 144
  %v1937 = vld [vmem:[%s1936] sm:$0x4]
  %vm1938 = vcmask 1042434
  %v1939 = vsel %vm1938, %v1937, %v1935
  %s1940 = scalar_lea.vmem %s0, 207
  %v1941 = vld [vmem:[%s1940] sm:$0x8]
  %vm1942 = vcmask 1043459
  %v1943 = vsel %vm1942, %v1941, %v1939
  %s1944 = scalar_lea.vmem %s0, 270
  %v1945 = vld [vmem:[%s1944] sm:$0x10]
  %vm1946 = vcmask 1044484
  %v1947 = vsel %vm1946, %v1945, %v1943
  %s1948 = scalar_lea.vmem %s0, 333
  %v1949 = vld [vmem:[%s1948] sm:$0x20]
  %vm1950 = vcmask 1045509
  %v1951 = vsel %vm1950, %v1949, %v1947
  %s1952 = scalar_lea.vmem %s0, 396
  %v1953 = vld [vmem:[%s1952] sm:$0x40]
  %vm1954 = vcmask 1046534
  %v1955 = vsel %vm1954, %v1953, %v1951
  %s1956 = scalar_lea.vmem %s0, 459
  %v1957 = vld [vmem:[%s1956] sm:$0x80]
  %vm1958 = vcmask 1047559
  %v1959 = vsel %vm1958, %v1957, %v1955
  %1960 = vrot.lane.b32.xlu0 %v1959, 16
  %v1961 = vpop.permute.xlu0 %1960
  %vm1962 = vcmask 195712
  %s1963 = scalar_lea.vmem %s1, 8
  %1964 = vst.msk [vmem:[%s1963] sm:$0xff] %vm1962, %v1961
  %s1965 = scalar_lea.vmem %s0, 34
  %v1966 = vld [vmem:[%s1965] sm:$0x1]
  %s1967 = scalar_lea.vmem %s0, 97
  %v1968 = vld [vmem:[%s1967] sm:$0x2]
  %vm1969 = vcmask 1041409
  %v1970 = vsel %vm1969, %v1968, %v1966
  %s1971 = scalar_lea.vmem %s0, 160
  %v1972 = vld [vmem:[%s1971] sm:$0x4]
  %vm1973 = vcmask 1042434
  %v1974 = vsel %vm1973, %v1972, %v1970
  %s1975 = scalar_lea.vmem %s0, 223
  %v1976 = vld [vmem:[%s1975] sm:$0x8]
  %vm1977 = vcmask 1043459
  %v1978 = vsel %vm1977, %v1976, %v1974
  %s1979 = scalar_lea.vmem %s0, 286
  %v1980 = vld [vmem:[%s1979] sm:$0x10]
  %vm1981 = vcmask 1044484
  %v1982 = vsel %vm1981, %v1980, %v1978
  %s1983 = scalar_lea.vmem %s0, 349
  %v1984 = vld [vmem:[%s1983] sm:$0x20]
  %vm1985 = vcmask 1045509
  %v1986 = vsel %vm1985, %v1984, %v1982
  %s1987 = scalar_lea.vmem %s0, 412
  %v1988 = vld [vmem:[%s1987] sm:$0x40]
  %vm1989 = vcmask 1046534
  %v1990 = vsel %vm1989, %v1988, %v1986
  %s1991 = scalar_lea.vmem %s0, 475
  %v1992 = vld [vmem:[%s1991] sm:$0x80]
  %vm1993 = vcmask 1047559
  %v1994 = vsel %vm1993, %v1992, %v1990
  %1995 = vrot.lane.b32.xlu0 %v1994, 16
  %v1996 = vpop.permute.xlu0 %1995
  %vm1997 = vcmask 195712
  %s1998 = scalar_lea.vmem %s1, 16
  %1999 = vst.msk [vmem:[%s1998] sm:$0xff] %vm1997, %v1996
  %s2000 = scalar_lea.vmem %s0, 50
  %v2001 = vld [vmem:[%s2000] sm:$0x1]
  %s2002 = scalar_lea.vmem %s0, 113
  %v2003 = vld [vmem:[%s2002] sm:$0x2]
  %vm2004 = vcmask 1041409
  %v2005 = vsel %vm2004, %v2003, %v2001
  %s2006 = scalar_lea.vmem %s0, 176
  %v2007 = vld [vmem:[%s2006] sm:$0x4]
  %vm2008 = vcmask 1042434
  %v2009 = vsel %vm2008, %v2007, %v2005
  %s2010 = scalar_lea.vmem %s0, 239
  %v2011 = vld [vmem:[%s2010] sm:$0x8]
  %vm2012 = vcmask 1043459
  %v2013 = vsel %vm2012, %v2011, %v2009
  %s2014 = scalar_lea.vmem %s0, 302
  %v2015 = vld [vmem:[%s2014] sm:$0x10]
  %vm2016 = vcmask 1044484
  %v2017 = vsel %vm2016, %v2015, %v2013
  %s2018 = scalar_lea.vmem %s0, 365
  %v2019 = vld [vmem:[%s2018] sm:$0x20]
  %vm2020 = vcmask 1045509
  %v2021 = vsel %vm2020, %v2019, %v2017
  %s2022 = scalar_lea.vmem %s0, 428
  %v2023 = vld [vmem:[%s2022] sm:$0x40]
  %vm2024 = vcmask 1046534
  %v2025 = vsel %vm2024, %v2023, %v2021
  %s2026 = scalar_lea.vmem %s0, 491
  %v2027 = vld [vmem:[%s2026] sm:$0x80]
  %vm2028 = vcmask 1047559
  %v2029 = vsel %vm2028, %v2027, %v2025
  %2030 = vrot.lane.b32.xlu0 %v2029, 16
  %v2031 = vpop.permute.xlu0 %2030
  %vm2032 = vcmask 195712
  %s2033 = scalar_lea.vmem %s1, 24
  %2034 = vst.msk [vmem:[%s2033] sm:$0xff] %vm2032, %v2031
  %s2035 = scalar_lea.vmem %s0, 1
  %v2036 = vld [vmem:[%s2035] sm:$0x1]
  %s2037 = scalar_lea.vmem %s0, 64
  %v2038 = vld [vmem:[%s2037] sm:$0x2]
  %vm2039 = vcmask 1041409
  %v2040 = vsel %vm2039, %v2038, %v2036
  %s2041 = scalar_lea.vmem %s0, 127
  %v2042 = vld [vmem:[%s2041] sm:$0x4]
  %vm2043 = vcmask 1042434
  %v2044 = vsel %vm2043, %v2042, %v2040
  %s2045 = scalar_lea.vmem %s0, 190
  %v2046 = vld [vmem:[%s2045] sm:$0x8]
  %vm2047 = vcmask 1043459
  %v2048 = vsel %vm2047, %v2046, %v2044
  %s2049 = scalar_lea.vmem %s0, 253
  %v2050 = vld [vmem:[%s2049] sm:$0x10]
  %vm2051 = vcmask 1044484
  %v2052 = vsel %vm2051, %v2050, %v2048
  %s2053 = scalar_lea.vmem %s0, 316
  %v2054 = vld [vmem:[%s2053] sm:$0x20]
  %vm2055 = vcmask 1045509
  %v2056 = vsel %vm2055, %v2054, %v2052
  %s2057 = scalar_lea.vmem %s0, 379
  %v2058 = vld [vmem:[%s2057] sm:$0x40]
  %vm2059 = vcmask 1046534
  %v2060 = vsel %vm2059, %v2058, %v2056
  %s2061 = scalar_lea.vmem %s0, 442
  %v2062 = vld [vmem:[%s2061] sm:$0x80]
  %vm2063 = vcmask 1047559
  %v2064 = vsel %vm2063, %v2062, %v2060
  %2065 = vrot.lane.b32.xlu0 %v2064, 8
  %v2066 = vpop.permute.xlu0 %2065
  %vm2067 = vcmask 130112
  %2068 = vst.msk [vmem:[%s1] sm:$0xff] %vm2067, %v2066
  %s2069 = scalar_lea.vmem %s0, 17
  %v2070 = vld [vmem:[%s2069] sm:$0x1]
  %s2071 = scalar_lea.vmem %s0, 80
  %v2072 = vld [vmem:[%s2071] sm:$0x2]
  %vm2073 = vcmask 1041409
  %v2074 = vsel %vm2073, %v2072, %v2070
  %s2075 = scalar_lea.vmem %s0, 143
  %v2076 = vld [vmem:[%s2075] sm:$0x4]
  %vm2077 = vcmask 1042434
  %v2078 = vsel %vm2077, %v2076, %v2074
  %s2079 = scalar_lea.vmem %s0, 206
  %v2080 = vld [vmem:[%s2079] sm:$0x8]
  %vm2081 = vcmask 1043459
  %v2082 = vsel %vm2081, %v2080, %v2078
  %s2083 = scalar_lea.vmem %s0, 269
  %v2084 = vld [vmem:[%s2083] sm:$0x10]
  %vm2085 = vcmask 1044484
  %v2086 = vsel %vm2085, %v2084, %v2082
  %s2087 = scalar_lea.vmem %s0, 332
  %v2088 = vld [vmem:[%s2087] sm:$0x20]
  %vm2089 = vcmask 1045509
  %v2090 = vsel %vm2089, %v2088, %v2086
  %s2091 = scalar_lea.vmem %s0, 395
  %v2092 = vld [vmem:[%s2091] sm:$0x40]
  %vm2093 = vcmask 1046534
  %v2094 = vsel %vm2093, %v2092, %v2090
  %s2095 = scalar_lea.vmem %s0, 458
  %v2096 = vld [vmem:[%s2095] sm:$0x80]
  %vm2097 = vcmask 1047559
  %v2098 = vsel %vm2097, %v2096, %v2094
  %2099 = vrot.lane.b32.xlu0 %v2098, 8
  %v2100 = vpop.permute.xlu0 %2099
  %vm2101 = vcmask 130112
  %s2102 = scalar_lea.vmem %s1, 8
  %2103 = vst.msk [vmem:[%s2102] sm:$0xff] %vm2101, %v2100
  %s2104 = scalar_lea.vmem %s0, 33
  %v2105 = vld [vmem:[%s2104] sm:$0x1]
  %s2106 = scalar_lea.vmem %s0, 96
  %v2107 = vld [vmem:[%s2106] sm:$0x2]
  %vm2108 = vcmask 1041409
  %v2109 = vsel %vm2108, %v2107, %v2105
  %s2110 = scalar_lea.vmem %s0, 159
  %v2111 = vld [vmem:[%s2110] sm:$0x4]
  %vm2112 = vcmask 1042434
  %v2113 = vsel %vm2112, %v2111, %v2109
  %s2114 = scalar_lea.vmem %s0, 222
  %v2115 = vld [vmem:[%s2114] sm:$0x8]
  %vm2116 = vcmask 1043459
  %v2117 = vsel %vm2116, %v2115, %v2113
  %s2118 = scalar_lea.vmem %s0, 285
  %v2119 = vld [vmem:[%s2118] sm:$0x10]
  %vm2120 = vcmask 1044484
  %v2121 = vsel %vm2120, %v2119, %v2117
  %s2122 = scalar_lea.vmem %s0, 348
  %v2123 = vld [vmem:[%s2122] sm:$0x20]
  %vm2124 = vcmask 1045509
  %v2125 = vsel %vm2124, %v2123, %v2121
  %s2126 = scalar_lea.vmem %s0, 411
  %v2127 = vld [vmem:[%s2126] sm:$0x40]
  %vm2128 = vcmask 1046534
  %v2129 = vsel %vm2128, %v2127, %v2125
  %s2130 = scalar_lea.vmem %s0, 474
  %v2131 = vld [vmem:[%s2130] sm:$0x80]
  %vm2132 = vcmask 1047559
  %v2133 = vsel %vm2132, %v2131, %v2129
  %2134 = vrot.lane.b32.xlu0 %v2133, 8
  %v2135 = vpop.permute.xlu0 %2134
  %vm2136 = vcmask 130112
  %s2137 = scalar_lea.vmem %s1, 16
  %2138 = vst.msk [vmem:[%s2137] sm:$0xff] %vm2136, %v2135
  %s2139 = scalar_lea.vmem %s0, 49
  %v2140 = vld [vmem:[%s2139] sm:$0x1]
  %s2141 = scalar_lea.vmem %s0, 112
  %v2142 = vld [vmem:[%s2141] sm:$0x2]
  %vm2143 = vcmask 1041409
  %v2144 = vsel %vm2143, %v2142, %v2140
  %s2145 = scalar_lea.vmem %s0, 175
  %v2146 = vld [vmem:[%s2145] sm:$0x4]
  %vm2147 = vcmask 1042434
  %v2148 = vsel %vm2147, %v2146, %v2144
  %s2149 = scalar_lea.vmem %s0, 238
  %v2150 = vld [vmem:[%s2149] sm:$0x8]
  %vm2151 = vcmask 1043459
  %v2152 = vsel %vm2151, %v2150, %v2148
  %s2153 = scalar_lea.vmem %s0, 301
  %v2154 = vld [vmem:[%s2153] sm:$0x10]
  %vm2155 = vcmask 1044484
  %v2156 = vsel %vm2155, %v2154, %v2152
  %s2157 = scalar_lea.vmem %s0, 364
  %v2158 = vld [vmem:[%s2157] sm:$0x20]
  %vm2159 = vcmask 1045509
  %v2160 = vsel %vm2159, %v2158, %v2156
  %s2161 = scalar_lea.vmem %s0, 427
  %v2162 = vld [vmem:[%s2161] sm:$0x40]
  %vm2163 = vcmask 1046534
  %v2164 = vsel %vm2163, %v2162, %v2160
  %s2165 = scalar_lea.vmem %s0, 490
  %v2166 = vld [vmem:[%s2165] sm:$0x80]
  %vm2167 = vcmask 1047559
  %v2168 = vsel %vm2167, %v2166, %v2164
  %2169 = vrot.lane.b32.xlu0 %v2168, 8
  %v2170 = vpop.permute.xlu0 %2169
  %vm2171 = vcmask 130112
  %s2172 = scalar_lea.vmem %s1, 24
  %2173 = vst.msk [vmem:[%s2172] sm:$0xff] %vm2171, %v2170

// kernel: conv_norm_relu_3d_forward.1
$region0: #{conv_norm_relu_3d_forward.1}
  #allocation0 [shape = 'u32[]', space=smem, size = 0x4, offset = 0x4, fixed_abs, tag = 'smem constant byte address 0x4 - core index']
  #allocation1 [shape = 'u32[72,128]{1,0:T(1,128)}', space=vmem, size = 0x9000, scoped, tag = 'internal scratch']
  %s0 = inlined_call_operand.vmem [shape: bf16[2,10,256], index: 0, kind: input, shape index: {}]
  %s1 = inlined_call_operand.vmem [shape: bf16[3,256,512], index: 1, kind: input, shape index: {}]
  %s2 = inlined_call_operand.vmem [shape: f32[512,8], index: 2, kind: input, shape index: {}]
  %s3 = inlined_call_operand.vmem [shape: f32[8,512], index: 3, kind: input, shape index: {}]
  %s4 = inlined_call_operand.vmem [shape: f32[2,8,512], index: 4, kind: output, shape index: {}]
  %s5 = sld [smem:[#allocation0]]
  $region49: #{conv_norm_relu_3d_forward.1} parent=0
    _
  %s7 = ssub.s32 1, %s5
  %s8 = scalar_select 0, %s7, %s5
  loop: start=0, step=1, limit=4
  $region2: #{conv_norm_relu_3d_forward.1} parent=0 // loop_pre_header
    _
  $region3: #{conv_norm_relu_3d_forward.1} parent=0 // loop_header
    %s10 = sphi 0, %s14
    %p11 = scmp.ge.s32.totalorder %s10, 4
    %s20 = sphi 0, %s22
    %s23 = sphi 0, %s20
    %s24 = sphi 0, %s23
    %s40 = sphi 0, %s24
    %s44 = sphi 0, %s44
    %s46 = sphi 0, %s44
    %s47 = sphi 0, %s46
    %s61 = sphi 0, %s47
    %s65 = sphi 0, %s65
    %s67 = sphi 0, %s65
    %s68 = sphi 0, %s67
    %s82 = sphi 0, %s68
    %s86 = sphi 0, %s86
    %s88 = sphi 0, %s86
    %s89 = sphi 0, %s88
    %s103 = sphi 0, %s89
    %s109 = sphi 0, %s111
    %s112 = sphi 0, %s109
    %s113 = sphi 0, %s112
    %s129 = sphi 0, %s113
  $region4: #{conv_norm_relu_3d_forward.1} parent=0 // loop_header_branch
    %13 = sbr.rel (%p11) target = $region8
  $region5: #{conv_norm_relu_3d_forward.1} parent=0 // loop_body
    %s15 = ssub.s32 %s10, 1
    %s16 = ssub.s32 %s10, 2
    %s17 = sadd.s32 %s10, 1
    %s18 = ssub.s32 %s10, %s17
    %p19 = scmp.eq.s32.totalorder %s18, 0
    %s21 = sadd.s32 %s20, 1
    %s22 = scalar_select %p19, %s20, %s21
    %p25 = pneg %p19
    %p26 = scmp.eq.s32.totalorder %s10, 1
    %p27 = por %p25, %p26
    %p28 = scmp.ne.s32.totalorder %s20, %s23
    %p29 = scmp.eq.s32.totalorder %s10, 0
    %p30 = por %p28, %p29
    %p31 = scmp.ne.s32.totalorder %s20, %s23
    %p32 = scmp.eq.s32.totalorder %s15, 1
    %p33 = por %p31, %p32
    %p34 = scmp.ne.s32.totalorder %s23, %s24
    %p35 = scmp.eq.s32.totalorder %s15, 0
    %p36 = por %p34, %p35
    %p37 = scmp.ne.s32.totalorder %s23, %s24
    %p38 = scmp.eq.s32.totalorder %s16, 1
    %p39 = por %p37, %p38
    %p41 = scmp.ne.s32.totalorder %s24, %s40
    %p42 = scmp.eq.s32.totalorder %s16, 0
    %p43 = por %p41, %p42
    %s45 = sadd.s32 %s44, 1
    %p48 = scmp.eq.s32.totalorder %s10, 1
    %p49 = scmp.ne.s32.totalorder %s44, %s46
    %p50 = scmp.eq.s32.totalorder %s10, 0
    %p51 = por %p49, %p50
    %p52 = scmp.ne.s32.totalorder %s44, %s46
    %p53 = scmp.eq.s32.totalorder %s15, 1
    %p54 = por %p52, %p53
    %p55 = scmp.ne.s32.totalorder %s46, %s47
    %p56 = scmp.eq.s32.totalorder %s15, 0
    %p57 = por %p55, %p56
    %p58 = scmp.ne.s32.totalorder %s46, %s47
    %p59 = scmp.eq.s32.totalorder %s16, 1
    %p60 = por %p58, %p59
    %p62 = scmp.ne.s32.totalorder %s47, %s61
    %p63 = scmp.eq.s32.totalorder %s16, 0
    %p64 = por %p62, %p63
    %s66 = sadd.s32 %s65, 1
    %p69 = scmp.eq.s32.totalorder %s10, 1
    %p70 = scmp.ne.s32.totalorder %s65, %s67
    %p71 = scmp.eq.s32.totalorder %s10, 0
    %p72 = por %p70, %p71
    %p73 = scmp.ne.s32.totalorder %s65, %s67
    %p74 = scmp.eq.s32.totalorder %s15, 1
    %p75 = por %p73, %p74
    %p76 = scmp.ne.s32.totalorder %s67, %s68
    %p77 = scmp.eq.s32.totalorder %s15, 0
    %p78 = por %p76, %p77
    %p79 = scmp.ne.s32.totalorder %s67, %s68
    %p80 = scmp.eq.s32.totalorder %s16, 1
    %p81 = por %p79, %p80
    %p83 = scmp.ne.s32.totalorder %s68, %s82
    %p84 = scmp.eq.s32.totalorder %s16, 0
    %p85 = por %p83, %p84
    %s87 = sadd.s32 %s86, 1
    %p90 = scmp.eq.s32.totalorder %s10, 1
    %p91 = scmp.ne.s32.totalorder %s86, %s88
    %p92 = scmp.eq.s32.totalorder %s10, 0
    %p93 = por %p91, %p92
    %p94 = scmp.ne.s32.totalorder %s86, %s88
    %p95 = scmp.eq.s32.totalorder %s15, 1
    %p96 = por %p94, %p95
    %p97 = scmp.ne.s32.totalorder %s88, %s89
    %p98 = scmp.eq.s32.totalorder %s15, 0
    %p99 = por %p97, %p98
    %p100 = scmp.ne.s32.totalorder %s88, %s89
    %p101 = scmp.eq.s32.totalorder %s16, 1
    %p102 = por %p100, %p101
    %p104 = scmp.ne.s32.totalorder %s89, %s103
    %p105 = scmp.eq.s32.totalorder %s16, 0
    %p106 = por %p104, %p105
    %s107 = ssub.s32 %s10, %s17
    %p108 = scmp.eq.s32.totalorder %s107, 0
    %s110 = sadd.s32 %s109, 1
    %s111 = scalar_select %p108, %s109, %s110
    %p114 = pneg %p108
    %p115 = scmp.eq.s32.totalorder %s10, 1
    %p116 = por %p114, %p115
    %p117 = scmp.ne.s32.totalorder %s109, %s112
    %p118 = scmp.eq.s32.totalorder %s10, 0
    %p119 = por %p117, %p118
    %p120 = scmp.ne.s32.totalorder %s109, %s112
    %p121 = scmp.eq.s32.totalorder %s15, 1
    %p122 = por %p120, %p121
    %p123 = scmp.ne.s32.totalorder %s112, %s113
    %p124 = scmp.eq.s32.totalorder %s15, 0
    %p125 = por %p123, %p124
    %p126 = scmp.ne.s32.totalorder %s112, %s113
    %p127 = scmp.eq.s32.totalorder %s16, 1
    %p128 = por %p126, %p127
    %p130 = scmp.ne.s32.totalorder %s113, %s129
    %p131 = scmp.eq.s32.totalorder %s16, 0
    %p132 = por %p130, %p131
    %p133 = scmp.le.s32.totalorder 1, %s10
    %p134 = scmp.lt.s32.totalorder %s10, 3
    %p135 = pnand %p133, %p134
    %p136 = pneg %p135
    // Predicated region
    $region9: #{conv_norm_relu_3d_forward.1} parent=5 // pred_check
      _
    $region10: #{conv_norm_relu_3d_forward.1} parent=5 // pred_check_branch
      %138 = sbr.rel (%p135) target = $region12
    $region11: #{conv_norm_relu_3d_forward.1} parent=5 // pred_region
      %s139 = ssub.s32 %s10, 1
      // Predicated region
      $region13: #{conv_norm_relu_3d_forward.1} parent=11 // pred_check
        %p140 = pneg %p57
      $region14: #{conv_norm_relu_3d_forward.1} parent=11 // pred_check_branch
        %142 = sbr.rel (%p140) target = $region16
      $region15: #{conv_norm_relu_3d_forward.1} parent=11 // pred_region
        _
      $region16: #{conv_norm_relu_3d_forward.1} parent=11 // pred_fallthru
        _
      // Predicated region
      $region17: #{conv_norm_relu_3d_forward.1} parent=11 // pred_check
        %p143 = pneg %p78
      $region18: #{conv_norm_relu_3d_forward.1} parent=11 // pred_check_branch
        %145 = sbr.rel (%p143) target = $region20
      $region19: #{conv_norm_relu_3d_forward.1} parent=11 // pred_region
        _
      $region20: #{conv_norm_relu_3d_forward.1} parent=11 // pred_fallthru
        _
      // Predicated region
      $region21: #{conv_norm_relu_3d_forward.1} parent=11 // pred_check
        %p146 = pneg %p99
      $region22: #{conv_norm_relu_3d_forward.1} parent=11 // pred_check_branch
        %148 = sbr.rel (%p146) target = $region24
      $region23: #{conv_norm_relu_3d_forward.1} parent=11 // pred_region
        _
      $region24: #{conv_norm_relu_3d_forward.1} parent=11 // pred_fallthru
        _
    $region12: #{conv_norm_relu_3d_forward.1} parent=5 // pred_fallthru
      _
    %p149 = scmp.lt.s32.totalorder %s10, 2
    // Predicated region
    $region25: #{conv_norm_relu_3d_forward.1} parent=5 // pred_check
      %p150 = pneg %p149
    $region26: #{conv_norm_relu_3d_forward.1} parent=5 // pred_check_branch
      %152 = sbr.rel (%p150) target = $region28
    $region27: #{conv_norm_relu_3d_forward.1} parent=5 // pred_region
      // Predicated region
      $region29: #{conv_norm_relu_3d_forward.1} parent=27 // pred_check
        %p153 = pneg %p30
      $region30: #{conv_norm_relu_3d_forward.1} parent=27 // pred_check_branch
        %155 = sbr.rel (%p153) target = $region32
      $region31: #{conv_norm_relu_3d_forward.1} parent=27 // pred_region
        %p156 = scmp.lt.s32.totalorder %s10, 1
        %s157 = scalar_select %p156, %s10, 1
        %s158 = smul.addr %s157, 4
        %s159 = smul.addr %s158, 4
        %s160 = scalar_lea.vmem %s0, %s159
      $region32: #{conv_norm_relu_3d_forward.1} parent=27 // pred_fallthru
        _
    $region28: #{conv_norm_relu_3d_forward.1} parent=5 // pred_fallthru
      _
    %p161 = scmp.le.s32.totalorder 1, %s10
    %p162 = scmp.lt.s32.totalorder %s10, 3
    %p163 = pnand %p161, %p162
    %p164 = pneg %p163
    // Predicated region
    $region33: #{conv_norm_relu_3d_forward.1} parent=5 // pred_check
      _
    $region34: #{conv_norm_relu_3d_forward.1} parent=5 // pred_check_branch
      %166 = sbr.rel (%p163) target = $region36
    $region35: #{conv_norm_relu_3d_forward.1} parent=5 // pred_region
      %s167 = ssub.s32 %s10, 1
      %p168 = scmp.lt.s32.totalorder %s15, 1
      %s169 = scalar_select %p168, %s15, 1
      %s170 = smul.addr %s169, 4
      %s171 = smul.addr %s170, 4
      %s172 = scalar_lea.vmem %s0, %s171
      %p173 = pneg %p36
      %p174 = pneg %p33
      %p175 = pneg %p57
      %p176 = pneg %p54
      %p177 = pneg %p78
      %p178 = pneg %p75
      %p179 = pneg %p99
      %p180 = pneg %p96
      %p181 = pneg %p125
      %p182 = pneg %p122
      %p183 = scmp.lt.s32.totalorder %s15, 1
      %s184 = scalar_select %p183, %s15, 1
      %s185 = smul.addr %s184, 4
      %s186 = smul.addr %s185, 8
      %s187 = scalar_lea.vmem %s4, %s186
      %p188 = scmp.lt.s32.totalorder %s15, 1
      %s189 = scalar_select %p188, %s15, 1
      %s190 = smul.addr %s189, 4
      %s191 = smul.addr %s190, 4
      %s192 = scalar_lea.vmem %s0, %s191
      %p193 = scmp.lt.s32.totalorder %s15, 1
      %s194 = scalar_select %p193, %s15, 1
      %s195 = smul.addr %s194, 4
      %s196 = smul.addr %s195, 8
      %s197 = scalar_lea.vmem %s4, %s196
      %v198 = vld [vmem:[%s192] sm:$0xff]
      %v199 = vld [vmem:[%s1] sm:$0xff]
      %v200 = vld [vmem:[%s1 + $0x8] sm:$0xff]
      %v201 = vld [vmem:[%s1 + $0x10] sm:$0xff]
      %v202 = vld [vmem:[%s1 + $0x18] sm:$0xff]
      %v203 = vld [vmem:[%s1 + $0x20] sm:$0xff]
      %v204 = vld [vmem:[%s1 + $0x28] sm:$0xff]
      %v205 = vld [vmem:[%s1 + $0x30] sm:$0xff]
      %v206 = vld [vmem:[%s1 + $0x38] sm:$0xff]
      %v207 = vld [vmem:[%s1 + $0x40] sm:$0xff]
      %v208 = vld [vmem:[%s1 + $0x48] sm:$0xff]
      %v209 = vld [vmem:[%s1 + $0x50] sm:$0xff]
      %v210 = vld [vmem:[%s1 + $0x58] sm:$0xff]
      %v211 = vld [vmem:[%s1 + $0x60] sm:$0xff]
      %v212 = vld [vmem:[%s1 + $0x68] sm:$0xff]
      %v213 = vld [vmem:[%s1 + $0x70] sm:$0xff]
      %v214 = vld [vmem:[%s1 + $0x78] sm:$0xff]
      %v215 = vld [vmem:[%s1 + $0x80] sm:$0xff]
      %v216 = vld [vmem:[%s1 + $0x88] sm:$0xff]
      %v217 = vld [vmem:[%s1 + $0x90] sm:$0xff]
      %v218 = vld [vmem:[%s1 + $0x98] sm:$0xff]
      %v219 = vld [vmem:[%s1 + $0xa0] sm:$0xff]
      %v220 = vld [vmem:[%s1 + $0xa8] sm:$0xff]
      %v221 = vld [vmem:[%s1 + $0xb0] sm:$0xff]
      %v222 = vld [vmem:[%s1 + $0xb8] sm:$0xff]
      %v223 = vld [vmem:[%s1 + $0xc0] sm:$0xff]
      %v224 = vld [vmem:[%s1 + $0xc8] sm:$0xff]
      %v225 = vld [vmem:[%s1 + $0xd0] sm:$0xff]
      %v226 = vld [vmem:[%s1 + $0xd8] sm:$0xff]
      %v227 = vld [vmem:[%s1 + $0xe0] sm:$0xff]
      %v228 = vld [vmem:[%s1 + $0xe8] sm:$0xff]
      %v229 = vld [vmem:[%s1 + $0xf0] sm:$0xff]
      %v230 = vld [vmem:[%s1 + $0xf8] sm:$0xff]
      %v231 = vld [vmem:[%s1 + $0x100] sm:$0xff]
      %v232 = vld [vmem:[%s1 + $0x108] sm:$0xff]
      %v233 = vld [vmem:[%s1 + $0x110] sm:$0xff]
      %v234 = vld [vmem:[%s1 + $0x118] sm:$0xff]
      %v235 = vld [vmem:[%s1 + $0x120] sm:$0xff]
      %v236 = vld [vmem:[%s1 + $0x128] sm:$0xff]
      %v237 = vld [vmem:[%s1 + $0x130] sm:$0xff]
      %v238 = vld [vmem:[%s1 + $0x138] sm:$0xff]
      %v239 = vld [vmem:[%s1 + $0x140] sm:$0xff]
      %v240 = vld [vmem:[%s1 + $0x148] sm:$0xff]
      %v241 = vld [vmem:[%s1 + $0x150] sm:$0xff]
      %v242 = vld [vmem:[%s1 + $0x158] sm:$0xff]
      %v243 = vld [vmem:[%s1 + $0x160] sm:$0xff]
      %v244 = vld [vmem:[%s1 + $0x168] sm:$0xff]
      %v245 = vld [vmem:[%s1 + $0x170] sm:$0xff]
      %v246 = vld [vmem:[%s1 + $0x178] sm:$0xff]
      %v247 = vld [vmem:[%s1 + $0x180] sm:$0xff]
      %v248 = vld [vmem:[%s1 + $0x188] sm:$0xff]
      %v249 = vld [vmem:[%s1 + $0x190] sm:$0xff]
      %v250 = vld [vmem:[%s1 + $0x198] sm:$0xff]
      %v251 = vld [vmem:[%s1 + $0x1a0] sm:$0xff]
      %v252 = vld [vmem:[%s1 + $0x1a8] sm:$0xff]
      %v253 = vld [vmem:[%s1 + $0x1b0] sm:$0xff]
      %v254 = vld [vmem:[%s1 + $0x1b8] sm:$0xff]
      %v255 = vld [vmem:[%s1 + $0x1c0] sm:$0xff]
      %v256 = vld [vmem:[%s1 + $0x1c8] sm:$0xff]
      %v257 = vld [vmem:[%s1 + $0x1d0] sm:$0xff]
      %v258 = vld [vmem:[%s1 + $0x1d8] sm:$0xff]
      %v259 = vld [vmem:[%s1 + $0x1e0] sm:$0xff]
      %v260 = vld [vmem:[%s1 + $0x1e8] sm:$0xff]
      %v261 = vld [vmem:[%s1 + $0x1f0] sm:$0xff]
      %v262 = vld [vmem:[%s1 + $0x1f8] sm:$0xff]
      %v263 = vld [vmem:[%s192 + $0x8] sm:$0x11]
      %s264 = scalar_lea.vmem %s1, 512
      %v265 = vld [vmem:[%s264] sm:$0xff]
      %v266 = vld [vmem:[%s264 + $0x8] sm:$0xff]
      %v267 = vld [vmem:[%s264 + $0x10] sm:$0xff]
      %v268 = vld [vmem:[%s264 + $0x18] sm:$0xff]
      %v269 = vld [vmem:[%s264 + $0x20] sm:$0xff]
      %v270 = vld [vmem:[%s264 + $0x28] sm:$0xff]
      %v271 = vld [vmem:[%s264 + $0x30] sm:$0xff]
      %v272 = vld [vmem:[%s264 + $0x38] sm:$0xff]
      %v273 = vld [vmem:[%s264 + $0x40] sm:$0xff]
      %v274 = vld [vmem:[%s264 + $0x48] sm:$0xff]
      %v275 = vld [vmem:[%s264 + $0x50] sm:$0xff]
      %v276 = vld [vmem:[%s264 + $0x58] sm:$0xff]
      %v277 = vld [vmem:[%s264 + $0x60] sm:$0xff]
      %v278 = vld [vmem:[%s264 + $0x68] sm:$0xff]
      %v279 = vld [vmem:[%s264 + $0x70] sm:$0xff]
      %v280 = vld [vmem:[%s264 + $0x78] sm:$0xff]
      %v281 = vld [vmem:[%s264 + $0x80] sm:$0xff]
      %v282 = vld [vmem:[%s264 + $0x88] sm:$0xff]
      %v283 = vld [vmem:[%s264 + $0x90] sm:$0xff]
      %v284 = vld [vmem:[%s264 + $0x98] sm:$0xff]
      %v285 = vld [vmem:[%s264 + $0xa0] sm:$0xff]
      %v286 = vld [vmem:[%s264 + $0xa8] sm:$0xff]
      %v287 = vld [vmem:[%s264 + $0xb0] sm:$0xff]
      %v288 = vld [vmem:[%s264 + $0xb8] sm:$0xff]
      %v289 = vld [vmem:[%s264 + $0xc0] sm:$0xff]
      %v290 = vld [vmem:[%s264 + $0xc8] sm:$0xff]
      %v291 = vld [vmem:[%s264 + $0xd0] sm:$0xff]
      %v292 = vld [vmem:[%s264 + $0xd8] sm:$0xff]
      %v293 = vld [vmem:[%s264 + $0xe0] sm:$0xff]
      %v294 = vld [vmem:[%s264 + $0xe8] sm:$0xff]
      %v295 = vld [vmem:[%s264 + $0xf0] sm:$0xff]
      %v296 = vld [vmem:[%s264 + $0xf8] sm:$0xff]
      %v297 = vld [vmem:[%s264 + $0x100] sm:$0xff]
      %v298 = vld [vmem:[%s264 + $0x108] sm:$0xff]
      %v299 = vld [vmem:[%s264 + $0x110] sm:$0xff]
      %v300 = vld [vmem:[%s264 + $0x118] sm:$0xff]
      %v301 = vld [vmem:[%s264 + $0x120] sm:$0xff]
      %v302 = vld [vmem:[%s264 + $0x128] sm:$0xff]
      %v303 = vld [vmem:[%s264 + $0x130] sm:$0xff]
      %v304 = vld [vmem:[%s264 + $0x138] sm:$0xff]
      %v305 = vld [vmem:[%s264 + $0x140] sm:$0xff]
      %v306 = vld [vmem:[%s264 + $0x148] sm:$0xff]
      %v307 = vld [vmem:[%s264 + $0x150] sm:$0xff]
      %v308 = vld [vmem:[%s264 + $0x158] sm:$0xff]
      %v309 = vld [vmem:[%s264 + $0x160] sm:$0xff]
      %v310 = vld [vmem:[%s264 + $0x168] sm:$0xff]
      %v311 = vld [vmem:[%s264 + $0x170] sm:$0xff]
      %v312 = vld [vmem:[%s264 + $0x178] sm:$0xff]
      %v313 = vld [vmem:[%s264 + $0x180] sm:$0xff]
      %v314 = vld [vmem:[%s264 + $0x188] sm:$0xff]
      %v315 = vld [vmem:[%s264 + $0x190] sm:$0xff]
      %v316 = vld [vmem:[%s264 + $0x198] sm:$0xff]
      %v317 = vld [vmem:[%s264 + $0x1a0] sm:$0xff]
      %v318 = vld [vmem:[%s264 + $0x1a8] sm:$0xff]
      %v319 = vld [vmem:[%s264 + $0x1b0] sm:$0xff]
      %v320 = vld [vmem:[%s264 + $0x1b8] sm:$0xff]
      %v321 = vld [vmem:[%s264 + $0x1c0] sm:$0xff]
      %v322 = vld [vmem:[%s264 + $0x1c8] sm:$0xff]
      %v323 = vld [vmem:[%s264 + $0x1d0] sm:$0xff]
      %v324 = vld [vmem:[%s264 + $0x1d8] sm:$0xff]
      %v325 = vld [vmem:[%s264 + $0x1e0] sm:$0xff]
      %v326 = vld [vmem:[%s264 + $0x1e8] sm:$0xff]
      %v327 = vld [vmem:[%s264 + $0x1f0] sm:$0xff]
      %v328 = vld [vmem:[%s264 + $0x1f8] sm:$0xff]
      %v331 = vunpack.c.l.b16 %v198
      %v332 = vunpack.c.h.b16 %v198
      %v333 = vunpack.c.l.b16 %v263
      %v334 = vunpack.c.h.b16 %v263
      %v335 = vpack.c.b16 %v333, %v331
      %v336 = vpack.c.b16 %v334, %v332
      %v338 = vshrl.u32 %v335, 16
      %v340 = vshll.u32 %v335, 16
      %v342 = vrot.slane %v340, 1
      %v343 = vor.u32 %v338, %v342
      %v345 = vshrl.u32 %v336, 16
      %v347 = vshll.u32 %v336, 16
      %v349 = vrot.slane %v347, 1
      %v350 = vor.u32 %v345, %v349
      %v417 = vunpack.c.l.b16 %v265
      %v418 = vunpack.c.h.b16 %v265
      %v419 = vunpack.c.l.b16 %v266
      %v420 = vunpack.c.h.b16 %v266
      %v421 = vunpack.c.l.b16 %v267
      %v422 = vunpack.c.h.b16 %v267
      %v423 = vunpack.c.l.b16 %v268
      %v424 = vunpack.c.h.b16 %v268
      %v425 = vunpack.c.l.b16 %v269
      %v426 = vunpack.c.h.b16 %v269
      %v427 = vunpack.c.l.b16 %v270
      %v428 = vunpack.c.h.b16 %v270
      %v429 = vunpack.c.l.b16 %v271
      %v430 = vunpack.c.h.b16 %v271
      %v431 = vunpack.c.l.b16 %v272
      %v432 = vunpack.c.h.b16 %v272
      %v433 = vunpack.c.l.b16 %v273
      %v434 = vunpack.c.h.b16 %v273
      %v435 = vunpack.c.l.b16 %v274
      %v436 = vunpack.c.h.b16 %v274
      %v437 = vunpack.c.l.b16 %v275
      %v438 = vunpack.c.h.b16 %v275
      %v439 = vunpack.c.l.b16 %v276
      %v440 = vunpack.c.h.b16 %v276
      %v441 = vunpack.c.l.b16 %v277
      %v442 = vunpack.c.h.b16 %v277
      %v443 = vunpack.c.l.b16 %v278
      %v444 = vunpack.c.h.b16 %v278
      %v445 = vunpack.c.l.b16 %v279
      %v446 = vunpack.c.h.b16 %v279
      %v447 = vunpack.c.l.b16 %v280
      %v448 = vunpack.c.h.b16 %v280
      %v449 = vunpack.c.l.b16 %v281
      %v450 = vunpack.c.h.b16 %v281
      %v451 = vunpack.c.l.b16 %v282
      %v452 = vunpack.c.h.b16 %v282
      %v453 = vunpack.c.l.b16 %v283
      %v454 = vunpack.c.h.b16 %v283
      %v455 = vunpack.c.l.b16 %v284
      %v456 = vunpack.c.h.b16 %v284
      %v457 = vunpack.c.l.b16 %v285
      %v458 = vunpack.c.h.b16 %v285
      %v459 = vunpack.c.l.b16 %v286
      %v460 = vunpack.c.h.b16 %v286
      %v461 = vunpack.c.l.b16 %v287
      %v462 = vunpack.c.h.b16 %v287
      %v463 = vunpack.c.l.b16 %v288
      %v464 = vunpack.c.h.b16 %v288
      %v465 = vunpack.c.l.b16 %v289
      %v466 = vunpack.c.h.b16 %v289
      %v467 = vunpack.c.l.b16 %v290
      %v468 = vunpack.c.h.b16 %v290
      %v469 = vunpack.c.l.b16 %v291
      %v470 = vunpack.c.h.b16 %v291
      %v471 = vunpack.c.l.b16 %v292
      %v472 = vunpack.c.h.b16 %v292
      %v473 = vunpack.c.l.b16 %v293
      %v474 = vunpack.c.h.b16 %v293
      %v475 = vunpack.c.l.b16 %v294
      %v476 = vunpack.c.h.b16 %v294
      %v477 = vunpack.c.l.b16 %v295
      %v478 = vunpack.c.h.b16 %v295
      %v479 = vunpack.c.l.b16 %v296
      %v480 = vunpack.c.h.b16 %v296
      %v481 = vunpack.c.l.b16 %v297
      %v482 = vunpack.c.h.b16 %v297
      %v483 = vunpack.c.l.b16 %v298
      %v484 = vunpack.c.h.b16 %v298
      %v485 = vunpack.c.l.b16 %v299
      %v486 = vunpack.c.h.b16 %v299
      %v487 = vunpack.c.l.b16 %v300
      %v488 = vunpack.c.h.b16 %v300
      %v489 = vunpack.c.l.b16 %v301
      %v490 = vunpack.c.h.b16 %v301
      %v491 = vunpack.c.l.b16 %v302
      %v492 = vunpack.c.h.b16 %v302
      %v493 = vunpack.c.l.b16 %v303
      %v494 = vunpack.c.h.b16 %v303
      %v495 = vunpack.c.l.b16 %v304
      %v496 = vunpack.c.h.b16 %v304
      %v497 = vunpack.c.l.b16 %v305
      %v498 = vunpack.c.h.b16 %v305
      %v499 = vunpack.c.l.b16 %v306
      %v500 = vunpack.c.h.b16 %v306
      %v501 = vunpack.c.l.b16 %v307
      %v502 = vunpack.c.h.b16 %v307
      %v503 = vunpack.c.l.b16 %v308
      %v504 = vunpack.c.h.b16 %v308
      %v505 = vunpack.c.l.b16 %v309
      %v506 = vunpack.c.h.b16 %v309
      %v507 = vunpack.c.l.b16 %v310
      %v508 = vunpack.c.h.b16 %v310
      %v509 = vunpack.c.l.b16 %v311
      %v510 = vunpack.c.h.b16 %v311
      %v511 = vunpack.c.l.b16 %v312
      %v512 = vunpack.c.h.b16 %v312
      %v513 = vunpack.c.l.b16 %v313
      %v514 = vunpack.c.h.b16 %v313
      %v515 = vunpack.c.l.b16 %v314
      %v516 = vunpack.c.h.b16 %v314
      %v517 = vunpack.c.l.b16 %v315
      %v518 = vunpack.c.h.b16 %v315
      %v519 = vunpack.c.l.b16 %v316
      %v520 = vunpack.c.h.b16 %v316
      %v521 = vunpack.c.l.b16 %v317
      %v522 = vunpack.c.h.b16 %v317
      %v523 = vunpack.c.l.b16 %v318
      %v524 = vunpack.c.h.b16 %v318
      %v525 = vunpack.c.l.b16 %v319
      %v526 = vunpack.c.h.b16 %v319
      %v527 = vunpack.c.l.b16 %v320
      %v528 = vunpack.c.h.b16 %v320
      %v529 = vunpack.c.l.b16 %v321
      %v530 = vunpack.c.h.b16 %v321
      %v531 = vunpack.c.l.b16 %v322
      %v532 = vunpack.c.h.b16 %v322
      %v533 = vunpack.c.l.b16 %v323
      %v534 = vunpack.c.h.b16 %v323
      %v535 = vunpack.c.l.b16 %v324
      %v536 = vunpack.c.h.b16 %v324
      %v537 = vunpack.c.l.b16 %v325
      %v538 = vunpack.c.h.b16 %v325
      %v539 = vunpack.c.l.b16 %v326
      %v540 = vunpack.c.h.b16 %v326
      %v541 = vunpack.c.l.b16 %v327
      %v542 = vunpack.c.h.b16 %v327
      %v543 = vunpack.c.l.b16 %v328
      %v544 = vunpack.c.h.b16 %v328
      %v545 = vpack.c.b16 %v421, %v417
      %v546 = vpack.c.b16 %v422, %v418
      %v547 = vpack.c.b16 %v423, %v419
      %v548 = vpack.c.b16 %v424, %v420
      %v549 = vpack.c.b16 %v429, %v425
      %v550 = vpack.c.b16 %v430, %v426
      %v551 = vpack.c.b16 %v431, %v427
      %v552 = vpack.c.b16 %v432, %v428
      %v553 = vpack.c.b16 %v437, %v433
      %v554 = vpack.c.b16 %v438, %v434
      %v555 = vpack.c.b16 %v439, %v435
      %v556 = vpack.c.b16 %v440, %v436
      %v557 = vpack.c.b16 %v445, %v441
      %v558 = vpack.c.b16 %v446, %v442
      %v559 = vpack.c.b16 %v447, %v443
      %v560 = vpack.c.b16 %v448, %v444
      %v561 = vpack.c.b16 %v453, %v449
      %v562 = vpack.c.b16 %v454, %v450
      %v563 = vpack.c.b16 %v455, %v451
      %v564 = vpack.c.b16 %v456, %v452
      %v565 = vpack.c.b16 %v461, %v457
      %v566 = vpack.c.b16 %v462, %v458
      %v567 = vpack.c.b16 %v463, %v459
      %v568 = vpack.c.b16 %v464, %v460
      %v569 = vpack.c.b16 %v469, %v465
      %v570 = vpack.c.b16 %v470, %v466
      %v571 = vpack.c.b16 %v471, %v467
      %v572 = vpack.c.b16 %v472, %v468
      %v573 = vpack.c.b16 %v477, %v473
      %v574 = vpack.c.b16 %v478, %v474
      %v575 = vpack.c.b16 %v479, %v475
      %v576 = vpack.c.b16 %v480, %v476
      %v577 = vpack.c.b16 %v485, %v481
      %v578 = vpack.c.b16 %v486, %v482
      %v579 = vpack.c.b16 %v487, %v483
      %v580 = vpack.c.b16 %v488, %v484
      %v581 = vpack.c.b16 %v493, %v489
      %v582 = vpack.c.b16 %v494, %v490
      %v583 = vpack.c.b16 %v495, %v491
      %v584 = vpack.c.b16 %v496, %v492
      %v585 = vpack.c.b16 %v501, %v497
      %v586 = vpack.c.b16 %v502, %v498
      %v587 = vpack.c.b16 %v503, %v499
      %v588 = vpack.c.b16 %v504, %v500
      %v589 = vpack.c.b16 %v509, %v505
      %v590 = vpack.c.b16 %v510, %v506
      %v591 = vpack.c.b16 %v511, %v507
      %v592 = vpack.c.b16 %v512, %v508
      %v593 = vpack.c.b16 %v517, %v513
      %v594 = vpack.c.b16 %v518, %v514
      %v595 = vpack.c.b16 %v519, %v515
      %v596 = vpack.c.b16 %v520, %v516
      %v597 = vpack.c.b16 %v525, %v521
      %v598 = vpack.c.b16 %v526, %v522
      %v599 = vpack.c.b16 %v527, %v523
      %v600 = vpack.c.b16 %v528, %v524
      %v601 = vpack.c.b16 %v533, %v529
      %v602 = vpack.c.b16 %v534, %v530
      %v603 = vpack.c.b16 %v535, %v531
      %v604 = vpack.c.b16 %v536, %v532
      %v605 = vpack.c.b16 %v541, %v537
      %v606 = vpack.c.b16 %v542, %v538
      %v607 = vpack.c.b16 %v543, %v539
      %v608 = vpack.c.b16 %v544, %v540
      %673 = vmatpush.bf16.msra.mxu0 %v573
      %674 = vmatpush.bf16.msra.mxu0 %v569
      %675 = vmatpush.bf16.msra.mxu0 %v565
      %676 = vmatpush.bf16.msra.mxu0 %v561
      %677 = vmatpush.bf16.msra.mxu0 %v557
      %678 = vmatpush.bf16.msra.mxu0 %v553
      %679 = vmatpush.bf16.msra.mxu0 %v549
      %680 = vmatpush.bf16.msra.mxu0 %v545
      %681 = vmatmul.bf16.gmra.mxu0 %v343
      %v682 = vpop.f32.mrf.mxu0
      %v683 = vadd.f32 0.0, %v682
      %v684 = vpop.f32.mrf.mxu0
      %685 = vdwg.mxu0
      %686 = vmatpush.bf16.msra.mxu0 %v605
      %687 = vmatpush.bf16.msra.mxu0 %v601
      %688 = vmatpush.bf16.msra.mxu0 %v597
      %689 = vmatpush.bf16.msra.mxu0 %v593
      %690 = vmatpush.bf16.msra.mxu0 %v589
      %691 = vmatpush.bf16.msra.mxu0 %v585
      %692 = vmatpush.bf16.msra.mxu0 %v581
      %693 = vmatpush.bf16.msra.mxu0 %v577
      %694 = vmatmul.bf16.gmra.mxu0 %v350
      %v695 = vpop.f32.mrf.mxu0
      %v696 = vadd.f32 %v683, %v695
      %v697 = vpop.f32.mrf.mxu0
      %698 = vdwg.mxu0
      %699 = vmatpush.bf16.msra.mxu0 %v574
      %700 = vmatpush.bf16.msra.mxu0 %v570
      %701 = vmatpush.bf16.msra.mxu0 %v566
      %702 = vmatpush.bf16.msra.mxu0 %v562
      %703 = vmatpush.bf16.msra.mxu0 %v558
      %704 = vmatpush.bf16.msra.mxu0 %v554
      %705 = vmatpush.bf16.msra.mxu0 %v550
      %706 = vmatpush.bf16.msra.mxu0 %v546
      %707 = vmatmul.bf16.gmra.mxu0 %v343
      %v708 = vpop.f32.mrf.mxu0
      %v709 = vadd.f32 0.0, %v708
      %v710 = vpop.f32.mrf.mxu0
      %711 = vdwg.mxu0
      %712 = vmatpush.bf16.msra.mxu0 %v606
      %713 = vmatpush.bf16.msra.mxu0 %v602
      %714 = vmatpush.bf16.msra.mxu0 %v598
      %715 = vmatpush.bf16.msra.mxu0 %v594
      %716 = vmatpush.bf16.msra.mxu0 %v590
      %717 = vmatpush.bf16.msra.mxu0 %v586
      %718 = vmatpush.bf16.msra.mxu0 %v582
      %719 = vmatpush.bf16.msra.mxu0 %v578
      %720 = vmatmul.bf16.gmra.mxu0 %v350
      %v721 = vpop.f32.mrf.mxu0
      %v722 = vadd.f32 %v709, %v721
      %v723 = vpop.f32.mrf.mxu0
      %724 = vdwg.mxu0
      %725 = vmatpush.bf16.msra.mxu0 %v575
      %726 = vmatpush.bf16.msra.mxu0 %v571
      %727 = vmatpush.bf16.msra.mxu0 %v567
      %728 = vmatpush.bf16.msra.mxu0 %v563
      %729 = vmatpush.bf16.msra.mxu0 %v559
      %730 = vmatpush.bf16.msra.mxu0 %v555
      %731 = vmatpush.bf16.msra.mxu0 %v551
      %732 = vmatpush.bf16.msra.mxu0 %v547
      %733 = vmatmul.bf16.gmra.mxu0 %v343
      %v734 = vpop.f32.mrf.mxu0
      %v735 = vadd.f32 0.0, %v734
      %v736 = vpop.f32.mrf.mxu0
      %737 = vdwg.mxu0
      %738 = vmatpush.bf16.msra.mxu0 %v607
      %739 = vmatpush.bf16.msra.mxu0 %v603
      %740 = vmatpush.bf16.msra.mxu0 %v599
      %741 = vmatpush.bf16.msra.mxu0 %v595
      %742 = vmatpush.bf16.msra.mxu0 %v591
      %743 = vmatpush.bf16.msra.mxu0 %v587
      %744 = vmatpush.bf16.msra.mxu0 %v583
      %745 = vmatpush.bf16.msra.mxu0 %v579
      %746 = vmatmul.bf16.gmra.mxu0 %v350
      %v747 = vpop.f32.mrf.mxu0
      %v748 = vadd.f32 %v735, %v747
      %v749 = vpop.f32.mrf.mxu0
      %750 = vdwg.mxu0
      %751 = vmatpush.bf16.msra.mxu0 %v576
      %752 = vmatpush.bf16.msra.mxu0 %v572
      %753 = vmatpush.bf16.msra.mxu0 %v568
      %754 = vmatpush.bf16.msra.mxu0 %v564
      %755 = vmatpush.bf16.msra.mxu0 %v560
      %756 = vmatpush.bf16.msra.mxu0 %v556
      %757 = vmatpush.bf16.msra.mxu0 %v552
      %758 = vmatpush.bf16.msra.mxu0 %v548
      %759 = vmatmul.bf16.gmra.mxu0 %v343
      %v760 = vpop.f32.mrf.mxu0
      %v761 = vadd.f32 0.0, %v760
      %v762 = vpop.f32.mrf.mxu0
      %763 = vdwg.mxu0
      %764 = vmatpush.bf16.msra.mxu0 %v608
      %765 = vmatpush.bf16.msra.mxu0 %v604
      %766 = vmatpush.bf16.msra.mxu0 %v600
      %767 = vmatpush.bf16.msra.mxu0 %v596
      %768 = vmatpush.bf16.msra.mxu0 %v592
      %769 = vmatpush.bf16.msra.mxu0 %v588
      %770 = vmatpush.bf16.msra.mxu0 %v584
      %771 = vmatpush.bf16.msra.mxu0 %v580
      %772 = vmatmul.bf16.gmra.mxu0 %v350
      %v773 = vpop.f32.mrf.mxu0
      %v774 = vadd.f32 %v761, %v773
      %v775 = vpop.f32.mrf.mxu0
      %776 = vdwg.mxu0
      %v777 = vpack.c.b16 %v331, %v331
      %v778 = vpack.c.b16 %v332, %v332
      %v845 = vunpack.c.l.b16 %v199
      %v846 = vunpack.c.h.b16 %v199
      %v847 = vunpack.c.l.b16 %v200
      %v848 = vunpack.c.h.b16 %v200
      %v849 = vunpack.c.l.b16 %v201
      %v850 = vunpack.c.h.b16 %v201
      %v851 = vunpack.c.l.b16 %v202
      %v852 = vunpack.c.h.b16 %v202
      %v853 = vunpack.c.l.b16 %v203
      %v854 = vunpack.c.h.b16 %v203
      %v855 = vunpack.c.l.b16 %v204
      %v856 = vunpack.c.h.b16 %v204
      %v857 = vunpack.c.l.b16 %v205
      %v858 = vunpack.c.h.b16 %v205
      %v859 = vunpack.c.l.b16 %v206
      %v860 = vunpack.c.h.b16 %v206
      %v861 = vunpack.c.l.b16 %v207
      %v862 = vunpack.c.h.b16 %v207
      %v863 = vunpack.c.l.b16 %v208
      %v864 = vunpack.c.h.b16 %v208
      %v865 = vunpack.c.l.b16 %v209
      %v866 = vunpack.c.h.b16 %v209
      %v867 = vunpack.c.l.b16 %v210
      %v868 = vunpack.c.h.b16 %v210
      %v869 = vunpack.c.l.b16 %v211
      %v870 = vunpack.c.h.b16 %v211
      %v871 = vunpack.c.l.b16 %v212
      %v872 = vunpack.c.h.b16 %v212
      %v873 = vunpack.c.l.b16 %v213
      %v874 = vunpack.c.h.b16 %v213
      %v875 = vunpack.c.l.b16 %v214
      %v876 = vunpack.c.h.b16 %v214
      %v877 = vunpack.c.l.b16 %v215
      %v878 = vunpack.c.h.b16 %v215
      %v879 = vunpack.c.l.b16 %v216
      %v880 = vunpack.c.h.b16 %v216
      %v881 = vunpack.c.l.b16 %v217
      %v882 = vunpack.c.h.b16 %v217
      %v883 = vunpack.c.l.b16 %v218
      %v884 = vunpack.c.h.b16 %v218
      %v885 = vunpack.c.l.b16 %v219
      %v886 = vunpack.c.h.b16 %v219
      %v887 = vunpack.c.l.b16 %v220
      %v888 = vunpack.c.h.b16 %v220
      %v889 = vunpack.c.l.b16 %v221
      %v890 = vunpack.c.h.b16 %v221
      %v891 = vunpack.c.l.b16 %v222
      %v892 = vunpack.c.h.b16 %v222
      %v893 = vunpack.c.l.b16 %v223
      %v894 = vunpack.c.h.b16 %v223
      %v895 = vunpack.c.l.b16 %v224
      %v896 = vunpack.c.h.b16 %v224
      %v897 = vunpack.c.l.b16 %v225
      %v898 = vunpack.c.h.b16 %v225
      %v899 = vunpack.c.l.b16 %v226
      %v900 = vunpack.c.h.b16 %v226
      %v901 = vunpack.c.l.b16 %v227
      %v902 = vunpack.c.h.b16 %v227
      %v903 = vunpack.c.l.b16 %v228
      %v904 = vunpack.c.h.b16 %v228
      %v905 = vunpack.c.l.b16 %v229
      %v906 = vunpack.c.h.b16 %v229
      %v907 = vunpack.c.l.b16 %v230
      %v908 = vunpack.c.h.b16 %v230
      %v909 = vunpack.c.l.b16 %v231
      %v910 = vunpack.c.h.b16 %v231
      %v911 = vunpack.c.l.b16 %v232
      %v912 = vunpack.c.h.b16 %v232
      %v913 = vunpack.c.l.b16 %v233
      %v914 = vunpack.c.h.b16 %v233
      %v915 = vunpack.c.l.b16 %v234
      %v916 = vunpack.c.h.b16 %v234
      %v917 = vunpack.c.l.b16 %v235
      %v918 = vunpack.c.h.b16 %v235
      %v919 = vunpack.c.l.b16 %v236
      %v920 = vunpack.c.h.b16 %v236
      %v921 = vunpack.c.l.b16 %v237
      %v922 = vunpack.c.h.b16 %v237
      %v923 = vunpack.c.l.b16 %v238
      %v924 = vunpack.c.h.b16 %v238
      %v925 = vunpack.c.l.b16 %v239
      %v926 = vunpack.c.h.b16 %v239
      %v927 = vunpack.c.l.b16 %v240
      %v928 = vunpack.c.h.b16 %v240
      %v929 = vunpack.c.l.b16 %v241
      %v930 = vunpack.c.h.b16 %v241
      %v931 = vunpack.c.l.b16 %v242
      %v932 = vunpack.c.h.b16 %v242
      %v933 = vunpack.c.l.b16 %v243
      %v934 = vunpack.c.h.b16 %v243
      %v935 = vunpack.c.l.b16 %v244
      %v936 = vunpack.c.h.b16 %v244
      %v937 = vunpack.c.l.b16 %v245
      %v938 = vunpack.c.h.b16 %v245
      %v939 = vunpack.c.l.b16 %v246
      %v940 = vunpack.c.h.b16 %v246
      %v941 = vunpack.c.l.b16 %v247
      %v942 = vunpack.c.h.b16 %v247
      %v943 = vunpack.c.l.b16 %v248
      %v944 = vunpack.c.h.b16 %v248
      %v945 = vunpack.c.l.b16 %v249
      %v946 = vunpack.c.h.b16 %v249
      %v947 = vunpack.c.l.b16 %v250
      %v948 = vunpack.c.h.b16 %v250
      %v949 = vunpack.c.l.b16 %v251
      %v950 = vunpack.c.h.b16 %v251
      %v951 = vunpack.c.l.b16 %v252
      %v952 = vunpack.c.h.b16 %v252
      %v953 = vunpack.c.l.b16 %v253
      %v954 = vunpack.c.h.b16 %v253
      %v955 = vunpack.c.l.b16 %v254
      %v956 = vunpack.c.h.b16 %v254
      %v957 = vunpack.c.l.b16 %v255
      %v958 = vunpack.c.h.b16 %v255
      %v959 = vunpack.c.l.b16 %v256
      %v960 = vunpack.c.h.b16 %v256
      %v961 = vunpack.c.l.b16 %v257
      %v962 = vunpack.c.h.b16 %v257
      %v963 = vunpack.c.l.b16 %v258
      %v964 = vunpack.c.h.b16 %v258
      %v965 = vunpack.c.l.b16 %v259
      %v966 = vunpack.c.h.b16 %v259
      %v967 = vunpack.c.l.b16 %v260
      %v968 = vunpack.c.h.b16 %v260
      %v969 = vunpack.c.l.b16 %v261
      %v970 = vunpack.c.h.b16 %v261
      %v971 = vunpack.c.l.b16 %v262
      %v972 = vunpack.c.h.b16 %v262
      %v973 = vpack.c.b16 %v849, %v845
      %v974 = vpack.c.b16 %v850, %v846
      %v975 = vpack.c.b16 %v851, %v847
      %v976 = vpack.c.b16 %v852, %v848
      %v977 = vpack.c.b16 %v857, %v853
      %v978 = vpack.c.b16 %v858, %v854
      %v979 = vpack.c.b16 %v859, %v855
      %v980 = vpack.c.b16 %v860, %v856
      %v981 = vpack.c.b16 %v865, %v861
      %v982 = vpack.c.b16 %v866, %v862
      %v983 = vpack.c.b16 %v867, %v863
      %v984 = vpack.c.b16 %v868, %v864
      %v985 = vpack.c.b16 %v873, %v869
      %v986 = vpack.c.b16 %v874, %v870
      %v987 = vpack.c.b16 %v875, %v871
      %v988 = vpack.c.b16 %v876, %v872
      %v989 = vpack.c.b16 %v881, %v877
      %v990 = vpack.c.b16 %v882, %v878
      %v991 = vpack.c.b16 %v883, %v879
      %v992 = vpack.c.b16 %v884, %v880
      %v993 = vpack.c.b16 %v889, %v885
      %v994 = vpack.c.b16 %v890, %v886
      %v995 = vpack.c.b16 %v891, %v887
      %v996 = vpack.c.b16 %v892, %v888
      %v997 = vpack.c.b16 %v897, %v893
      %v998 = vpack.c.b16 %v898, %v894
      %v999 = vpack.c.b16 %v899, %v895
      %v1000 = vpack.c.b16 %v900, %v896
      %v1001 = vpack.c.b16 %v905, %v901
      %v1002 = vpack.c.b16 %v906, %v902
      %v1003 = vpack.c.b16 %v907, %v903
      %v1004 = vpack.c.b16 %v908, %v904
      %v1005 = vpack.c.b16 %v913, %v909
      %v1006 = vpack.c.b16 %v914, %v910
      %v1007 = vpack.c.b16 %v915, %v911
      %v1008 = vpack.c.b16 %v916, %v912
      %v1009 = vpack.c.b16 %v921, %v917
      %v1010 = vpack.c.b16 %v922, %v918
      %v1011 = vpack.c.b16 %v923, %v919
      %v1012 = vpack.c.b16 %v924, %v920
      %v1013 = vpack.c.b16 %v929, %v925
      %v1014 = vpack.c.b16 %v930, %v926
      %v1015 = vpack.c.b16 %v931, %v927
      %v1016 = vpack.c.b16 %v932, %v928
      %v1017 = vpack.c.b16 %v937, %v933
      %v1018 = vpack.c.b16 %v938, %v934
      %v1019 = vpack.c.b16 %v939, %v935
      %v1020 = vpack.c.b16 %v940, %v936
      %v1021 = vpack.c.b16 %v945, %v941
      %v1022 = vpack.c.b16 %v946, %v942
      %v1023 = vpack.c.b16 %v947, %v943
      %v1024 = vpack.c.b16 %v948, %v944
      %v1025 = vpack.c.b16 %v953, %v949
      %v1026 = vpack.c.b16 %v954, %v950
      %v1027 = vpack.c.b16 %v955, %v951
      %v1028 = vpack.c.b16 %v956, %v952
      %v1029 = vpack.c.b16 %v961, %v957
      %v1030 = vpack.c.b16 %v962, %v958
      %v1031 = vpack.c.b16 %v963, %v959
      %v1032 = vpack.c.b16 %v964, %v960
      %v1033 = vpack.c.b16 %v969, %v965
      %v1034 = vpack.c.b16 %v970, %v966
      %v1035 = vpack.c.b16 %v971, %v967
      %v1036 = vpack.c.b16 %v972, %v968
      %1101 = vmatpush.bf16.msra.mxu0 %v1001
      %1102 = vmatpush.bf16.msra.mxu0 %v997
      %1103 = vmatpush.bf16.msra.mxu0 %v993
      %1104 = vmatpush.bf16.msra.mxu0 %v989
      %1105 = vmatpush.bf16.msra.mxu0 %v985
      %1106 = vmatpush.bf16.msra.mxu0 %v981
      %1107 = vmatpush.bf16.msra.mxu0 %v977
      %1108 = vmatpush.bf16.msra.mxu0 %v973
      %1109 = vmatmul.bf16.gmra.mxu0 %v777
      %v1110 = vpop.f32.mrf.mxu0
      %v1111 = vadd.f32 %v696, %v1110
      %v1112 = vpop.f32.mrf.mxu0
      %1113 = vdwg.mxu0
      %1114 = vmatpush.bf16.msra.mxu0 %v1033
      %1115 = vmatpush.bf16.msra.mxu0 %v1029
      %1116 = vmatpush.bf16.msra.mxu0 %v1025
      %1117 = vmatpush.bf16.msra.mxu0 %v1021
      %1118 = vmatpush.bf16.msra.mxu0 %v1017
      %1119 = vmatpush.bf16.msra.mxu0 %v1013
      %1120 = vmatpush.bf16.msra.mxu0 %v1009
      %1121 = vmatpush.bf16.msra.mxu0 %v1005
      %1122 = vmatmul.bf16.gmra.mxu0 %v778
      %v1123 = vpop.f32.mrf.mxu0
      %v1124 = vadd.f32 %v1111, %v1123
      %v1125 = vpop.f32.mrf.mxu0
      %1126 = vdwg.mxu0
      %1127 = vmatpush.bf16.msra.mxu0 %v1002
      %1128 = vmatpush.bf16.msra.mxu0 %v998
      %1129 = vmatpush.bf16.msra.mxu0 %v994
      %1130 = vmatpush.bf16.msra.mxu0 %v990
      %1131 = vmatpush.bf16.msra.mxu0 %v986
      %1132 = vmatpush.bf16.msra.mxu0 %v982
      %1133 = vmatpush.bf16.msra.mxu0 %v978
      %1134 = vmatpush.bf16.msra.mxu0 %v974
      %1135 = vmatmul.bf16.gmra.mxu0 %v777
      %v1136 = vpop.f32.mrf.mxu0
      %v1137 = vadd.f32 %v722, %v1136
      %v1138 = vpop.f32.mrf.mxu0
      %1139 = vdwg.mxu0
      %1140 = vmatpush.bf16.msra.mxu0 %v1034
      %1141 = vmatpush.bf16.msra.mxu0 %v1030
      %1142 = vmatpush.bf16.msra.mxu0 %v1026
      %1143 = vmatpush.bf16.msra.mxu0 %v1022
      %1144 = vmatpush.bf16.msra.mxu0 %v1018
      %1145 = vmatpush.bf16.msra.mxu0 %v1014
      %1146 = vmatpush.bf16.msra.mxu0 %v1010
      %1147 = vmatpush.bf16.msra.mxu0 %v1006
      %1148 = vmatmul.bf16.gmra.mxu0 %v778
      %v1149 = vpop.f32.mrf.mxu0
      %v1150 = vadd.f32 %v1137, %v1149
      %v1151 = vpop.f32.mrf.mxu0
      %1152 = vdwg.mxu0
      %1153 = vmatpush.bf16.msra.mxu0 %v1003
      %1154 = vmatpush.bf16.msra.mxu0 %v999
      %1155 = vmatpush.bf16.msra.mxu0 %v995
      %1156 = vmatpush.bf16.msra.mxu0 %v991
      %1157 = vmatpush.bf16.msra.mxu0 %v987
      %1158 = vmatpush.bf16.msra.mxu0 %v983
      %1159 = vmatpush.bf16.msra.mxu0 %v979
      %1160 = vmatpush.bf16.msra.mxu0 %v975
      %1161 = vmatmul.bf16.gmra.mxu0 %v777
      %v1162 = vpop.f32.mrf.mxu0
      %v1163 = vadd.f32 %v748, %v1162
      %v1164 = vpop.f32.mrf.mxu0
      %1165 = vdwg.mxu0
      %1166 = vmatpush.bf16.msra.mxu0 %v1035
      %1167 = vmatpush.bf16.msra.mxu0 %v1031
      %1168 = vmatpush.bf16.msra.mxu0 %v1027
      %1169 = vmatpush.bf16.msra.mxu0 %v1023
      %1170 = vmatpush.bf16.msra.mxu0 %v1019
      %1171 = vmatpush.bf16.msra.mxu0 %v1015
      %1172 = vmatpush.bf16.msra.mxu0 %v1011
      %1173 = vmatpush.bf16.msra.mxu0 %v1007
      %1174 = vmatmul.bf16.gmra.mxu0 %v778
      %v1175 = vpop.f32.mrf.mxu0
      %v1176 = vadd.f32 %v1163, %v1175
      %v1177 = vpop.f32.mrf.mxu0
      %1178 = vdwg.mxu0
      %1179 = vmatpush.bf16.msra.mxu0 %v1004
      %1180 = vmatpush.bf16.msra.mxu0 %v1000
      %1181 = vmatpush.bf16.msra.mxu0 %v996
      %1182 = vmatpush.bf16.msra.mxu0 %v992
      %1183 = vmatpush.bf16.msra.mxu0 %v988
      %1184 = vmatpush.bf16.msra.mxu0 %v984
      %1185 = vmatpush.bf16.msra.mxu0 %v980
      %1186 = vmatpush.bf16.msra.mxu0 %v976
      %1187 = vmatmul.bf16.gmra.mxu0 %v777
      %v1188 = vpop.f32.mrf.mxu0
      %v1189 = vadd.f32 %v774, %v1188
      %v1190 = vpop.f32.mrf.mxu0
      %1191 = vdwg.mxu0
      %1192 = vmatpush.bf16.msra.mxu0 %v1036
      %1193 = vmatpush.bf16.msra.mxu0 %v1032
      %1194 = vmatpush.bf16.msra.mxu0 %v1028
      %1195 = vmatpush.bf16.msra.mxu0 %v1024
      %1196 = vmatpush.bf16.msra.mxu0 %v1020
      %1197 = vmatpush.bf16.msra.mxu0 %v1016
      %1198 = vmatpush.bf16.msra.mxu0 %v1012
      %1199 = vmatpush.bf16.msra.mxu0 %v1008
      %1200 = vmatmul.bf16.gmra.mxu0 %v778
      %v1201 = vpop.f32.mrf.mxu0
      %v1202 = vadd.f32 %v1189, %v1201
      %v1203 = vpop.f32.mrf.mxu0
      %1204 = vdwg.mxu0
      %v1205 = vld [vmem:[%s192] sm:$0xee]
      %s1206 = scalar_lea.vmem %s1, 1024
      %v1207 = vld [vmem:[%s1206] sm:$0xff]
      %v1208 = vld [vmem:[%s1206 + $0x8] sm:$0xff]
      %v1209 = vld [vmem:[%s1206 + $0x10] sm:$0xff]
      %v1210 = vld [vmem:[%s1206 + $0x18] sm:$0xff]
      %v1211 = vld [vmem:[%s1206 + $0x20] sm:$0xff]
      %v1212 = vld [vmem:[%s1206 + $0x28] sm:$0xff]
      %v1213 = vld [vmem:[%s1206 + $0x30] sm:$0xff]
      %v1214 = vld [vmem:[%s1206 + $0x38] sm:$0xff]
      %v1215 = vld [vmem:[%s1206 + $0x40] sm:$0xff]
      %v1216 = vld [vmem:[%s1206 + $0x48] sm:$0xff]
      %v1217 = vld [vmem:[%s1206 + $0x50] sm:$0xff]
      %v1218 = vld [vmem:[%s1206 + $0x58] sm:$0xff]
      %v1219 = vld [vmem:[%s1206 + $0x60] sm:$0xff]
      %v1220 = vld [vmem:[%s1206 + $0x68] sm:$0xff]
      %v1221 = vld [vmem:[%s1206 + $0x70] sm:$0xff]
      %v1222 = vld [vmem:[%s1206 + $0x78] sm:$0xff]
      %v1223 = vld [vmem:[%s1206 + $0x80] sm:$0xff]
      %v1224 = vld [vmem:[%s1206 + $0x88] sm:$0xff]
      %v1225 = vld [vmem:[%s1206 + $0x90] sm:$0xff]
      %v1226 = vld [vmem:[%s1206 + $0x98] sm:$0xff]
      %v1227 = vld [vmem:[%s1206 + $0xa0] sm:$0xff]
      %v1228 = vld [vmem:[%s1206 + $0xa8] sm:$0xff]
      %v1229 = vld [vmem:[%s1206 + $0xb0] sm:$0xff]
      %v1230 = vld [vmem:[%s1206 + $0xb8] sm:$0xff]
      %v1231 = vld [vmem:[%s1206 + $0xc0] sm:$0xff]
      %v1232 = vld [vmem:[%s1206 + $0xc8] sm:$0xff]
      %v1233 = vld [vmem:[%s1206 + $0xd0] sm:$0xff]
      %v1234 = vld [vmem:[%s1206 + $0xd8] sm:$0xff]
      %v1235 = vld [vmem:[%s1206 + $0xe0] sm:$0xff]
      %v1236 = vld [vmem:[%s1206 + $0xe8] sm:$0xff]
      %v1237 = vld [vmem:[%s1206 + $0xf0] sm:$0xff]
      %v1238 = vld [vmem:[%s1206 + $0xf8] sm:$0xff]
      %v1239 = vld [vmem:[%s1206 + $0x100] sm:$0xff]
      %v1240 = vld [vmem:[%s1206 + $0x108] sm:$0xff]
      %v1241 = vld [vmem:[%s1206 + $0x110] sm:$0xff]
      %v1242 = vld [vmem:[%s1206 + $0x118] sm:$0xff]
      %v1243 = vld [vmem:[%s1206 + $0x120] sm:$0xff]
      %v1244 = vld [vmem:[%s1206 + $0x128] sm:$0xff]
      %v1245 = vld [vmem:[%s1206 + $0x130] sm:$0xff]
      %v1246 = vld [vmem:[%s1206 + $0x138] sm:$0xff]
      %v1247 = vld [vmem:[%s1206 + $0x140] sm:$0xff]
      %v1248 = vld [vmem:[%s1206 + $0x148] sm:$0xff]
      %v1249 = vld [vmem:[%s1206 + $0x150] sm:$0xff]
      %v1250 = vld [vmem:[%s1206 + $0x158] sm:$0xff]
      %v1251 = vld [vmem:[%s1206 + $0x160] sm:$0xff]
      %v1252 = vld [vmem:[%s1206 + $0x168] sm:$0xff]
      %v1253 = vld [vmem:[%s1206 + $0x170] sm:$0xff]
      %v1254 = vld [vmem:[%s1206 + $0x178] sm:$0xff]
      %v1255 = vld [vmem:[%s1206 + $0x180] sm:$0xff]
      %v1256 = vld [vmem:[%s1206 + $0x188] sm:$0xff]
      %v1257 = vld [vmem:[%s1206 + $0x190] sm:$0xff]
      %v1258 = vld [vmem:[%s1206 + $0x198] sm:$0xff]
      %v1259 = vld [vmem:[%s1206 + $0x1a0] sm:$0xff]
      %v1260 = vld [vmem:[%s1206 + $0x1a8] sm:$0xff]
      %v1261 = vld [vmem:[%s1206 + $0x1b0] sm:$0xff]
      %v1262 = vld [vmem:[%s1206 + $0x1b8] sm:$0xff]
      %v1263 = vld [vmem:[%s1206 + $0x1c0] sm:$0xff]
      %v1264 = vld [vmem:[%s1206 + $0x1c8] sm:$0xff]
      %v1265 = vld [vmem:[%s1206 + $0x1d0] sm:$0xff]
      %v1266 = vld [vmem:[%s1206 + $0x1d8] sm:$0xff]
      %v1267 = vld [vmem:[%s1206 + $0x1e0] sm:$0xff]
      %v1268 = vld [vmem:[%s1206 + $0x1e8] sm:$0xff]
      %v1269 = vld [vmem:[%s1206 + $0x1f0] sm:$0xff]
      %v1270 = vld [vmem:[%s1206 + $0x1f8] sm:$0xff]
      %v1272 = vunpack.c.l.b16 %v1205
      %v1273 = vunpack.c.h.b16 %v1205
      %v1274 = vpack.c.b16 %v333, %v1272
      %v1275 = vpack.c.b16 %v334, %v1273
      %v1276 = vrot.slane %v1274, 1
      %v1277 = vrot.slane %v1275, 1
      %v1344 = vunpack.c.l.b16 %v1207
      %v1345 = vunpack.c.h.b16 %v1207
      %v1346 = vunpack.c.l.b16 %v1208
      %v1347 = vunpack.c.h.b16 %v1208
      %v1348 = vunpack.c.l.b16 %v1209
      %v1349 = vunpack.c.h.b16 %v1209
      %v1350 = vunpack.c.l.b16 %v1210
      %v1351 = vunpack.c.h.b16 %v1210
      %v1352 = vunpack.c.l.b16 %v1211
      %v1353 = vunpack.c.h.b16 %v1211
      %v1354 = vunpack.c.l.b16 %v1212
      %v1355 = vunpack.c.h.b16 %v1212
      %v1356 = vunpack.c.l.b16 %v1213
      %v1357 = vunpack.c.h.b16 %v1213
      %v1358 = vunpack.c.l.b16 %v1214
      %v1359 = vunpack.c.h.b16 %v1214
      %v1360 = vunpack.c.l.b16 %v1215
      %v1361 = vunpack.c.h.b16 %v1215
      %v1362 = vunpack.c.l.b16 %v1216
      %v1363 = vunpack.c.h.b16 %v1216
      %v1364 = vunpack.c.l.b16 %v1217
      %v1365 = vunpack.c.h.b16 %v1217
      %v1366 = vunpack.c.l.b16 %v1218
      %v1367 = vunpack.c.h.b16 %v1218
      %v1368 = vunpack.c.l.b16 %v1219
      %v1369 = vunpack.c.h.b16 %v1219
      %v1370 = vunpack.c.l.b16 %v1220
      %v1371 = vunpack.c.h.b16 %v1220
      %v1372 = vunpack.c.l.b16 %v1221
      %v1373 = vunpack.c.h.b16 %v1221
      %v1374 = vunpack.c.l.b16 %v1222
      %v1375 = vunpack.c.h.b16 %v1222
      %v1376 = vunpack.c.l.b16 %v1223
      %v1377 = vunpack.c.h.b16 %v1223
      %v1378 = vunpack.c.l.b16 %v1224
      %v1379 = vunpack.c.h.b16 %v1224
      %v1380 = vunpack.c.l.b16 %v1225
      %v1381 = vunpack.c.h.b16 %v1225
      %v1382 = vunpack.c.l.b16 %v1226
      %v1383 = vunpack.c.h.b16 %v1226
      %v1384 = vunpack.c.l.b16 %v1227
      %v1385 = vunpack.c.h.b16 %v1227
      %v1386 = vunpack.c.l.b16 %v1228
      %v1387 = vunpack.c.h.b16 %v1228
      %v1388 = vunpack.c.l.b16 %v1229
      %v1389 = vunpack.c.h.b16 %v1229
      %v1390 = vunpack.c.l.b16 %v1230
      %v1391 = vunpack.c.h.b16 %v1230
      %v1392 = vunpack.c.l.b16 %v1231
      %v1393 = vunpack.c.h.b16 %v1231
      %v1394 = vunpack.c.l.b16 %v1232
      %v1395 = vunpack.c.h.b16 %v1232
      %v1396 = vunpack.c.l.b16 %v1233
      %v1397 = vunpack.c.h.b16 %v1233
      %v1398 = vunpack.c.l.b16 %v1234
      %v1399 = vunpack.c.h.b16 %v1234
      %v1400 = vunpack.c.l.b16 %v1235
      %v1401 = vunpack.c.h.b16 %v1235
      %v1402 = vunpack.c.l.b16 %v1236
      %v1403 = vunpack.c.h.b16 %v1236
      %v1404 = vunpack.c.l.b16 %v1237
      %v1405 = vunpack.c.h.b16 %v1237
      %v1406 = vunpack.c.l.b16 %v1238
      %v1407 = vunpack.c.h.b16 %v1238
      %v1408 = vunpack.c.l.b16 %v1239
      %v1409 = vunpack.c.h.b16 %v1239
      %v1410 = vunpack.c.l.b16 %v1240
      %v1411 = vunpack.c.h.b16 %v1240
      %v1412 = vunpack.c.l.b16 %v1241
      %v1413 = vunpack.c.h.b16 %v1241
      %v1414 = vunpack.c.l.b16 %v1242
      %v1415 = vunpack.c.h.b16 %v1242
      %v1416 = vunpack.c.l.b16 %v1243
      %v1417 = vunpack.c.h.b16 %v1243
      %v1418 = vunpack.c.l.b16 %v1244
      %v1419 = vunpack.c.h.b16 %v1244
      %v1420 = vunpack.c.l.b16 %v1245
      %v1421 = vunpack.c.h.b16 %v1245
      %v1422 = vunpack.c.l.b16 %v1246
      %v1423 = vunpack.c.h.b16 %v1246
      %v1424 = vunpack.c.l.b16 %v1247
      %v1425 = vunpack.c.h.b16 %v1247
      %v1426 = vunpack.c.l.b16 %v1248
      %v1427 = vunpack.c.h.b16 %v1248
      %v1428 = vunpack.c.l.b16 %v1249
      %v1429 = vunpack.c.h.b16 %v1249
      %v1430 = vunpack.c.l.b16 %v1250
      %v1431 = vunpack.c.h.b16 %v1250
      %v1432 = vunpack.c.l.b16 %v1251
      %v1433 = vunpack.c.h.b16 %v1251
      %v1434 = vunpack.c.l.b16 %v1252
      %v1435 = vunpack.c.h.b16 %v1252
      %v1436 = vunpack.c.l.b16 %v1253
      %v1437 = vunpack.c.h.b16 %v1253
      %v1438 = vunpack.c.l.b16 %v1254
      %v1439 = vunpack.c.h.b16 %v1254
      %v1440 = vunpack.c.l.b16 %v1255
      %v1441 = vunpack.c.h.b16 %v1255
      %v1442 = vunpack.c.l.b16 %v1256
      %v1443 = vunpack.c.h.b16 %v1256
      %v1444 = vunpack.c.l.b16 %v1257
      %v1445 = vunpack.c.h.b16 %v1257
      %v1446 = vunpack.c.l.b16 %v1258
      %v1447 = vunpack.c.h.b16 %v1258
      %v1448 = vunpack.c.l.b16 %v1259
      %v1449 = vunpack.c.h.b16 %v1259
      %v1450 = vunpack.c.l.b16 %v1260
      %v1451 = vunpack.c.h.b16 %v1260
      %v1452 = vunpack.c.l.b16 %v1261
      %v1453 = vunpack.c.h.b16 %v1261
      %v1454 = vunpack.c.l.b16 %v1262
      %v1455 = vunpack.c.h.b16 %v1262
      %v1456 = vunpack.c.l.b16 %v1263
      %v1457 = vunpack.c.h.b16 %v1263
      %v1458 = vunpack.c.l.b16 %v1264
      %v1459 = vunpack.c.h.b16 %v1264
      %v1460 = vunpack.c.l.b16 %v1265
      %v1461 = vunpack.c.h.b16 %v1265
      %v1462 = vunpack.c.l.b16 %v1266
      %v1463 = vunpack.c.h.b16 %v1266
      %v1464 = vunpack.c.l.b16 %v1267
      %v1465 = vunpack.c.h.b16 %v1267
      %v1466 = vunpack.c.l.b16 %v1268
      %v1467 = vunpack.c.h.b16 %v1268
      %v1468 = vunpack.c.l.b16 %v1269
      %v1469 = vunpack.c.h.b16 %v1269
      %v1470 = vunpack.c.l.b16 %v1270
      %v1471 = vunpack.c.h.b16 %v1270
      %v1472 = vpack.c.b16 %v1348, %v1344
      %v1473 = vpack.c.b16 %v1349, %v1345
      %v1474 = vpack.c.b16 %v1350, %v1346
      %v1475 = vpack.c.b16 %v1351, %v1347
      %v1476 = vpack.c.b16 %v1356, %v1352
      %v1477 = vpack.c.b16 %v1357, %v1353
      %v1478 = vpack.c.b16 %v1358, %v1354
      %v1479 = vpack.c.b16 %v1359, %v1355
      %v1480 = vpack.c.b16 %v1364, %v1360
      %v1481 = vpack.c.b16 %v1365, %v1361
      %v1482 = vpack.c.b16 %v1366, %v1362
      %v1483 = vpack.c.b16 %v1367, %v1363
      %v1484 = vpack.c.b16 %v1372, %v1368
      %v1485 = vpack.c.b16 %v1373, %v1369
      %v1486 = vpack.c.b16 %v1374, %v1370
      %v1487 = vpack.c.b16 %v1375, %v1371
      %v1488 = vpack.c.b16 %v1380, %v1376
      %v1489 = vpack.c.b16 %v1381, %v1377
      %v1490 = vpack.c.b16 %v1382, %v1378
      %v1491 = vpack.c.b16 %v1383, %v1379
      %v1492 = vpack.c.b16 %v1388, %v1384
      %v1493 = vpack.c.b16 %v1389, %v1385
      %v1494 = vpack.c.b16 %v1390, %v1386
      %v1495 = vpack.c.b16 %v1391, %v1387
      %v1496 = vpack.c.b16 %v1396, %v1392
      %v1497 = vpack.c.b16 %v1397, %v1393
      %v1498 = vpack.c.b16 %v1398, %v1394
      %v1499 = vpack.c.b16 %v1399, %v1395
      %v1500 = vpack.c.b16 %v1404, %v1400
      %v1501 = vpack.c.b16 %v1405, %v1401
      %v1502 = vpack.c.b16 %v1406, %v1402
      %v1503 = vpack.c.b16 %v1407, %v1403
      %v1504 = vpack.c.b16 %v1412, %v1408
      %v1505 = vpack.c.b16 %v1413, %v1409
      %v1506 = vpack.c.b16 %v1414, %v1410
      %v1507 = vpack.c.b16 %v1415, %v1411
      %v1508 = vpack.c.b16 %v1420, %v1416
      %v1509 = vpack.c.b16 %v1421, %v1417
      %v1510 = vpack.c.b16 %v1422, %v1418
      %v1511 = vpack.c.b16 %v1423, %v1419
      %v1512 = vpack.c.b16 %v1428, %v1424
      %v1513 = vpack.c.b16 %v1429, %v1425
      %v1514 = vpack.c.b16 %v1430, %v1426
      %v1515 = vpack.c.b16 %v1431, %v1427
      %v1516 = vpack.c.b16 %v1436, %v1432
      %v1517 = vpack.c.b16 %v1437, %v1433
      %v1518 = vpack.c.b16 %v1438, %v1434
      %v1519 = vpack.c.b16 %v1439, %v1435
      %v1520 = vpack.c.b16 %v1444, %v1440
      %v1521 = vpack.c.b16 %v1445, %v1441
      %v1522 = vpack.c.b16 %v1446, %v1442
      %v1523 = vpack.c.b16 %v1447, %v1443
      %v1524 = vpack.c.b16 %v1452, %v1448
      %v1525 = vpack.c.b16 %v1453, %v1449
      %v1526 = vpack.c.b16 %v1454, %v1450
      %v1527 = vpack.c.b16 %v1455, %v1451
      %v1528 = vpack.c.b16 %v1460, %v1456
      %v1529 = vpack.c.b16 %v1461, %v1457
      %v1530 = vpack.c.b16 %v1462, %v1458
      %v1531 = vpack.c.b16 %v1463, %v1459
      %v1532 = vpack.c.b16 %v1468, %v1464
      %v1533 = vpack.c.b16 %v1469, %v1465
      %v1534 = vpack.c.b16 %v1470, %v1466
      %v1535 = vpack.c.b16 %v1471, %v1467
      %1600 = vmatpush.bf16.msra.mxu0 %v1500
      %1601 = vmatpush.bf16.msra.mxu0 %v1496
      %1602 = vmatpush.bf16.msra.mxu0 %v1492
      %1603 = vmatpush.bf16.msra.mxu0 %v1488
      %1604 = vmatpush.bf16.msra.mxu0 %v1484
      %1605 = vmatpush.bf16.msra.mxu0 %v1480
      %1606 = vmatpush.bf16.msra.mxu0 %v1476
      %1607 = vmatpush.bf16.msra.mxu0 %v1472
      %1608 = vmatmul.bf16.gmra.mxu0 %v1276
      %v1609 = vpop.f32.mrf.mxu0
      %v1610 = vadd.f32 0.0, %v1609
      %v1611 = vpop.f32.mrf.mxu0
      %1612 = vdwg.mxu0
      %1613 = vmatpush.bf16.msra.mxu0 %v1532
      %1614 = vmatpush.bf16.msra.mxu0 %v1528
      %1615 = vmatpush.bf16.msra.mxu0 %v1524
      %1616 = vmatpush.bf16.msra.mxu0 %v1520
      %1617 = vmatpush.bf16.msra.mxu0 %v1516
      %1618 = vmatpush.bf16.msra.mxu0 %v1512
      %1619 = vmatpush.bf16.msra.mxu0 %v1508
      %1620 = vmatpush.bf16.msra.mxu0 %v1504
      %1621 = vmatmul.bf16.gmra.mxu0 %v1277
      %v1622 = vpop.f32.mrf.mxu0
      %v1623 = vadd.f32 %v1610, %v1622
      %v1624 = vpop.f32.mrf.mxu0
      %1625 = vdwg.mxu0
      %1626 = vmatpush.bf16.msra.mxu0 %v1501
      %1627 = vmatpush.bf16.msra.mxu0 %v1497
      %1628 = vmatpush.bf16.msra.mxu0 %v1493
      %1629 = vmatpush.bf16.msra.mxu0 %v1489
      %1630 = vmatpush.bf16.msra.mxu0 %v1485
      %1631 = vmatpush.bf16.msra.mxu0 %v1481
      %1632 = vmatpush.bf16.msra.mxu0 %v1477
      %1633 = vmatpush.bf16.msra.mxu0 %v1473
      %1634 = vmatmul.bf16.gmra.mxu0 %v1276
      %v1635 = vpop.f32.mrf.mxu0
      %v1636 = vadd.f32 0.0, %v1635
      %v1637 = vpop.f32.mrf.mxu0
      %1638 = vdwg.mxu0
      %1639 = vmatpush.bf16.msra.mxu0 %v1533
      %1640 = vmatpush.bf16.msra.mxu0 %v1529
      %1641 = vmatpush.bf16.msra.mxu0 %v1525
      %1642 = vmatpush.bf16.msra.mxu0 %v1521
      %1643 = vmatpush.bf16.msra.mxu0 %v1517
      %1644 = vmatpush.bf16.msra.mxu0 %v1513
      %1645 = vmatpush.bf16.msra.mxu0 %v1509
      %1646 = vmatpush.bf16.msra.mxu0 %v1505
      %1647 = vmatmul.bf16.gmra.mxu0 %v1277
      %v1648 = vpop.f32.mrf.mxu0
      %v1649 = vadd.f32 %v1636, %v1648
      %v1650 = vpop.f32.mrf.mxu0
      %1651 = vdwg.mxu0
      %1652 = vmatpush.bf16.msra.mxu0 %v1502
      %1653 = vmatpush.bf16.msra.mxu0 %v1498
      %1654 = vmatpush.bf16.msra.mxu0 %v1494
      %1655 = vmatpush.bf16.msra.mxu0 %v1490
      %1656 = vmatpush.bf16.msra.mxu0 %v1486
      %1657 = vmatpush.bf16.msra.mxu0 %v1482
      %1658 = vmatpush.bf16.msra.mxu0 %v1478
      %1659 = vmatpush.bf16.msra.mxu0 %v1474
      %1660 = vmatmul.bf16.gmra.mxu0 %v1276
      %v1661 = vpop.f32.mrf.mxu0
      %v1662 = vadd.f32 0.0, %v1661
      %v1663 = vpop.f32.mrf.mxu0
      %1664 = vdwg.mxu0
      %1665 = vmatpush.bf16.msra.mxu0 %v1534
      %1666 = vmatpush.bf16.msra.mxu0 %v1530
      %1667 = vmatpush.bf16.msra.mxu0 %v1526
      %1668 = vmatpush.bf16.msra.mxu0 %v1522
      %1669 = vmatpush.bf16.msra.mxu0 %v1518
      %1670 = vmatpush.bf16.msra.mxu0 %v1514
      %1671 = vmatpush.bf16.msra.mxu0 %v1510
      %1672 = vmatpush.bf16.msra.mxu0 %v1506
      %1673 = vmatmul.bf16.gmra.mxu0 %v1277
      %v1674 = vpop.f32.mrf.mxu0
      %v1675 = vadd.f32 %v1662, %v1674
      %v1676 = vpop.f32.mrf.mxu0
      %1677 = vdwg.mxu0
      %1678 = vmatpush.bf16.msra.mxu0 %v1503
      %1679 = vmatpush.bf16.msra.mxu0 %v1499
      %1680 = vmatpush.bf16.msra.mxu0 %v1495
      %1681 = vmatpush.bf16.msra.mxu0 %v1491
      %1682 = vmatpush.bf16.msra.mxu0 %v1487
      %1683 = vmatpush.bf16.msra.mxu0 %v1483
      %1684 = vmatpush.bf16.msra.mxu0 %v1479
      %1685 = vmatpush.bf16.msra.mxu0 %v1475
      %1686 = vmatmul.bf16.gmra.mxu0 %v1276
      %v1687 = vpop.f32.mrf.mxu0
      %v1688 = vadd.f32 0.0, %v1687
      %v1689 = vpop.f32.mrf.mxu0
      %1690 = vdwg.mxu0
      %1691 = vmatpush.bf16.msra.mxu0 %v1535
      %1692 = vmatpush.bf16.msra.mxu0 %v1531
      %1693 = vmatpush.bf16.msra.mxu0 %v1527
      %1694 = vmatpush.bf16.msra.mxu0 %v1523
      %1695 = vmatpush.bf16.msra.mxu0 %v1519
      %1696 = vmatpush.bf16.msra.mxu0 %v1515
      %1697 = vmatpush.bf16.msra.mxu0 %v1511
      %1698 = vmatpush.bf16.msra.mxu0 %v1507
      %1699 = vmatmul.bf16.gmra.mxu0 %v1277
      %v1700 = vpop.f32.mrf.mxu0
      %v1701 = vadd.f32 %v1688, %v1700
      %v1702 = vpop.f32.mrf.mxu0
      %1703 = vdwg.mxu0
      %v1704 = vadd.f32 %v1124, %v1623
      %v1705 = vadd.f32 %v1150, %v1649
      %v1706 = vadd.f32 %v1176, %v1675
      %v1707 = vadd.f32 %v1202, %v1701
      %v1708 = vld [vmem:[%s2] sm:$0xff]
      %v1709 = vld [vmem:[%s2 + $0x8] sm:$0xff]
      %v1710 = vld [vmem:[%s2 + $0x10] sm:$0xff]
      %v1711 = vld [vmem:[%s2 + $0x18] sm:$0xff]
      %v1712 = vld [vmem:[%s2 + $0x20] sm:$0xff]
      %v1713 = vld [vmem:[%s2 + $0x28] sm:$0xff]
      %v1714 = vld [vmem:[%s2 + $0x30] sm:$0xff]
      %v1715 = vld [vmem:[%s2 + $0x38] sm:$0xff]
      %v1716 = vld [vmem:[%s2 + $0x40] sm:$0xff]
      %v1717 = vld [vmem:[%s2 + $0x48] sm:$0xff]
      %v1718 = vld [vmem:[%s2 + $0x50] sm:$0xff]
      %v1719 = vld [vmem:[%s2 + $0x58] sm:$0xff]
      %v1720 = vld [vmem:[%s2 + $0x60] sm:$0xff]
      %v1721 = vld [vmem:[%s2 + $0x68] sm:$0xff]
      %v1722 = vld [vmem:[%s2 + $0x70] sm:$0xff]
      %v1723 = vld [vmem:[%s2 + $0x78] sm:$0xff]
      %v1724 = vld [vmem:[%s2 + $0x80] sm:$0xff]
      %v1725 = vld [vmem:[%s2 + $0x88] sm:$0xff]
      %v1726 = vld [vmem:[%s2 + $0x90] sm:$0xff]
      %v1727 = vld [vmem:[%s2 + $0x98] sm:$0xff]
      %v1728 = vld [vmem:[%s2 + $0xa0] sm:$0xff]
      %v1729 = vld [vmem:[%s2 + $0xa8] sm:$0xff]
      %v1730 = vld [vmem:[%s2 + $0xb0] sm:$0xff]
      %v1731 = vld [vmem:[%s2 + $0xb8] sm:$0xff]
      %v1732 = vld [vmem:[%s2 + $0xc0] sm:$0xff]
      %v1733 = vld [vmem:[%s2 + $0xc8] sm:$0xff]
      %v1734 = vld [vmem:[%s2 + $0xd0] sm:$0xff]
      %v1735 = vld [vmem:[%s2 + $0xd8] sm:$0xff]
      %v1736 = vld [vmem:[%s2 + $0xe0] sm:$0xff]
      %v1737 = vld [vmem:[%s2 + $0xe8] sm:$0xff]
      %v1738 = vld [vmem:[%s2 + $0xf0] sm:$0xff]
      %v1739 = vld [vmem:[%s2 + $0xf8] sm:$0xff]
      %v1740 = vld [vmem:[%s2 + $0x100] sm:$0xff]
      %v1741 = vld [vmem:[%s2 + $0x108] sm:$0xff]
      %v1742 = vld [vmem:[%s2 + $0x110] sm:$0xff]
      %v1743 = vld [vmem:[%s2 + $0x118] sm:$0xff]
      %v1744 = vld [vmem:[%s2 + $0x120] sm:$0xff]
      %v1745 = vld [vmem:[%s2 + $0x128] sm:$0xff]
      %v1746 = vld [vmem:[%s2 + $0x130] sm:$0xff]
      %v1747 = vld [vmem:[%s2 + $0x138] sm:$0xff]
      %v1748 = vld [vmem:[%s2 + $0x140] sm:$0xff]
      %v1749 = vld [vmem:[%s2 + $0x148] sm:$0xff]
      %v1750 = vld [vmem:[%s2 + $0x150] sm:$0xff]
      %v1751 = vld [vmem:[%s2 + $0x158] sm:$0xff]
      %v1752 = vld [vmem:[%s2 + $0x160] sm:$0xff]
      %v1753 = vld [vmem:[%s2 + $0x168] sm:$0xff]
      %v1754 = vld [vmem:[%s2 + $0x170] sm:$0xff]
      %v1755 = vld [vmem:[%s2 + $0x178] sm:$0xff]
      %v1756 = vld [vmem:[%s2 + $0x180] sm:$0xff]
      %v1757 = vld [vmem:[%s2 + $0x188] sm:$0xff]
      %v1758 = vld [vmem:[%s2 + $0x190] sm:$0xff]
      %v1759 = vld [vmem:[%s2 + $0x198] sm:$0xff]
      %v1760 = vld [vmem:[%s2 + $0x1a0] sm:$0xff]
      %v1761 = vld [vmem:[%s2 + $0x1a8] sm:$0xff]
      %v1762 = vld [vmem:[%s2 + $0x1b0] sm:$0xff]
      %v1763 = vld [vmem:[%s2 + $0x1b8] sm:$0xff]
      %v1764 = vld [vmem:[%s2 + $0x1c0] sm:$0xff]
      %v1765 = vld [vmem:[%s2 + $0x1c8] sm:$0xff]
      %v1766 = vld [vmem:[%s2 + $0x1d0] sm:$0xff]
      %v1767 = vld [vmem:[%s2 + $0x1d8] sm:$0xff]
      %v1768 = vld [vmem:[%s2 + $0x1e0] sm:$0xff]
      %v1769 = vld [vmem:[%s2 + $0x1e8] sm:$0xff]
      %v1770 = vld [vmem:[%s2 + $0x1f0] sm:$0xff]
      %v1771 = vld [vmem:[%s2 + $0x1f8] sm:$0xff]
      %v1772 = vld [vmem:[%s3] sm:$0xff]
      %v1773 = vld [vmem:[%s3 + $0x8] sm:$0xff]
      %v1774 = vld [vmem:[%s3 + $0x10] sm:$0xff]
      %v1775 = vld [vmem:[%s3 + $0x18] sm:$0xff]
      %v1776 = vrot.slane %v1704, 4
      %v1777 = vadd.f32 %v1704, %v1776
      %v1778 = vrot.slane %v1777, 2
      %v1779 = vadd.f32 %v1777, %v1778
      %v1780 = vrot.slane %v1779, 1
      %v1781 = vadd.f32 %v1779, %v1780
      %v1782 = vrot.slane %v1705, 4
      %v1783 = vadd.f32 %v1705, %v1782
      %v1784 = vrot.slane %v1783, 2
      %v1785 = vadd.f32 %v1783, %v1784
      %v1786 = vrot.slane %v1785, 1
      %v1787 = vadd.f32 %v1785, %v1786
      %v1788 = vrot.slane %v1706, 4
      %v1789 = vadd.f32 %v1706, %v1788
      %v1790 = vrot.slane %v1789, 2
      %v1791 = vadd.f32 %v1789, %v1790
      %v1792 = vrot.slane %v1791, 1
      %v1793 = vadd.f32 %v1791, %v1792
      %v1794 = vrot.slane %v1707, 4
      %v1795 = vadd.f32 %v1707, %v1794
      %v1796 = vrot.slane %v1795, 2
      %v1797 = vadd.f32 %v1795, %v1796
      %v1798 = vrot.slane %v1797, 1
      %v1799 = vadd.f32 %v1797, %v1798
      %v1800 = vmul.f32 %v1704, %v1704
      %v1801 = vmul.f32 %v1705, %v1705
      %v1802 = vmul.f32 %v1706, %v1706
      %v1803 = vmul.f32 %v1707, %v1707
      %v1804 = vrot.slane %v1800, 4
      %v1805 = vadd.f32 %v1800, %v1804
      %v1806 = vrot.slane %v1805, 2
      %v1807 = vadd.f32 %v1805, %v1806
      %v1808 = vrot.slane %v1807, 1
      %v1809 = vadd.f32 %v1807, %v1808
      %v1810 = vrot.slane %v1801, 4
      %v1811 = vadd.f32 %v1801, %v1810
      %v1812 = vrot.slane %v1811, 2
      %v1813 = vadd.f32 %v1811, %v1812
      %v1814 = vrot.slane %v1813, 1
      %v1815 = vadd.f32 %v1813, %v1814
      %v1816 = vrot.slane %v1802, 4
      %v1817 = vadd.f32 %v1802, %v1816
      %v1818 = vrot.slane %v1817, 2
      %v1819 = vadd.f32 %v1817, %v1818
      %v1820 = vrot.slane %v1819, 1
      %v1821 = vadd.f32 %v1819, %v1820
      %v1822 = vrot.slane %v1803, 4
      %v1823 = vadd.f32 %v1803, %v1822
      %v1824 = vrot.slane %v1823, 2
      %v1825 = vadd.f32 %v1823, %v1824
      %v1826 = vrot.slane %v1825, 1
      %v1827 = vadd.f32 %v1825, %v1826
      %1828 = vmatpush.msra.mxu0 %v1723
      %1829 = vmatpush.msra.mxu0 %v1722
      %1830 = vmatpush.msra.mxu0 %v1721
      %1831 = vmatpush.msra.mxu0 %v1720
      %1832 = vmatpush.msra.mxu0 %v1719
      %1833 = vmatpush.msra.mxu0 %v1718
      %1834 = vmatpush.msra.mxu0 %v1717
      %1835 = vmatpush.msra.mxu0 %v1716
      %1836 = vmatpush.msra.mxu0 %v1715
      %1837 = vmatpush.msra.mxu0 %v1714
      %1838 = vmatpush.msra.mxu0 %v1713
      %1839 = vmatpush.msra.mxu0 %v1712
      %1840 = vmatpush.msra.mxu0 %v1711
      %1841 = vmatpush.msra.mxu0 %v1710
      %1842 = vmatpush.msra.mxu0 %v1709
      %1843 = vmatpush.msra.mxu0 %v1708
      %1844 = vmatmul.f32.gmra.mxu0 %v1781
      %v1845 = vpop.f32.mrf.mxu0
      %v1846 = vadd.f32 0.0, %v1845
      %1847 = vdwg.mxu0
      %1848 = vmatpush.msra.mxu0 %v1739
      %1849 = vmatpush.msra.mxu0 %v1738
      %1850 = vmatpush.msra.mxu0 %v1737
      %1851 = vmatpush.msra.mxu0 %v1736
      %1852 = vmatpush.msra.mxu0 %v1735
      %1853 = vmatpush.msra.mxu0 %v1734
      %1854 = vmatpush.msra.mxu0 %v1733
      %1855 = vmatpush.msra.mxu0 %v1732
      %1856 = vmatpush.msra.mxu0 %v1731
      %1857 = vmatpush.msra.mxu0 %v1730
      %1858 = vmatpush.msra.mxu0 %v1729
      %1859 = vmatpush.msra.mxu0 %v1728
      %1860 = vmatpush.msra.mxu0 %v1727
      %1861 = vmatpush.msra.mxu0 %v1726
      %1862 = vmatpush.msra.mxu0 %v1725
      %1863 = vmatpush.msra.mxu0 %v1724
      %1864 = vmatmul.f32.gmra.mxu0 %v1787
      %v1865 = vpop.f32.mrf.mxu0
      %v1866 = vadd.f32 %v1846, %v1865
      %1867 = vdwg.mxu0
      %1868 = vmatpush.msra.mxu0 %v1755
      %1869 = vmatpush.msra.mxu0 %v1754
      %1870 = vmatpush.msra.mxu0 %v1753
      %1871 = vmatpush.msra.mxu0 %v1752
      %1872 = vmatpush.msra.mxu0 %v1751
      %1873 = vmatpush.msra.mxu0 %v1750
      %1874 = vmatpush.msra.mxu0 %v1749
      %1875 = vmatpush.msra.mxu0 %v1748
      %1876 = vmatpush.msra.mxu0 %v1747
      %1877 = vmatpush.msra.mxu0 %v1746
      %1878 = vmatpush.msra.mxu0 %v1745
      %1879 = vmatpush.msra.mxu0 %v1744
      %1880 = vmatpush.msra.mxu0 %v1743
      %1881 = vmatpush.msra.mxu0 %v1742
      %1882 = vmatpush.msra.mxu0 %v1741
      %1883 = vmatpush.msra.mxu0 %v1740
      %1884 = vmatmul.f32.gmra.mxu0 %v1793
      %v1885 = vpop.f32.mrf.mxu0
      %v1886 = vadd.f32 %v1866, %v1885
      %1887 = vdwg.mxu0
      %1888 = vmatpush.msra.mxu0 %v1771
      %1889 = vmatpush.msra.mxu0 %v1770
      %1890 = vmatpush.msra.mxu0 %v1769
      %1891 = vmatpush.msra.mxu0 %v1768
      %1892 = vmatpush.msra.mxu0 %v1767
      %1893 = vmatpush.msra.mxu0 %v1766
      %1894 = vmatpush.msra.mxu0 %v1765
      %1895 = vmatpush.msra.mxu0 %v1764
      %1896 = vmatpush.msra.mxu0 %v1763
      %1897 = vmatpush.msra.mxu0 %v1762
      %1898 = vmatpush.msra.mxu0 %v1761
      %1899 = vmatpush.msra.mxu0 %v1760
      %1900 = vmatpush.msra.mxu0 %v1759
      %1901 = vmatpush.msra.mxu0 %v1758
      %1902 = vmatpush.msra.mxu0 %v1757
      %1903 = vmatpush.msra.mxu0 %v1756
      %1904 = vmatmul.f32.gmra.mxu0 %v1799
      %v1905 = vpop.f32.mrf.mxu0
      %v1906 = vadd.f32 %v1886, %v1905
      %1907 = vdwg.mxu0
      %1908 = vmatpush.msra.mxu0 %v1723
      %1909 = vmatpush.msra.mxu0 %v1722
      %1910 = vmatpush.msra.mxu0 %v1721
      %1911 = vmatpush.msra.mxu0 %v1720
      %1912 = vmatpush.msra.mxu0 %v1719
      %1913 = vmatpush.msra.mxu0 %v1718
      %1914 = vmatpush.msra.mxu0 %v1717
      %1915 = vmatpush.msra.mxu0 %v1716
      %1916 = vmatpush.msra.mxu0 %v1715
      %1917 = vmatpush.msra.mxu0 %v1714
      %1918 = vmatpush.msra.mxu0 %v1713
      %1919 = vmatpush.msra.mxu0 %v1712
      %1920 = vmatpush.msra.mxu0 %v1711
      %1921 = vmatpush.msra.mxu0 %v1710
      %1922 = vmatpush.msra.mxu0 %v1709
      %1923 = vmatpush.msra.mxu0 %v1708
      %1924 = vmatmul.f32.gmra.mxu0 %v1809
      %v1925 = vpop.f32.mrf.mxu0
      %v1926 = vadd.f32 0.0, %v1925
      %1927 = vdwg.mxu0
      %1928 = vmatpush.msra.mxu0 %v1739
      %1929 = vmatpush.msra.mxu0 %v1738
      %1930 = vmatpush.msra.mxu0 %v1737
      %1931 = vmatpush.msra.mxu0 %v1736
      %1932 = vmatpush.msra.mxu0 %v1735
      %1933 = vmatpush.msra.mxu0 %v1734
      %1934 = vmatpush.msra.mxu0 %v1733
      %1935 = vmatpush.msra.mxu0 %v1732
      %1936 = vmatpush.msra.mxu0 %v1731
      %1937 = vmatpush.msra.mxu0 %v1730
      %1938 = vmatpush.msra.mxu0 %v1729
      %1939 = vmatpush.msra.mxu0 %v1728
      %1940 = vmatpush.msra.mxu0 %v1727
      %1941 = vmatpush.msra.mxu0 %v1726
      %1942 = vmatpush.msra.mxu0 %v1725
      %1943 = vmatpush.msra.mxu0 %v1724
      %1944 = vmatmul.f32.gmra.mxu0 %v1815
      %v1945 = vpop.f32.mrf.mxu0
      %v1946 = vadd.f32 %v1926, %v1945
      %1947 = vdwg.mxu0
      %1948 = vmatpush.msra.mxu0 %v1755
      %1949 = vmatpush.msra.mxu0 %v1754
      %1950 = vmatpush.msra.mxu0 %v1753
      %1951 = vmatpush.msra.mxu0 %v1752
      %1952 = vmatpush.msra.mxu0 %v1751
      %1953 = vmatpush.msra.mxu0 %v1750
      %1954 = vmatpush.msra.mxu0 %v1749
      %1955 = vmatpush.msra.mxu0 %v1748
      %1956 = vmatpush.msra.mxu0 %v1747
      %1957 = vmatpush.msra.mxu0 %v1746
      %1958 = vmatpush.msra.mxu0 %v1745
      %1959 = vmatpush.msra.mxu0 %v1744
      %1960 = vmatpush.msra.mxu0 %v1743
      %1961 = vmatpush.msra.mxu0 %v1742
      %1962 = vmatpush.msra.mxu0 %v1741
      %1963 = vmatpush.msra.mxu0 %v1740
      %1964 = vmatmul.f32.gmra.mxu0 %v1821
      %v1965 = vpop.f32.mrf.mxu0
      %v1966 = vadd.f32 %v1946, %v1965
      %1967 = vdwg.mxu0
      %1968 = vmatpush.msra.mxu0 %v1771
      %1969 = vmatpush.msra.mxu0 %v1770
      %1970 = vmatpush.msra.mxu0 %v1769
      %1971 = vmatpush.msra.mxu0 %v1768
      %1972 = vmatpush.msra.mxu0 %v1767
      %1973 = vmatpush.msra.mxu0 %v1766
      %1974 = vmatpush.msra.mxu0 %v1765
      %1975 = vmatpush.msra.mxu0 %v1764
      %1976 = vmatpush.msra.mxu0 %v1763
      %1977 = vmatpush.msra.mxu0 %v1762
      %1978 = vmatpush.msra.mxu0 %v1761
      %1979 = vmatpush.msra.mxu0 %v1760
      %1980 = vmatpush.msra.mxu0 %v1759
      %1981 = vmatpush.msra.mxu0 %v1758
      %1982 = vmatpush.msra.mxu0 %v1757
      %1983 = vmatpush.msra.mxu0 %v1756
      %1984 = vmatmul.f32.gmra.mxu0 %v1827
      %v1985 = vpop.f32.mrf.mxu0
      %v1986 = vadd.f32 %v1966, %v1985
      %1987 = vdwg.mxu0
      %v1988 = vrcp.pop 512.0
      %v1989 = vmul.f32 512.0, %v1988
      %v1990 = vsub.f32 1.0, %v1989
      %v1991 = vmul.f32 %v1988, %v1990
      %v1992 = vadd.f32 %v1988, %v1991
      %vm1993 = vweird.f32 %v1988
      %v1994 = vsel %vm1993, %v1988, %v1992
      %v1995 = vmul.f32 %v1906, %v1994
      %v1996 = vmul.f32 %v1986, %v1994
      %v1997 = vmul.f32 %v1995, %v1995
      %v1998 = vsub.f32 %v1996, %v1997
      %v1999 = vmax.f32 %v1998, 0.0
      %v2000 = vadd.f32 %v1999, 1e-05
      %v2001 = vrsqrt.pop %v2000
      %v2002 = vmul.f32 %v2001, %v2000
      %v2003 = vmul.f32 %v2002, %v2001
      %v2004 = vmul.f32 0.5, %v2003
      %v2005 = vsub.f32 1.5, %v2004
      %v2006 = vmul.f32 %v2001, %v2005
      %vm2007 = vweird.f32 %v2000
      %vm2008 = vweird.f32 %v2001
      %vm2009 = vmor %vm2007, %vm2008
      %v2010 = vsel %vm2009, %v2001, %v2006
      %vm2011 = vcmask 64512
      %v2013 = vsel %vm2011, %v1995, 0
      %2015 = vmatpush.msra.mxu0 0.0
      %2016 = vmatpush.msra.mxu0 0.0
      %2017 = vmatpush.msra.mxu0 0.0
      %2018 = vmatpush.msra.mxu0 0.0
      %2019 = vmatpush.msra.mxu0 0.0
      %2020 = vmatpush.msra.mxu0 0.0
      %2021 = vmatpush.msra.mxu0 0.0
      %2022 = vmatpush.msra.mxu0 0.0
      %2023 = vmatpush.msra.mxu0 0.0
      %2024 = vmatpush.msra.mxu0 0.0
      %2025 = vmatpush.msra.mxu0 0.0
      %2026 = vmatpush.msra.mxu0 0.0
      %2027 = vmatpush.msra.mxu0 0.0
      %2028 = vmatpush.msra.mxu0 0.0
      %2029 = vmatpush.msra.mxu0 0.0
      %2030 = vmatpush.msra.mxu0 %v1772
      %2031 = vmatmul.f32.gmra.mxu0 %v2013
      %v2032 = vpop.f32.mrf.mxu0
      %v2033 = vadd.f32 0.0, %v2032
      %2034 = vdwg.mxu0
      %2035 = vmatpush.msra.mxu0 0.0
      %2036 = vmatpush.msra.mxu0 0.0
      %2037 = vmatpush.msra.mxu0 0.0
      %2038 = vmatpush.msra.mxu0 0.0
      %2039 = vmatpush.msra.mxu0 0.0
      %2040 = vmatpush.msra.mxu0 0.0
      %2041 = vmatpush.msra.mxu0 0.0
      %2042 = vmatpush.msra.mxu0 0.0
      %2043 = vmatpush.msra.mxu0 0.0
      %2044 = vmatpush.msra.mxu0 0.0
      %2045 = vmatpush.msra.mxu0 0.0
      %2046 = vmatpush.msra.mxu0 0.0
      %2047 = vmatpush.msra.mxu0 0.0
      %2048 = vmatpush.msra.mxu0 0.0
      %2049 = vmatpush.msra.mxu0 0.0
      %2050 = vmatpush.msra.mxu0 %v1773
      %2051 = vmatmul.f32.gmra.mxu0 %v2013
      %v2052 = vpop.f32.mrf.mxu0
      %v2053 = vadd.f32 0.0, %v2052
      %2054 = vdwg.mxu0
      %2055 = vmatpush.msra.mxu0 0.0
      %2056 = vmatpush.msra.mxu0 0.0
      %2057 = vmatpush.msra.mxu0 0.0
      %2058 = vmatpush.msra.mxu0 0.0
      %2059 = vmatpush.msra.mxu0 0.0
      %2060 = vmatpush.msra.mxu0 0.0
      %2061 = vmatpush.msra.mxu0 0.0
      %2062 = vmatpush.msra.mxu0 0.0
      %2063 = vmatpush.msra.mxu0 0.0
      %2064 = vmatpush.msra.mxu0 0.0
      %2065 = vmatpush.msra.mxu0 0.0
      %2066 = vmatpush.msra.mxu0 0.0
      %2067 = vmatpush.msra.mxu0 0.0
      %2068 = vmatpush.msra.mxu0 0.0
      %2069 = vmatpush.msra.mxu0 0.0
      %2070 = vmatpush.msra.mxu0 %v1774
      %2071 = vmatmul.f32.gmra.mxu0 %v2013
      %v2072 = vpop.f32.mrf.mxu0
      %v2073 = vadd.f32 0.0, %v2072
      %2074 = vdwg.mxu0
      %2075 = vmatpush.msra.mxu0 0.0
      %2076 = vmatpush.msra.mxu0 0.0
      %2077 = vmatpush.msra.mxu0 0.0
      %2078 = vmatpush.msra.mxu0 0.0
      %2079 = vmatpush.msra.mxu0 0.0
      %2080 = vmatpush.msra.mxu0 0.0
      %2081 = vmatpush.msra.mxu0 0.0
      %2082 = vmatpush.msra.mxu0 0.0
      %2083 = vmatpush.msra.mxu0 0.0
      %2084 = vmatpush.msra.mxu0 0.0
      %2085 = vmatpush.msra.mxu0 0.0
      %2086 = vmatpush.msra.mxu0 0.0
      %2087 = vmatpush.msra.mxu0 0.0
      %2088 = vmatpush.msra.mxu0 0.0
      %2089 = vmatpush.msra.mxu0 0.0
      %2090 = vmatpush.msra.mxu0 %v1775
      %2091 = vmatmul.f32.gmra.mxu0 %v2013
      %v2092 = vpop.f32.mrf.mxu0
      %v2093 = vadd.f32 0.0, %v2092
      %2094 = vdwg.mxu0
      %v2096 = vsel %vm2011, %v2010, 0
      %2098 = vmatpush.msra.mxu0 0.0
      %2099 = vmatpush.msra.mxu0 0.0
      %2100 = vmatpush.msra.mxu0 0.0
      %2101 = vmatpush.msra.mxu0 0.0
      %2102 = vmatpush.msra.mxu0 0.0
      %2103 = vmatpush.msra.mxu0 0.0
      %2104 = vmatpush.msra.mxu0 0.0
      %2105 = vmatpush.msra.mxu0 0.0
      %2106 = vmatpush.msra.mxu0 0.0
      %2107 = vmatpush.msra.mxu0 0.0
      %2108 = vmatpush.msra.mxu0 0.0
      %2109 = vmatpush.msra.mxu0 0.0
      %2110 = vmatpush.msra.mxu0 0.0
      %2111 = vmatpush.msra.mxu0 0.0
      %2112 = vmatpush.msra.mxu0 0.0
      %2113 = vmatpush.msra.mxu0 %v1772
      %2114 = vmatmul.f32.gmra.mxu0 %v2096
      %v2115 = vpop.f32.mrf.mxu0
      %v2116 = vadd.f32 0.0, %v2115
      %2117 = vdwg.mxu0
      %2118 = vmatpush.msra.mxu0 0.0
      %2119 = vmatpush.msra.mxu0 0.0
      %2120 = vmatpush.msra.mxu0 0.0
      %2121 = vmatpush.msra.mxu0 0.0
      %2122 = vmatpush.msra.mxu0 0.0
      %2123 = vmatpush.msra.mxu0 0.0
      %2124 = vmatpush.msra.mxu0 0.0
      %2125 = vmatpush.msra.mxu0 0.0
      %2126 = vmatpush.msra.mxu0 0.0
      %2127 = vmatpush.msra.mxu0 0.0
      %2128 = vmatpush.msra.mxu0 0.0
      %2129 = vmatpush.msra.mxu0 0.0
      %2130 = vmatpush.msra.mxu0 0.0
      %2131 = vmatpush.msra.mxu0 0.0
      %2132 = vmatpush.msra.mxu0 0.0
      %2133 = vmatpush.msra.mxu0 %v1773
      %2134 = vmatmul.f32.gmra.mxu0 %v2096
      %v2135 = vpop.f32.mrf.mxu0
      %v2136 = vadd.f32 0.0, %v2135
      %2137 = vdwg.mxu0
      %2138 = vmatpush.msra.mxu0 0.0
      %2139 = vmatpush.msra.mxu0 0.0
      %2140 = vmatpush.msra.mxu0 0.0
      %2141 = vmatpush.msra.mxu0 0.0
      %2142 = vmatpush.msra.mxu0 0.0
      %2143 = vmatpush.msra.mxu0 0.0
      %2144 = vmatpush.msra.mxu0 0.0
      %2145 = vmatpush.msra.mxu0 0.0
      %2146 = vmatpush.msra.mxu0 0.0
      %2147 = vmatpush.msra.mxu0 0.0
      %2148 = vmatpush.msra.mxu0 0.0
      %2149 = vmatpush.msra.mxu0 0.0
      %2150 = vmatpush.msra.mxu0 0.0
      %2151 = vmatpush.msra.mxu0 0.0
      %2152 = vmatpush.msra.mxu0 0.0
      %2153 = vmatpush.msra.mxu0 %v1774
      %2154 = vmatmul.f32.gmra.mxu0 %v2096
      %v2155 = vpop.f32.mrf.mxu0
      %v2156 = vadd.f32 0.0, %v2155
      %2157 = vdwg.mxu0
      %2158 = vmatpush.msra.mxu0 0.0
      %2159 = vmatpush.msra.mxu0 0.0
      %2160 = vmatpush.msra.mxu0 0.0
      %2161 = vmatpush.msra.mxu0 0.0
      %2162 = vmatpush.msra.mxu0 0.0
      %2163 = vmatpush.msra.mxu0 0.0
      %2164 = vmatpush.msra.mxu0 0.0
      %2165 = vmatpush.msra.mxu0 0.0
      %2166 = vmatpush.msra.mxu0 0.0
      %2167 = vmatpush.msra.mxu0 0.0
      %2168 = vmatpush.msra.mxu0 0.0
      %2169 = vmatpush.msra.mxu0 0.0
      %2170 = vmatpush.msra.mxu0 0.0
      %2171 = vmatpush.msra.mxu0 0.0
      %2172 = vmatpush.msra.mxu0 0.0
      %2173 = vmatpush.msra.mxu0 %v1775
      %2174 = vmatmul.f32.gmra.mxu0 %v2096
      %v2175 = vpop.f32.mrf.mxu0
      %v2176 = vadd.f32 0.0, %v2175
      %2177 = vdwg.mxu0
      %v2178 = vperm.slane %v2033, 0
      %v2179 = vperm.slane %v2053, 0
      %v2180 = vperm.slane %v2073, 0
      %v2181 = vperm.slane %v2093, 0
      %v2182 = vsub.f32 %v1704, %v2178
      %v2183 = vsub.f32 %v1705, %v2179
      %v2184 = vsub.f32 %v1706, %v2180
      %v2185 = vsub.f32 %v1707, %v2181
      %v2186 = vperm.slane %v2116, 0
      %v2187 = vperm.slane %v2136, 0
      %v2188 = vperm.slane %v2156, 0
      %v2189 = vperm.slane %v2176, 0
      %v2190 = vmul.f32 %v2182, %v2186
      %v2191 = vmul.f32 %v2183, %v2187
      %v2192 = vmul.f32 %v2184, %v2188
      %v2193 = vmul.f32 %v2185, %v2189
      %vm2194 = vcmp.ge.f32.partialorder %v2190, 0.0
      %vm2195 = vcmp.ge.f32.partialorder %v2191, 0.0
      %vm2196 = vcmp.ge.f32.partialorder %v2192, 0.0
      %vm2197 = vcmp.ge.f32.partialorder %v2193, 0.0
      %v2198 = vmul.f32 %v2190, 0.01
      %v2199 = vmul.f32 %v2191, 0.01
      %v2200 = vmul.f32 %v2192, 0.01
      %v2201 = vmul.f32 %v2193, 0.01
      %v2202 = vsel %vm2194, %v2190, %v2198
      %v2203 = vsel %vm2195, %v2191, %v2199
      %v2204 = vsel %vm2196, %v2192, %v2200
      %v2205 = vsel %vm2197, %v2193, %v2201
      %2206 = vst [vmem:[%s197] sm:$0xff] %v2202
      %2207 = vst [vmem:[%s197 + $0x8] sm:$0xff] %v2203
      %2208 = vst [vmem:[%s197 + $0x10] sm:$0xff] %v2204
      %2209 = vst [vmem:[%s197 + $0x18] sm:$0xff] %v2205
      %p2210 = scmp.lt.s32.totalorder %s15, 1
      %s2211 = scalar_select %p2210, %s15, 1
      %s2212 = smul.addr %s2211, 4
      %s2213 = smul.addr %s2212, 8
      %s2214 = scalar_lea.vmem %s4, %s2213
      // Predicated region
      $region37: #{conv_norm_relu_3d_forward.1} parent=35 // pred_check
        %p2215 = pneg %p122
      $region38: #{conv_norm_relu_3d_forward.1} parent=35 // pred_check_branch
        %2217 = sbr.rel (%p2215) target = $region40
      $region39: #{conv_norm_relu_3d_forward.1} parent=35 // pred_region
        _
      $region40: #{conv_norm_relu_3d_forward.1} parent=35 // pred_fallthru
        _
    $region36: #{conv_norm_relu_3d_forward.1} parent=5 // pred_fallthru
      _
    %p2218 = scmp.le.s32.totalorder 2, %s10
    // Predicated region
    $region41: #{conv_norm_relu_3d_forward.1} parent=5 // pred_check
      %p2219 = pneg %p2218
    $region42: #{conv_norm_relu_3d_forward.1} parent=5 // pred_check_branch
      %2221 = sbr.rel (%p2219) target = $region44
    $region43: #{conv_norm_relu_3d_forward.1} parent=5 // pred_region
      %s2222 = ssub.s32 %s10, 2
      // Predicated region
      $region45: #{conv_norm_relu_3d_forward.1} parent=43 // pred_check
        %p2223 = pneg %p128
      $region46: #{conv_norm_relu_3d_forward.1} parent=43 // pred_check_branch
        %2225 = sbr.rel (%p2223) target = $region48
      $region47: #{conv_norm_relu_3d_forward.1} parent=43 // pred_region
        %p2226 = scmp.lt.s32.totalorder %s16, 1
        %s2227 = scalar_select %p2226, %s16, 1
        %s2228 = smul.addr %s2227, 4
        %s2229 = smul.addr %s2228, 8
        %s2230 = scalar_lea.vmem %s4, %s2229
      $region48: #{conv_norm_relu_3d_forward.1} parent=43 // pred_fallthru
        _
    $region44: #{conv_norm_relu_3d_forward.1} parent=5 // pred_fallthru
      _
  $region6: #{conv_norm_relu_3d_forward.1} parent=0 // loop_footer
    %s14 = sadd.s32 1, %s10
  $region7: #{conv_norm_relu_3d_forward.1} parent=0 // loop_footer_branch
    %9 = sbr.rel target = $region3
  $region8: #{conv_norm_relu_3d_forward.1} parent=0 // loop_exit
    _

</llo_original>
